<compile_context>
chip_gen: v7x
topology: tpu7x:2x2x1
jax: 0.10.0
libtpu: 0.0.40
codegen_flags: <defaults>
</compile_context>

<pallas_src>
import math

import jax
import jax.numpy as jnp
from jax import lax
from jax.experimental import pallas as pl
from jax.experimental.pallas import tpu as pltpu


# ----------------------------------------------------------------------------
# In-kernel helpers
# ----------------------------------------------------------------------------
def _gelu(v):
    # TODO(synk): PyTorch nn.GELU() defaults to the exact erf form; the tanh
    # approximation is used here for guaranteed Mosaic lowering (diff ~1e-3).
    c = math.sqrt(2.0 / math.pi)
    return 0.5 * v * (1.0 + jnp.tanh(c * (v + 0.044715 * v * v * v)))


def _final_act(v, kind):
    if kind is None:
        return v
    if kind == 'gelu':
        return _gelu(v)
    if kind == 'relu':
        return jnp.maximum(v, 0.0)
    if kind == 'sigmoid':
        return 1.0 / (1.0 + jnp.exp(-v))
    if kind == 'softmax':      # torch Softmax(dim=-1-dim) == channel axis
        m = jnp.max(v, axis=-1, keepdims=True)
        e = jnp.exp(v - m)
        return e / jnp.sum(e, axis=-1, keepdims=True)
    raise ValueError('final_act not recognized')


# ----------------------------------------------------------------------------
# ConvBlock kernel: 1x1 -> GELU -> 3x3(pad=1) -> GELU -> 1x1 -> final_act
#                   -> (+ residual, 1x1 projection iff Cin != Cout)
# ----------------------------------------------------------------------------
def make_conv_block_kernel(H, W, Cin, Cemb, Cout, final_act, residual,
                           has_res_proj, use_3x3, compute_dtype):
    N = H * W
    if residual and not has_res_proj:
        assert Cin == Cout, "identity residual requires in_width == out_width"

    def kernel(*refs):
        if has_res_proj:
            (x_ref, w1_ref, b1_ref, w3_ref, b3_ref, w2_ref, b2_ref,
             wres_ref, bres_ref, o_ref) = refs
        else:
            (x_ref, w1_ref, b1_ref, w3_ref, b3_ref, w2_ref, b2_ref,
             o_ref) = refs

        x2d = x_ref[0]                                      # (N, Cin) f32
        xc = x2d.astype(compute_dtype)

        # ---- conv_1x1(in, emb) + GELU: one channel matmul on the MXU -------
        h1 = _gelu(jnp.dot(xc, w1_ref[...],
                           preferred_element_type=jnp.float32) + b1_ref[...])

        if use_3x3:
            # ---- conv_3x3(emb, emb, padding=1) ------------------------------
            # Each tap (dy, dx) is an XLU sublane roll of h1 by dy*W+dx plus an
            # (N, 1) border mask; the 9 masked taps are concatenated along the
            # channel axis and contracted against w3 (reshaped to
            # (9*Cemb, Cemb)) in a single MXU matmul.
            r = lax.broadcasted_iota(jnp.int32, (N, 1), 0)  # flat pixel index
            x_col = r % W                                   # x coordinate
            taps = []
            for dy in (-1, 0, 1):
                for dx in (-1, 0, 1):
                    s = dy * W + dx
                    if s == 0:
                        taps.append(h1)
                        continue
                    # shifted[r] = h1[(r + s) mod N]
                    shifted = pltpu.roll(h1, shift=(-s) % N, axis=0)
                    valid = ((x_col + dx >= 0) & (x_col + dx < W) &
                             (r + dy * W >= 0) & (r + dy * W < N))
                    taps.append(shifted * valid.astype(shifted.dtype))
            h_cat = jnp.concatenate(taps, axis=-1)          # (N, 9*Cemb)
        else:
            h_cat = h1                                      # 1x1 mid conv

        h2 = _gelu(jnp.dot(h_cat.astype(compute_dtype), w3_ref[...],
                           preferred_element_type=jnp.float32) + b3_ref[...])

        # ---- conv_1x1(emb, out) + final activation -------------------------
        out = jnp.dot(h2.astype(compute_dtype), w2_ref[...],
                      preferred_element_type=jnp.float32) + b2_ref[...]
        out = _final_act(out, final_act)

        # ---- residual -------------------------------------------------------
        if residual:
            if has_res_proj:
                out = out + (jnp.dot(xc, wres_ref[...],
                                     preferred_element_type=jnp.float32)
                             + bres_ref[...])
            else:
                out = out + x2d
        o_ref[0] = out.astype(o_ref.dtype)

    return kernel


# ----------------------------------------------------------------------------
# Glue: rescale (pure data movement, stays outside the kernel)
# ----------------------------------------------------------------------------
def _rescale_nchw(x, up_rate, down_rate):
    if up_rate is not None:                         # F.interpolate (nearest)
        uh, uw = up_rate
        return jnp.repeat(jnp.repeat(x, uh, axis=2), uw, axis=3)
    if down_rate is not None:                       # F.avg_pool2d
        dh, dw = down_rate
        B, C, H, W = x.shape
        assert H % dh == 0 and W % dw == 0
        return x.reshape(B, C, H // dh, dh, W // dw, dw).mean(axis=(3, 5))
    return x


# ----------------------------------------------------------------------------
# Wrapper: NCHW in/out, one pallas_call per ConvBlock
# ----------------------------------------------------------------------------
def conv_block_apply(x_nchw, block, *, compute_dtype=jnp.bfloat16):
    p, meta = block['params'], block['meta']
    if meta['rescale_first']:
        x_nchw = _rescale_nchw(x_nchw, meta['up_rate'], meta['down_rate'])

    B, Cin, H, W = x_nchw.shape
    assert Cin == meta['cin']
    Cemb, Cout = meta['emb'], meta['cout']
    N = H * W
    x_flat = x_nchw.transpose(0, 2, 3, 1).reshape(B, N, Cin)

    # Weights shipped as bf16 (half the weight DMA bytes); biases stay f32 and
    # all accumulation is f32.
    w1 = p['w1'].astype(compute_dtype)
    if meta['use_3x3']:
        w3 = p['w3'].reshape(9 * Cemb, Cemb).astype(compute_dtype)
    else:
        w3 = p['w3'].astype(compute_dtype)
    w2 = p['w2'].astype(compute_dtype)
    k3_rows = w3.shape[0]

    kernel = make_conv_block_kernel(H, W, Cin, Cemb, Cout, meta['final_act'],
                                    meta['residual'], meta['has_res_proj'],
                                    meta['use_3x3'], compute_dtype)

    inputs = [x_flat, w1, p['b1'], w3, p['b3'], w2, p['b2']]
    in_specs = [
        pl.BlockSpec((1, N, Cin), lambda b: (b, 0, 0)),
        pl.BlockSpec((Cin, Cemb), lambda b: (0, 0)),
        pl.BlockSpec((1, Cemb), lambda b: (0, 0)),
        pl.BlockSpec((k3_rows, Cemb), lambda b: (0, 0)),
        pl.BlockSpec((1, Cemb), lambda b: (0, 0)),
        pl.BlockSpec((Cemb, Cout), lambda b: (0, 0)),
        pl.BlockSpec((1, Cout), lambda b: (0, 0)),
    ]
    if meta['has_res_proj']:
        inputs += [p['wres'].astype(compute_dtype), p['bres']]
        in_specs += [pl.BlockSpec((Cin, Cout), lambda b: (0, 0)),
                     pl.BlockSpec((1, Cout), lambda b: (0, 0))]

    out_flat = pl.pallas_call(
        kernel,
        out_shape=jax.ShapeDtypeStruct((B, N, Cout), jnp.float32),
        grid=(B,),
        in_specs=in_specs,
        out_specs=pl.BlockSpec((1, N, Cout), lambda b: (b, 0, 0)),
        compiler_params=pltpu.CompilerParams(
            # batch images are independent -> shard across the 2 TCs on v7x.
            dimension_semantics=("parallel",)),
    )(*inputs)

    out_nchw = out_flat.reshape(B, H, W, Cout).transpose(0, 3, 1, 2)
    if not meta['rescale_first']:
        # TODO(synk): fuse the nearest-neighbor upsample into the kernel's
        # out_spec (row-replicating index_map) to avoid this HBM round trip.
        out_nchw = _rescale_nchw(out_nchw, meta['up_rate'], meta['down_rate'])
    return out_nchw


# ----------------------------------------------------------------------------
# Parameter construction (mirrors ConvBlock.__init__; deterministic)
# ----------------------------------------------------------------------------
def make_conv_block(key, in_width, emb_width, out_width, *, dim=2,
                    residual=True, layer_norm=False, use_3x3=True,
                    final_act=None, up_rate=None, down_rate=None,
                    rescale_first=False):
    assert dim == 2, "only the 2D ConvBlock is implemented"
    assert up_rate is None or down_rate is None
    if layer_norm:
        # TODO(synk): custom LayerNorm class is not part of the provided spec.
        raise NotImplementedError("layer_norm=True not implemented")

    ks = jax.random.split(key, 8)

    def w(k, shape, fan_in):
        return jax.random.normal(k, shape, jnp.float32) / math.sqrt(float(fan_in))

    p = {
        'w1': w(ks[0], (in_width, emb_width), in_width),
        'b1': w(ks[1], (1, emb_width), in_width),
        'w2': w(ks[4], (emb_width, out_width), emb_width),
        'b2': w(ks[5], (1, out_width), emb_width),
    }
    if use_3x3:
        p['w3'] = w(ks[2], (3, 3, emb_width, emb_width), 9 * emb_width)
        p['b3'] = w(ks[3], (1, emb_width), 9 * emb_width)
    else:
        p['w3'] = w(ks[2], (emb_width, emb_width), emb_width)
        p['b3'] = w(ks[3], (1, emb_width), emb_width)
    has_res_proj = bool(residual) and (in_width != out_width)
    if has_res_proj:
        p['wres'] = w(ks[6], (in_width, out_width), in_width)
        p['bres'] = w(ks[7], (1, out_width), in_width)

    meta = dict(cin=in_width, emb=emb_width, cout=out_width,
                residual=bool(residual), has_res_proj=has_res_proj,
                use_3x3=use_3x3, final_act=final_act, up_rate=up_rate,
                down_rate=down_rate, rescale_first=rescale_first)
    return {'params': p, 'meta': meta}


# ----------------------------------------------------------------------------
# Pure-JAX reference (same math, f32 throughout) for the self-check
# ----------------------------------------------------------------------------
def conv_block_reference(x_nchw, block):
    p, meta = block['params'], block['meta']

    def act_final(v):
        k = meta['final_act']
        if k is None:
            return v
        if k == 'gelu':
            return jax.nn.gelu(v, approximate=True)
        if k == 'relu':
            return jax.nn.relu(v)
        if k == 'sigmoid':
            return jax.nn.sigmoid(v)
        if k == 'softmax':
            return jax.nn.softmax(v, axis=-1)
        raise ValueError('final_act not recognized')

    if meta['rescale_first']:
        x_nchw = _rescale_nchw(x_nchw, meta['up_rate'], meta['down_rate'])
    x = x_nchw.transpose(0, 2, 3, 1)                         # NHWC
    h = jax.nn.gelu(jnp.einsum('bhwc,ce->bhwe', x, p['w1']) + p['b1'],
                    approximate=True)
    if meta['use_3x3']:
        h = lax.conv_general_dilated(h, p['w3'], (1, 1), 'SAME',
                                     dimension_numbers=('NHWC', 'HWIO', 'NHWC'))
    else:
        h = jnp.einsum('bhwc,ce->bhwe', h, p['w3'])
    h = jax.nn.gelu(h + p['b3'], approximate=True)
    out = act_final(jnp.einsum('bhwc,ce->bhwe', h, p['w2']) + p['b2'])
    if meta['residual']:
        if meta['has_res_proj']:
            out = out + jnp.einsum('bhwc,ce->bhwe', x, p['wres']) + p['bres']
        else:
            out = out + x
    out = out.transpose(0, 3, 1, 2)
    if not meta['rescale_first']:
        out = _rescale_nchw(out, meta['up_rate'], meta['down_rate'])
    return out


# ----------------------------------------------------------------------------
if __name__ == "__main__":
    key = jax.random.PRNGKey(0)
    key, kx, k1, k2, k3 = jax.random.split(key, 5)

    # Small shapes consistent with the module: NCHW input (B=2, C=4, 16x16).
    x = jax.random.normal(kx, (2, 4, 16, 16), jnp.float32)

    blocks = [
        # Cin != Cout -> 1x1 residual projection; GELU tail; 2x nearest upsample.
        make_conv_block(k1, 4, 8, 8, final_act='gelu', up_rate=(2, 2)),
        # identity residual (Cin == Cout), no final activation.
        make_conv_block(k2, 8, 8, 8, final_act=None),
        # no residual, sigmoid tail, 2x average-pool downsample.
        make_conv_block(k3, 8, 8, 8, residual=False, final_act='sigmoid',
                        down_rate=(2, 2)),
    ]

    out = x
    for blk in blocks:
        out = conv_block_apply(out, blk)
    out = jax.block_until_ready(out)
    assert out.shape == (2, 8, 16, 16), out.shape

    ref = x
    for blk in blocks:
        ref = conv_block_reference(ref, blk)
    ref = jax.block_until_ready(ref)

    err = float(jnp.max(jnp.abs(out - ref)))
    assert err < 0.1, f"max |pallas - reference| too large: {err}"
    print("KERNEL_OK")
</pallas_src>

<mosaic_0001>
module attributes {stable_mosaic.version = 11 : i64} {
  func.func @kernel(%arg0: i32, %arg1: memref<1x256x4xf32, #tpu.memory_space<vmem>>, %arg2: memref<4x8xbf16, #tpu.memory_space<vmem>>, %arg3: memref<1x8xf32, #tpu.memory_space<vmem>>, %arg4: memref<72x8xbf16, #tpu.memory_space<vmem>>, %arg5: memref<1x8xf32, #tpu.memory_space<vmem>>, %arg6: memref<8x8xbf16, #tpu.memory_space<vmem>>, %arg7: memref<1x8xf32, #tpu.memory_space<vmem>>, %arg8: memref<4x8xbf16, #tpu.memory_space<vmem>>, %arg9: memref<1x8xf32, #tpu.memory_space<vmem>>, %arg10: memref<1x256x8xf32, #tpu.memory_space<vmem>>) attributes {dimension_semantics = [#tpu.dimension_semantics<parallel>], iteration_bounds = array<i64: 2>, scalar_prefetch = 0 : i64, scratch_operands = 0 : i64, tpu.core_type = #tpu.core_type<tc>, window_params = [{transform_indices = @transform_0, window_bounds = array<i64: 1, 256, 4>}, {pipeline_mode = #tpu.pipeline_mode<synchronous>, transform_indices = @transform_1, window_bounds = array<i64: 4, 8>}, {pipeline_mode = #tpu.pipeline_mode<synchronous>, transform_indices = @transform_2, window_bounds = array<i64: 1, 8>}, {pipeline_mode = #tpu.pipeline_mode<synchronous>, transform_indices = @transform_3, window_bounds = array<i64: 72, 8>}, {pipeline_mode = #tpu.pipeline_mode<synchronous>, transform_indices = @transform_4, window_bounds = array<i64: 1, 8>}, {pipeline_mode = #tpu.pipeline_mode<synchronous>, transform_indices = @transform_5, window_bounds = array<i64: 8, 8>}, {pipeline_mode = #tpu.pipeline_mode<synchronous>, transform_indices = @transform_6, window_bounds = array<i64: 1, 8>}, {pipeline_mode = #tpu.pipeline_mode<synchronous>, transform_indices = @transform_7, window_bounds = array<i64: 4, 8>}, {pipeline_mode = #tpu.pipeline_mode<synchronous>, transform_indices = @transform_8, window_bounds = array<i64: 1, 8>}, {transform_indices = @transform_9, window_bounds = array<i64: 1, 256, 8>}]} {
    %c0 = arith.constant 0 : index
    %c0_0 = arith.constant 0 : index
    %c0_1 = arith.constant 0 : index
    %0 = vector.load %arg1[%c0, %c0_0, %c0_1] : memref<1x256x4xf32, #tpu.memory_space<vmem>>, vector<1x256x4xf32>
    %1 = vector.shape_cast %0 : vector<1x256x4xf32> to vector<256x4xf32>
    %2 = arith.truncf %1 : vector<256x4xf32> to vector<256x4xbf16>
    %c0_2 = arith.constant 0 : index
    %c0_3 = arith.constant 0 : index
    %3 = vector.load %arg2[%c0_2, %c0_3] : memref<4x8xbf16, #tpu.memory_space<vmem>>, vector<4x8xbf16>
    %cst = arith.constant dense<0.000000e+00> : vector<256x8xf32>
    %4 = tpu.matmul %2, %3, %cst {dimension_numbers = #tpu.dot_dimension_numbers<[1], [0], [0], [1], [0, 0, 1, 1], [], []>} : vector<256x4xbf16>, vector<4x8xbf16>, vector<256x8xf32> -> vector<256x8xf32>
    %c0_4 = arith.constant 0 : index
    %c0_5 = arith.constant 0 : index
    %5 = vector.load %arg3[%c0_4, %c0_5] : memref<1x8xf32, #tpu.memory_space<vmem>>, vector<1x8xf32>
    %6 = vector.broadcast %5 : vector<1x8xf32> to vector<256x8xf32>
    %7 = arith.addf %4, %6 : vector<256x8xf32>
    %cst_6 = arith.constant 5.000000e-01 : f32
    %8 = vector.broadcast %cst_6 : f32 to vector<256x8xf32>
    %9 = arith.mulf %8, %7 : vector<256x8xf32>
    %cst_7 = arith.constant 4.471500e-02 : f32
    %10 = vector.broadcast %cst_7 : f32 to vector<256x8xf32>
    %11 = arith.mulf %10, %7 : vector<256x8xf32>
    %12 = arith.mulf %11, %7 : vector<256x8xf32>
    %13 = arith.mulf %12, %7 : vector<256x8xf32>
    %14 = arith.addf %7, %13 : vector<256x8xf32>
    %cst_8 = arith.constant 0.797884583 : f32
    %15 = vector.broadcast %cst_8 : f32 to vector<256x8xf32>
    %16 = arith.mulf %15, %14 : vector<256x8xf32>
    %17 = math.tanh %16 : vector<256x8xf32>
    %cst_9 = arith.constant 1.000000e+00 : f32
    %18 = vector.broadcast %cst_9 : f32 to vector<256x8xf32>
    %19 = arith.addf %18, %17 : vector<256x8xf32>
    %20 = arith.mulf %9, %19 : vector<256x8xf32>
    %21 = tpu.iota {dimensions = array<i32: 0>} : vector<256x1xi32>
    %c16_i32 = arith.constant 16 : i32
    %c0_i32 = arith.constant 0 : i32
    %22 = arith.cmpi eq, %c16_i32, %c0_i32 : i32
    %c1_i32 = arith.constant 1 : i32
    %23 = arith.select %22, %c1_i32, %c16_i32 : i32
    %24 = vector.broadcast %23 : i32 to vector<256x1xi32>
    %25 = arith.remsi %21, %24 : vector<256x1xi32>
    %c0_i32_10 = arith.constant 0 : i32
    %26 = vector.broadcast %c0_i32_10 : i32 to vector<256x1xi32>
    %27 = arith.cmpi ne, %25, %26 : vector<256x1xi32>
    %c0_i32_11 = arith.constant 0 : i32
    %28 = vector.broadcast %c0_i32_11 : i32 to vector<256x1xi32>
    %29 = arith.cmpi slt, %25, %28 : vector<256x1xi32>
    %c0_i32_12 = arith.constant 0 : i32
    %30 = arith.cmpi slt, %23, %c0_i32_12 : i32
    %31 = vector.broadcast %30 : i1 to vector<256x1xi1>
    %32 = vector.broadcast %31 : vector<256x1xi1> to vector<256x1xi1>
    %33 = arith.xori %29, %32 : vector<256x1xi1>
    %34 = arith.andi %33, %27 : vector<256x1xi1>
    %35 = vector.broadcast %23 : i32 to vector<256x1xi32>
    %36 = arith.addi %25, %35 : vector<256x1xi32>
    %37 = arith.select %34, %36, %25 : vector<256x1xi1>, vector<256x1xi32>
    %c17_i32 = arith.constant 17 : i32
    %38 = tpu.dynamic_rotate %20 by %c17_i32 dim 0 : vector<256x8xf32>, i32 -> vector<256x8xf32>
    %c-1_i32 = arith.constant -1 : i32
    %39 = vector.broadcast %c-1_i32 : i32 to vector<256x1xi32>
    %40 = arith.addi %37, %39 : vector<256x1xi32>
    %c0_i32_13 = arith.constant 0 : i32
    %41 = vector.broadcast %c0_i32_13 : i32 to vector<256x1xi32>
    %42 = arith.cmpi sge, %40, %41 : vector<256x1xi32>
    %c-1_i32_14 = arith.constant -1 : i32
    %43 = vector.broadcast %c-1_i32_14 : i32 to vector<256x1xi32>
    %44 = arith.addi %37, %43 : vector<256x1xi32>
    %c16_i32_15 = arith.constant 16 : i32
    %45 = vector.broadcast %c16_i32_15 : i32 to vector<256x1xi32>
    %46 = arith.cmpi slt, %44, %45 : vector<256x1xi32>
    %47 = arith.andi %42, %46 : vector<256x1xi1>
    %c-16_i32 = arith.constant -16 : i32
    %48 = vector.broadcast %c-16_i32 : i32 to vector<256x1xi32>
    %49 = arith.addi %21, %48 : vector<256x1xi32>
    %c0_i32_16 = arith.constant 0 : i32
    %50 = vector.broadcast %c0_i32_16 : i32 to vector<256x1xi32>
    %51 = arith.cmpi sge, %49, %50 : vector<256x1xi32>
    %52 = arith.andi %47, %51 : vector<256x1xi1>
    %c-16_i32_17 = arith.constant -16 : i32
    %53 = vector.broadcast %c-16_i32_17 : i32 to vector<256x1xi32>
    %54 = arith.addi %21, %53 : vector<256x1xi32>
    %c256_i32 = arith.constant 256 : i32
    %55 = vector.broadcast %c256_i32 : i32 to vector<256x1xi32>
    %56 = arith.cmpi slt, %54, %55 : vector<256x1xi32>
    %57 = arith.andi %52, %56 : vector<256x1xi1>
    %58 = arith.extui %57 : vector<256x1xi1> to vector<256x1xi32>
    %59 = arith.sitofp %58 : vector<256x1xi32> to vector<256x1xf32>
    %60 = vector.broadcast %59 : vector<256x1xf32> to vector<256x8xf32>
    %61 = arith.mulf %38, %60 : vector<256x8xf32>
    %c16_i32_18 = arith.constant 16 : i32
    %62 = tpu.dynamic_rotate %20 by %c16_i32_18 dim 0 : vector<256x8xf32>, i32 -> vector<256x8xf32>
    %c0_i32_19 = arith.constant 0 : i32
    %63 = vector.broadcast %c0_i32_19 : i32 to vector<256x1xi32>
    %64 = arith.addi %37, %63 : vector<256x1xi32>
    %c0_i32_20 = arith.constant 0 : i32
    %65 = vector.broadcast %c0_i32_20 : i32 to vector<256x1xi32>
    %66 = arith.cmpi sge, %64, %65 : vector<256x1xi32>
    %c0_i32_21 = arith.constant 0 : i32
    %67 = vector.broadcast %c0_i32_21 : i32 to vector<256x1xi32>
    %68 = arith.addi %37, %67 : vector<256x1xi32>
    %c16_i32_22 = arith.constant 16 : i32
    %69 = vector.broadcast %c16_i32_22 : i32 to vector<256x1xi32>
    %70 = arith.cmpi slt, %68, %69 : vector<256x1xi32>
    %71 = arith.andi %66, %70 : vector<256x1xi1>
    %c-16_i32_23 = arith.constant -16 : i32
    %72 = vector.broadcast %c-16_i32_23 : i32 to vector<256x1xi32>
    %73 = arith.addi %21, %72 : vector<256x1xi32>
    %c0_i32_24 = arith.constant 0 : i32
    %74 = vector.broadcast %c0_i32_24 : i32 to vector<256x1xi32>
    %75 = arith.cmpi sge, %73, %74 : vector<256x1xi32>
    %76 = arith.andi %71, %75 : vector<256x1xi1>
    %c-16_i32_25 = arith.constant -16 : i32
    %77 = vector.broadcast %c-16_i32_25 : i32 to vector<256x1xi32>
    %78 = arith.addi %21, %77 : vector<256x1xi32>
    %c256_i32_26 = arith.constant 256 : i32
    %79 = vector.broadcast %c256_i32_26 : i32 to vector<256x1xi32>
    %80 = arith.cmpi slt, %78, %79 : vector<256x1xi32>
    %81 = arith.andi %76, %80 : vector<256x1xi1>
    %82 = arith.extui %81 : vector<256x1xi1> to vector<256x1xi32>
    %83 = arith.sitofp %82 : vector<256x1xi32> to vector<256x1xf32>
    %84 = vector.broadcast %83 : vector<256x1xf32> to vector<256x8xf32>
    %85 = arith.mulf %62, %84 : vector<256x8xf32>
    %c15_i32 = arith.constant 15 : i32
    %86 = tpu.dynamic_rotate %20 by %c15_i32 dim 0 : vector<256x8xf32>, i32 -> vector<256x8xf32>
    %c1_i32_27 = arith.constant 1 : i32
    %87 = vector.broadcast %c1_i32_27 : i32 to vector<256x1xi32>
    %88 = arith.addi %37, %87 : vector<256x1xi32>
    %c0_i32_28 = arith.constant 0 : i32
    %89 = vector.broadcast %c0_i32_28 : i32 to vector<256x1xi32>
    %90 = arith.cmpi sge, %88, %89 : vector<256x1xi32>
    %c1_i32_29 = arith.constant 1 : i32
    %91 = vector.broadcast %c1_i32_29 : i32 to vector<256x1xi32>
    %92 = arith.addi %37, %91 : vector<256x1xi32>
    %c16_i32_30 = arith.constant 16 : i32
    %93 = vector.broadcast %c16_i32_30 : i32 to vector<256x1xi32>
    %94 = arith.cmpi slt, %92, %93 : vector<256x1xi32>
    %95 = arith.andi %90, %94 : vector<256x1xi1>
    %c-16_i32_31 = arith.constant -16 : i32
    %96 = vector.broadcast %c-16_i32_31 : i32 to vector<256x1xi32>
    %97 = arith.addi %21, %96 : vector<256x1xi32>
    %c0_i32_32 = arith.constant 0 : i32
    %98 = vector.broadcast %c0_i32_32 : i32 to vector<256x1xi32>
    %99 = arith.cmpi sge, %97, %98 : vector<256x1xi32>
    %100 = arith.andi %95, %99 : vector<256x1xi1>
    %c-16_i32_33 = arith.constant -16 : i32
    %101 = vector.broadcast %c-16_i32_33 : i32 to vector<256x1xi32>
    %102 = arith.addi %21, %101 : vector<256x1xi32>
    %c256_i32_34 = arith.constant 256 : i32
    %103 = vector.broadcast %c256_i32_34 : i32 to vector<256x1xi32>
    %104 = arith.cmpi slt, %102, %103 : vector<256x1xi32>
    %105 = arith.andi %100, %104 : vector<256x1xi1>
    %106 = arith.extui %105 : vector<256x1xi1> to vector<256x1xi32>
    %107 = arith.sitofp %106 : vector<256x1xi32> to vector<256x1xf32>
    %108 = vector.broadcast %107 : vector<256x1xf32> to vector<256x8xf32>
    %109 = arith.mulf %86, %108 : vector<256x8xf32>
    %c1_i32_35 = arith.constant 1 : i32
    %110 = tpu.dynamic_rotate %20 by %c1_i32_35 dim 0 : vector<256x8xf32>, i32 -> vector<256x8xf32>
    %c-1_i32_36 = arith.constant -1 : i32
    %111 = vector.broadcast %c-1_i32_36 : i32 to vector<256x1xi32>
    %112 = arith.addi %37, %111 : vector<256x1xi32>
    %c0_i32_37 = arith.constant 0 : i32
    %113 = vector.broadcast %c0_i32_37 : i32 to vector<256x1xi32>
    %114 = arith.cmpi sge, %112, %113 : vector<256x1xi32>
    %c-1_i32_38 = arith.constant -1 : i32
    %115 = vector.broadcast %c-1_i32_38 : i32 to vector<256x1xi32>
    %116 = arith.addi %37, %115 : vector<256x1xi32>
    %c16_i32_39 = arith.constant 16 : i32
    %117 = vector.broadcast %c16_i32_39 : i32 to vector<256x1xi32>
    %118 = arith.cmpi slt, %116, %117 : vector<256x1xi32>
    %119 = arith.andi %114, %118 : vector<256x1xi1>
    %c0_i32_40 = arith.constant 0 : i32
    %120 = vector.broadcast %c0_i32_40 : i32 to vector<256x1xi32>
    %121 = arith.addi %21, %120 : vector<256x1xi32>
    %c0_i32_41 = arith.constant 0 : i32
    %122 = vector.broadcast %c0_i32_41 : i32 to vector<256x1xi32>
    %123 = arith.cmpi sge, %121, %122 : vector<256x1xi32>
    %124 = arith.andi %119, %123 : vector<256x1xi1>
    %c0_i32_42 = arith.constant 0 : i32
    %125 = vector.broadcast %c0_i32_42 : i32 to vector<256x1xi32>
    %126 = arith.addi %21, %125 : vector<256x1xi32>
    %c256_i32_43 = arith.constant 256 : i32
    %127 = vector.broadcast %c256_i32_43 : i32 to vector<256x1xi32>
    %128 = arith.cmpi slt, %126, %127 : vector<256x1xi32>
    %129 = arith.andi %124, %128 : vector<256x1xi1>
    %130 = arith.extui %129 : vector<256x1xi1> to vector<256x1xi32>
    %131 = arith.sitofp %130 : vector<256x1xi32> to vector<256x1xf32>
    %132 = vector.broadcast %131 : vector<256x1xf32> to vector<256x8xf32>
    %133 = arith.mulf %110, %132 : vector<256x8xf32>
    %c255_i32 = arith.constant 255 : i32
    %134 = tpu.dynamic_rotate %20 by %c255_i32 dim 0 : vector<256x8xf32>, i32 -> vector<256x8xf32>
    %c1_i32_44 = arith.constant 1 : i32
    %135 = vector.broadcast %c1_i32_44 : i32 to vector<256x1xi32>
    %136 = arith.addi %37, %135 : vector<256x1xi32>
    %c0_i32_45 = arith.constant 0 : i32
    %137 = vector.broadcast %c0_i32_45 : i32 to vector<256x1xi32>
    %138 = arith.cmpi sge, %136, %137 : vector<256x1xi32>
    %c1_i32_46 = arith.constant 1 : i32
    %139 = vector.broadcast %c1_i32_46 : i32 to vector<256x1xi32>
    %140 = arith.addi %37, %139 : vector<256x1xi32>
    %c16_i32_47 = arith.constant 16 : i32
    %141 = vector.broadcast %c16_i32_47 : i32 to vector<256x1xi32>
    %142 = arith.cmpi slt, %140, %141 : vector<256x1xi32>
    %143 = arith.andi %138, %142 : vector<256x1xi1>
    %c0_i32_48 = arith.constant 0 : i32
    %144 = vector.broadcast %c0_i32_48 : i32 to vector<256x1xi32>
    %145 = arith.addi %21, %144 : vector<256x1xi32>
    %c0_i32_49 = arith.constant 0 : i32
    %146 = vector.broadcast %c0_i32_49 : i32 to vector<256x1xi32>
    %147 = arith.cmpi sge, %145, %146 : vector<256x1xi32>
    %148 = arith.andi %143, %147 : vector<256x1xi1>
    %c0_i32_50 = arith.constant 0 : i32
    %149 = vector.broadcast %c0_i32_50 : i32 to vector<256x1xi32>
    %150 = arith.addi %21, %149 : vector<256x1xi32>
    %c256_i32_51 = arith.constant 256 : i32
    %151 = vector.broadcast %c256_i32_51 : i32 to vector<256x1xi32>
    %152 = arith.cmpi slt, %150, %151 : vector<256x1xi32>
    %153 = arith.andi %148, %152 : vector<256x1xi1>
    %154 = arith.extui %153 : vector<256x1xi1> to vector<256x1xi32>
    %155 = arith.sitofp %154 : vector<256x1xi32> to vector<256x1xf32>
    %156 = vector.broadcast %155 : vector<256x1xf32> to vector<256x8xf32>
    %157 = arith.mulf %134, %156 : vector<256x8xf32>
    %c241_i32 = arith.constant 241 : i32
    %158 = tpu.dynamic_rotate %20 by %c241_i32 dim 0 : vector<256x8xf32>, i32 -> vector<256x8xf32>
    %c-1_i32_52 = arith.constant -1 : i32
    %159 = vector.broadcast %c-1_i32_52 : i32 to vector<256x1xi32>
    %160 = arith.addi %37, %159 : vector<256x1xi32>
    %c0_i32_53 = arith.constant 0 : i32
    %161 = vector.broadcast %c0_i32_53 : i32 to vector<256x1xi32>
    %162 = arith.cmpi sge, %160, %161 : vector<256x1xi32>
    %c-1_i32_54 = arith.constant -1 : i32
    %163 = vector.broadcast %c-1_i32_54 : i32 to vector<256x1xi32>
    %164 = arith.addi %37, %163 : vector<256x1xi32>
    %c16_i32_55 = arith.constant 16 : i32
    %165 = vector.broadcast %c16_i32_55 : i32 to vector<256x1xi32>
    %166 = arith.cmpi slt, %164, %165 : vector<256x1xi32>
    %167 = arith.andi %162, %166 : vector<256x1xi1>
    %c16_i32_56 = arith.constant 16 : i32
    %168 = vector.broadcast %c16_i32_56 : i32 to vector<256x1xi32>
    %169 = arith.addi %21, %168 : vector<256x1xi32>
    %c0_i32_57 = arith.constant 0 : i32
    %170 = vector.broadcast %c0_i32_57 : i32 to vector<256x1xi32>
    %171 = arith.cmpi sge, %169, %170 : vector<256x1xi32>
    %172 = arith.andi %167, %171 : vector<256x1xi1>
    %c16_i32_58 = arith.constant 16 : i32
    %173 = vector.broadcast %c16_i32_58 : i32 to vector<256x1xi32>
    %174 = arith.addi %21, %173 : vector<256x1xi32>
    %c256_i32_59 = arith.constant 256 : i32
    %175 = vector.broadcast %c256_i32_59 : i32 to vector<256x1xi32>
    %176 = arith.cmpi slt, %174, %175 : vector<256x1xi32>
    %177 = arith.andi %172, %176 : vector<256x1xi1>
    %178 = arith.extui %177 : vector<256x1xi1> to vector<256x1xi32>
    %179 = arith.sitofp %178 : vector<256x1xi32> to vector<256x1xf32>
    %180 = vector.broadcast %179 : vector<256x1xf32> to vector<256x8xf32>
    %181 = arith.mulf %158, %180 : vector<256x8xf32>
    %c240_i32 = arith.constant 240 : i32
    %182 = tpu.dynamic_rotate %20 by %c240_i32 dim 0 : vector<256x8xf32>, i32 -> vector<256x8xf32>
    %c0_i32_60 = arith.constant 0 : i32
    %183 = vector.broadcast %c0_i32_60 : i32 to vector<256x1xi32>
    %184 = arith.addi %37, %183 : vector<256x1xi32>
    %c0_i32_61 = arith.constant 0 : i32
    %185 = vector.broadcast %c0_i32_61 : i32 to vector<256x1xi32>
    %186 = arith.cmpi sge, %184, %185 : vector<256x1xi32>
    %c0_i32_62 = arith.constant 0 : i32
    %187 = vector.broadcast %c0_i32_62 : i32 to vector<256x1xi32>
    %188 = arith.addi %37, %187 : vector<256x1xi32>
    %c16_i32_63 = arith.constant 16 : i32
    %189 = vector.broadcast %c16_i32_63 : i32 to vector<256x1xi32>
    %190 = arith.cmpi slt, %188, %189 : vector<256x1xi32>
    %191 = arith.andi %186, %190 : vector<256x1xi1>
    %c16_i32_64 = arith.constant 16 : i32
    %192 = vector.broadcast %c16_i32_64 : i32 to vector<256x1xi32>
    %193 = arith.addi %21, %192 : vector<256x1xi32>
    %c0_i32_65 = arith.constant 0 : i32
    %194 = vector.broadcast %c0_i32_65 : i32 to vector<256x1xi32>
    %195 = arith.cmpi sge, %193, %194 : vector<256x1xi32>
    %196 = arith.andi %191, %195 : vector<256x1xi1>
    %c16_i32_66 = arith.constant 16 : i32
    %197 = vector.broadcast %c16_i32_66 : i32 to vector<256x1xi32>
    %198 = arith.addi %21, %197 : vector<256x1xi32>
    %c256_i32_67 = arith.constant 256 : i32
    %199 = vector.broadcast %c256_i32_67 : i32 to vector<256x1xi32>
    %200 = arith.cmpi slt, %198, %199 : vector<256x1xi32>
    %201 = arith.andi %196, %200 : vector<256x1xi1>
    %202 = arith.extui %201 : vector<256x1xi1> to vector<256x1xi32>
    %203 = arith.sitofp %202 : vector<256x1xi32> to vector<256x1xf32>
    %204 = vector.broadcast %203 : vector<256x1xf32> to vector<256x8xf32>
    %205 = arith.mulf %182, %204 : vector<256x8xf32>
    %c239_i32 = arith.constant 239 : i32
    %206 = tpu.dynamic_rotate %20 by %c239_i32 dim 0 : vector<256x8xf32>, i32 -> vector<256x8xf32>
    %c1_i32_68 = arith.constant 1 : i32
    %207 = vector.broadcast %c1_i32_68 : i32 to vector<256x1xi32>
    %208 = arith.addi %37, %207 : vector<256x1xi32>
    %c0_i32_69 = arith.constant 0 : i32
    %209 = vector.broadcast %c0_i32_69 : i32 to vector<256x1xi32>
    %210 = arith.cmpi sge, %208, %209 : vector<256x1xi32>
    %c1_i32_70 = arith.constant 1 : i32
    %211 = vector.broadcast %c1_i32_70 : i32 to vector<256x1xi32>
    %212 = arith.addi %37, %211 : vector<256x1xi32>
    %c16_i32_71 = arith.constant 16 : i32
    %213 = vector.broadcast %c16_i32_71 : i32 to vector<256x1xi32>
    %214 = arith.cmpi slt, %212, %213 : vector<256x1xi32>
    %215 = arith.andi %210, %214 : vector<256x1xi1>
    %c16_i32_72 = arith.constant 16 : i32
    %216 = vector.broadcast %c16_i32_72 : i32 to vector<256x1xi32>
    %217 = arith.addi %21, %216 : vector<256x1xi32>
    %c0_i32_73 = arith.constant 0 : i32
    %218 = vector.broadcast %c0_i32_73 : i32 to vector<256x1xi32>
    %219 = arith.cmpi sge, %217, %218 : vector<256x1xi32>
    %220 = arith.andi %215, %219 : vector<256x1xi1>
    %c16_i32_74 = arith.constant 16 : i32
    %221 = vector.broadcast %c16_i32_74 : i32 to vector<256x1xi32>
    %222 = arith.addi %21, %221 : vector<256x1xi32>
    %c256_i32_75 = arith.constant 256 : i32
    %223 = vector.broadcast %c256_i32_75 : i32 to vector<256x1xi32>
    %224 = arith.cmpi slt, %222, %223 : vector<256x1xi32>
    %225 = arith.andi %220, %224 : vector<256x1xi1>
    %226 = arith.extui %225 : vector<256x1xi1> to vector<256x1xi32>
    %227 = arith.sitofp %226 : vector<256x1xi32> to vector<256x1xf32>
    %228 = vector.broadcast %227 : vector<256x1xf32> to vector<256x8xf32>
    %229 = arith.mulf %206, %228 : vector<256x8xf32>
    %230 = tpu.concatenate %61, %85, %109, %133, %20, %157, %181, %205, %229 in 1 : vector<256x8xf32>, vector<256x8xf32>, vector<256x8xf32>, vector<256x8xf32>, vector<256x8xf32>, vector<256x8xf32>, vector<256x8xf32>, vector<256x8xf32>, vector<256x8xf32> -> vector<256x72xf32>
    %231 = arith.truncf %230 : vector<256x72xf32> to vector<256x72xbf16>
    %c0_76 = arith.constant 0 : index
    %c0_77 = arith.constant 0 : index
    %232 = vector.load %arg4[%c0_76, %c0_77] : memref<72x8xbf16, #tpu.memory_space<vmem>>, vector<72x8xbf16>
    %cst_78 = arith.constant dense<0.000000e+00> : vector<256x8xf32>
    %233 = tpu.matmul %231, %232, %cst_78 {dimension_numbers = #tpu.dot_dimension_numbers<[1], [0], [0], [1], [0, 0, 1, 1], [], []>} : vector<256x72xbf16>, vector<72x8xbf16>, vector<256x8xf32> -> vector<256x8xf32>
    %c0_79 = arith.constant 0 : index
    %c0_80 = arith.constant 0 : index
    %234 = vector.load %arg5[%c0_79, %c0_80] : memref<1x8xf32, #tpu.memory_space<vmem>>, vector<1x8xf32>
    %235 = vector.broadcast %234 : vector<1x8xf32> to vector<256x8xf32>
    %236 = arith.addf %233, %235 : vector<256x8xf32>
    %cst_81 = arith.constant 5.000000e-01 : f32
    %237 = vector.broadcast %cst_81 : f32 to vector<256x8xf32>
    %238 = arith.mulf %237, %236 : vector<256x8xf32>
    %cst_82 = arith.constant 4.471500e-02 : f32
    %239 = vector.broadcast %cst_82 : f32 to vector<256x8xf32>
    %240 = arith.mulf %239, %236 : vector<256x8xf32>
    %241 = arith.mulf %240, %236 : vector<256x8xf32>
    %242 = arith.mulf %241, %236 : vector<256x8xf32>
    %243 = arith.addf %236, %242 : vector<256x8xf32>
    %cst_83 = arith.constant 0.797884583 : f32
    %244 = vector.broadcast %cst_83 : f32 to vector<256x8xf32>
    %245 = arith.mulf %244, %243 : vector<256x8xf32>
    %246 = math.tanh %245 : vector<256x8xf32>
    %cst_84 = arith.constant 1.000000e+00 : f32
    %247 = vector.broadcast %cst_84 : f32 to vector<256x8xf32>
    %248 = arith.addf %247, %246 : vector<256x8xf32>
    %249 = arith.mulf %238, %248 : vector<256x8xf32>
    %250 = arith.truncf %249 : vector<256x8xf32> to vector<256x8xbf16>
    %c0_85 = arith.constant 0 : index
    %c0_86 = arith.constant 0 : index
    %251 = vector.load %arg6[%c0_85, %c0_86] : memref<8x8xbf16, #tpu.memory_space<vmem>>, vector<8x8xbf16>
    %cst_87 = arith.constant dense<0.000000e+00> : vector<256x8xf32>
    %252 = tpu.matmul %250, %251, %cst_87 {dimension_numbers = #tpu.dot_dimension_numbers<[1], [0], [0], [1], [0, 0, 1, 1], [], []>} : vector<256x8xbf16>, vector<8x8xbf16>, vector<256x8xf32> -> vector<256x8xf32>
    %c0_88 = arith.constant 0 : index
    %c0_89 = arith.constant 0 : index
    %253 = vector.load %arg7[%c0_88, %c0_89] : memref<1x8xf32, #tpu.memory_space<vmem>>, vector<1x8xf32>
    %254 = vector.broadcast %253 : vector<1x8xf32> to vector<256x8xf32>
    %255 = arith.addf %252, %254 : vector<256x8xf32>
    %cst_90 = arith.constant 5.000000e-01 : f32
    %256 = vector.broadcast %cst_90 : f32 to vector<256x8xf32>
    %257 = arith.mulf %256, %255 : vector<256x8xf32>
    %cst_91 = arith.constant 4.471500e-02 : f32
    %258 = vector.broadcast %cst_91 : f32 to vector<256x8xf32>
    %259 = arith.mulf %258, %255 : vector<256x8xf32>
    %260 = arith.mulf %259, %255 : vector<256x8xf32>
    %261 = arith.mulf %260, %255 : vector<256x8xf32>
    %262 = arith.addf %255, %261 : vector<256x8xf32>
    %cst_92 = arith.constant 0.797884583 : f32
    %263 = vector.broadcast %cst_92 : f32 to vector<256x8xf32>
    %264 = arith.mulf %263, %262 : vector<256x8xf32>
    %265 = math.tanh %264 : vector<256x8xf32>
    %cst_93 = arith.constant 1.000000e+00 : f32
    %266 = vector.broadcast %cst_93 : f32 to vector<256x8xf32>
    %267 = arith.addf %266, %265 : vector<256x8xf32>
    %268 = arith.mulf %257, %267 : vector<256x8xf32>
    %c0_94 = arith.constant 0 : index
    %c0_95 = arith.constant 0 : index
    %269 = vector.load %arg8[%c0_94, %c0_95] : memref<4x8xbf16, #tpu.memory_space<vmem>>, vector<4x8xbf16>
    %cst_96 = arith.constant dense<0.000000e+00> : vector<256x8xf32>
    %270 = tpu.matmul %2, %269, %cst_96 {dimension_numbers = #tpu.dot_dimension_numbers<[1], [0], [0], [1], [0, 0, 1, 1], [], []>} : vector<256x4xbf16>, vector<4x8xbf16>, vector<256x8xf32> -> vector<256x8xf32>
    %c0_97 = arith.constant 0 : index
    %c0_98 = arith.constant 0 : index
    %271 = vector.load %arg9[%c0_97, %c0_98] : memref<1x8xf32, #tpu.memory_space<vmem>>, vector<1x8xf32>
    %272 = vector.broadcast %271 : vector<1x8xf32> to vector<256x8xf32>
    %273 = arith.addf %270, %272 : vector<256x8xf32>
    %274 = arith.addf %268, %273 : vector<256x8xf32>
    %c0_99 = arith.constant 0 : index
    %c0_100 = arith.constant 0 : index
    %c0_101 = arith.constant 0 : index
    %275 = vector.load %arg10[%c0_99, %c0_100, %c0_101] : memref<1x256x8xf32, #tpu.memory_space<vmem>>, vector<1x256x8xf32>
    %276 = vector.shape_cast %275 : vector<1x256x8xf32> to vector<256x8xf32>
    %277 = vector.shape_cast %274 : vector<256x8xf32> to vector<1x256x8xf32>
    tpu.vector_store %arg10[%c0_99, %c0_100, %c0_101], %277 {strides = array<i32>} : memref<1x256x8xf32, #tpu.memory_space<vmem>>, vector<1x256x8xf32>,
    return
  }
  func.func @transform_0(%arg0: i32) -> (i32, i32, i32) {
    %c0_i32 = arith.constant 0 : i32
    %c0_i32_0 = arith.constant 0 : i32
    %c0_i32_1 = arith.constant 0 : i32
    return %arg0, %c0_i32, %c0_i32_0 : i32, i32, i32
  }
  func.func @transform_1(%arg0: i32) -> (i32, i32) {
    %c0_i32 = arith.constant 0 : i32
    %c0_i32_0 = arith.constant 0 : i32
    %c0_i32_1 = arith.constant 0 : i32
    return %c0_i32, %c0_i32_0 : i32, i32
  }
  func.func @transform_2(%arg0: i32) -> (i32, i32) {
    %c0_i32 = arith.constant 0 : i32
    %c0_i32_0 = arith.constant 0 : i32
    %c0_i32_1 = arith.constant 0 : i32
    return %c0_i32, %c0_i32_0 : i32, i32
  }
  func.func @transform_3(%arg0: i32) -> (i32, i32) {
    %c0_i32 = arith.constant 0 : i32
    %c0_i32_0 = arith.constant 0 : i32
    %c0_i32_1 = arith.constant 0 : i32
    return %c0_i32, %c0_i32_0 : i32, i32
  }
  func.func @transform_4(%arg0: i32) -> (i32, i32) {
    %c0_i32 = arith.constant 0 : i32
    %c0_i32_0 = arith.constant 0 : i32
    %c0_i32_1 = arith.constant 0 : i32
    return %c0_i32, %c0_i32_0 : i32, i32
  }
  func.func @transform_5(%arg0: i32) -> (i32, i32) {
    %c0_i32 = arith.constant 0 : i32
    %c0_i32_0 = arith.constant 0 : i32
    %c0_i32_1 = arith.constant 0 : i32
    return %c0_i32, %c0_i32_0 : i32, i32
  }
  func.func @transform_6(%arg0: i32) -> (i32, i32) {
    %c0_i32 = arith.constant 0 : i32
    %c0_i32_0 = arith.constant 0 : i32
    %c0_i32_1 = arith.constant 0 : i32
    return %c0_i32, %c0_i32_0 : i32, i32
  }
  func.func @transform_7(%arg0: i32) -> (i32, i32) {
    %c0_i32 = arith.constant 0 : i32
    %c0_i32_0 = arith.constant 0 : i32
    %c0_i32_1 = arith.constant 0 : i32
    return %c0_i32, %c0_i32_0 : i32, i32
  }
  func.func @transform_8(%arg0: i32) -> (i32, i32) {
    %c0_i32 = arith.constant 0 : i32
    %c0_i32_0 = arith.constant 0 : i32
    %c0_i32_1 = arith.constant 0 : i32
    return %c0_i32, %c0_i32_0 : i32, i32
  }
  func.func @transform_9(%arg0: i32) -> (i32, i32, i32) {
    %c0_i32 = arith.constant 0 : i32
    %c0_i32_0 = arith.constant 0 : i32
    %c0_i32_1 = arith.constant 0 : i32
    return %arg0, %c0_i32, %c0_i32_0 : i32, i32, i32
  }
}

</mosaic_0001>

<llo_original>
// kernel: tpu_custom_call.1
$region0: #{tpu_custom_call.1}
  #allocation0 [shape = 'u32[]', space=smem, size = 0x4, offset = 0x4, fixed_abs, tag = 'smem constant byte address 0x4 - core index']
  #allocation1 [shape = 'u32[144,128]{1,0:T(1,128)}', space=vmem, size = 0x12000, scoped, tag = 'internal scratch']
  %s0 = inlined_call_operand.vmem [shape: f32[2,256,4], index: 0, kind: input, shape index: {}]
  %s1 = inlined_call_operand.vmem [shape: bf16[4,8], index: 1, kind: input, shape index: {}]
  %s2 = inlined_call_operand.vmem [shape: f32[1,8], index: 2, kind: input, shape index: {}]
  %s3 = inlined_call_operand.vmem [shape: bf16[72,8], index: 3, kind: input, shape index: {}]
  %s4 = inlined_call_operand.vmem [shape: f32[1,8], index: 4, kind: input, shape index: {}]
  %s5 = inlined_call_operand.vmem [shape: bf16[8,8], index: 5, kind: input, shape index: {}]
  %s6 = inlined_call_operand.vmem [shape: f32[1,8], index: 6, kind: input, shape index: {}]
  %s7 = inlined_call_operand.vmem [shape: bf16[4,8], index: 7, kind: input, shape index: {}]
  %s8 = inlined_call_operand.vmem [shape: f32[1,8], index: 8, kind: input, shape index: {}]
  %s9 = inlined_call_operand.vmem [shape: f32[2,256,8], index: 9, kind: output, shape index: {}]
  %s10 = sld [smem:[#allocation0]]
  $region69: #{tpu_custom_call.1} parent=0
    _
  %s12 = ssub.s32 1, %s10
  %s13 = scalar_select 0, %s12, %s10
  loop: start=0, step=1, limit=4
  $region2: #{tpu_custom_call.1} parent=0 // loop_pre_header
    _
  $region3: #{tpu_custom_call.1} parent=0 // loop_header
    %s15 = sphi 0, %s19
    %p16 = scmp.ge.s32.totalorder %s15, 4
    %s25 = sphi 0, %s27
    %s28 = sphi 0, %s25
    %s29 = sphi 0, %s28
    %s45 = sphi 0, %s29
    %s49 = sphi 0, %s49
    %s51 = sphi 0, %s49
    %s52 = sphi 0, %s51
    %s66 = sphi 0, %s52
    %s70 = sphi 0, %s70
    %s72 = sphi 0, %s70
    %s73 = sphi 0, %s72
    %s87 = sphi 0, %s73
    %s91 = sphi 0, %s91
    %s93 = sphi 0, %s91
    %s94 = sphi 0, %s93
    %s108 = sphi 0, %s94
    %s112 = sphi 0, %s112
    %s114 = sphi 0, %s112
    %s115 = sphi 0, %s114
    %s129 = sphi 0, %s115
    %s133 = sphi 0, %s133
    %s135 = sphi 0, %s133
    %s136 = sphi 0, %s135
    %s150 = sphi 0, %s136
    %s154 = sphi 0, %s154
    %s156 = sphi 0, %s154
    %s157 = sphi 0, %s156
    %s171 = sphi 0, %s157
    %s175 = sphi 0, %s175
    %s177 = sphi 0, %s175
    %s178 = sphi 0, %s177
    %s192 = sphi 0, %s178
    %s196 = sphi 0, %s196
    %s198 = sphi 0, %s196
    %s199 = sphi 0, %s198
    %s213 = sphi 0, %s199
    %s219 = sphi 0, %s221
    %s222 = sphi 0, %s219
    %s223 = sphi 0, %s222
    %s239 = sphi 0, %s223
  $region4: #{tpu_custom_call.1} parent=0 // loop_header_branch
    %18 = sbr.rel (%p16) target = $region8
  $region5: #{tpu_custom_call.1} parent=0 // loop_body
    %s20 = ssub.s32 %s15, 1
    %s21 = ssub.s32 %s15, 2
    %s22 = sadd.s32 %s15, 1
    %s23 = ssub.s32 %s15, %s22
    %p24 = scmp.eq.s32.totalorder %s23, 0
    %s26 = sadd.s32 %s25, 1
    %s27 = scalar_select %p24, %s25, %s26
    %p30 = pneg %p24
    %p31 = scmp.eq.s32.totalorder %s15, 1
    %p32 = por %p30, %p31
    %p33 = scmp.ne.s32.totalorder %s25, %s28
    %p34 = scmp.eq.s32.totalorder %s15, 0
    %p35 = por %p33, %p34
    %p36 = scmp.ne.s32.totalorder %s25, %s28
    %p37 = scmp.eq.s32.totalorder %s20, 1
    %p38 = por %p36, %p37
    %p39 = scmp.ne.s32.totalorder %s28, %s29
    %p40 = scmp.eq.s32.totalorder %s20, 0
    %p41 = por %p39, %p40
    %p42 = scmp.ne.s32.totalorder %s28, %s29
    %p43 = scmp.eq.s32.totalorder %s21, 1
    %p44 = por %p42, %p43
    %p46 = scmp.ne.s32.totalorder %s29, %s45
    %p47 = scmp.eq.s32.totalorder %s21, 0
    %p48 = por %p46, %p47
    %s50 = sadd.s32 %s49, 1
    %p53 = scmp.eq.s32.totalorder %s15, 1
    %p54 = scmp.ne.s32.totalorder %s49, %s51
    %p55 = scmp.eq.s32.totalorder %s15, 0
    %p56 = por %p54, %p55
    %p57 = scmp.ne.s32.totalorder %s49, %s51
    %p58 = scmp.eq.s32.totalorder %s20, 1
    %p59 = por %p57, %p58
    %p60 = scmp.ne.s32.totalorder %s51, %s52
    %p61 = scmp.eq.s32.totalorder %s20, 0
    %p62 = por %p60, %p61
    %p63 = scmp.ne.s32.totalorder %s51, %s52
    %p64 = scmp.eq.s32.totalorder %s21, 1
    %p65 = por %p63, %p64
    %p67 = scmp.ne.s32.totalorder %s52, %s66
    %p68 = scmp.eq.s32.totalorder %s21, 0
    %p69 = por %p67, %p68
    %s71 = sadd.s32 %s70, 1
    %p74 = scmp.eq.s32.totalorder %s15, 1
    %p75 = scmp.ne.s32.totalorder %s70, %s72
    %p76 = scmp.eq.s32.totalorder %s15, 0
    %p77 = por %p75, %p76
    %p78 = scmp.ne.s32.totalorder %s70, %s72
    %p79 = scmp.eq.s32.totalorder %s20, 1
    %p80 = por %p78, %p79
    %p81 = scmp.ne.s32.totalorder %s72, %s73
    %p82 = scmp.eq.s32.totalorder %s20, 0
    %p83 = por %p81, %p82
    %p84 = scmp.ne.s32.totalorder %s72, %s73
    %p85 = scmp.eq.s32.totalorder %s21, 1
    %p86 = por %p84, %p85
    %p88 = scmp.ne.s32.totalorder %s73, %s87
    %p89 = scmp.eq.s32.totalorder %s21, 0
    %p90 = por %p88, %p89
    %s92 = sadd.s32 %s91, 1
    %p95 = scmp.eq.s32.totalorder %s15, 1
    %p96 = scmp.ne.s32.totalorder %s91, %s93
    %p97 = scmp.eq.s32.totalorder %s15, 0
    %p98 = por %p96, %p97
    %p99 = scmp.ne.s32.totalorder %s91, %s93
    %p100 = scmp.eq.s32.totalorder %s20, 1
    %p101 = por %p99, %p100
    %p102 = scmp.ne.s32.totalorder %s93, %s94
    %p103 = scmp.eq.s32.totalorder %s20, 0
    %p104 = por %p102, %p103
    %p105 = scmp.ne.s32.totalorder %s93, %s94
    %p106 = scmp.eq.s32.totalorder %s21, 1
    %p107 = por %p105, %p106
    %p109 = scmp.ne.s32.totalorder %s94, %s108
    %p110 = scmp.eq.s32.totalorder %s21, 0
    %p111 = por %p109, %p110
    %s113 = sadd.s32 %s112, 1
    %p116 = scmp.eq.s32.totalorder %s15, 1
    %p117 = scmp.ne.s32.totalorder %s112, %s114
    %p118 = scmp.eq.s32.totalorder %s15, 0
    %p119 = por %p117, %p118
    %p120 = scmp.ne.s32.totalorder %s112, %s114
    %p121 = scmp.eq.s32.totalorder %s20, 1
    %p122 = por %p120, %p121
    %p123 = scmp.ne.s32.totalorder %s114, %s115
    %p124 = scmp.eq.s32.totalorder %s20, 0
    %p125 = por %p123, %p124
    %p126 = scmp.ne.s32.totalorder %s114, %s115
    %p127 = scmp.eq.s32.totalorder %s21, 1
    %p128 = por %p126, %p127
    %p130 = scmp.ne.s32.totalorder %s115, %s129
    %p131 = scmp.eq.s32.totalorder %s21, 0
    %p132 = por %p130, %p131
    %s134 = sadd.s32 %s133, 1
    %p137 = scmp.eq.s32.totalorder %s15, 1
    %p138 = scmp.ne.s32.totalorder %s133, %s135
    %p139 = scmp.eq.s32.totalorder %s15, 0
    %p140 = por %p138, %p139
    %p141 = scmp.ne.s32.totalorder %s133, %s135
    %p142 = scmp.eq.s32.totalorder %s20, 1
    %p143 = por %p141, %p142
    %p144 = scmp.ne.s32.totalorder %s135, %s136
    %p145 = scmp.eq.s32.totalorder %s20, 0
    %p146 = por %p144, %p145
    %p147 = scmp.ne.s32.totalorder %s135, %s136
    %p148 = scmp.eq.s32.totalorder %s21, 1
    %p149 = por %p147, %p148
    %p151 = scmp.ne.s32.totalorder %s136, %s150
    %p152 = scmp.eq.s32.totalorder %s21, 0
    %p153 = por %p151, %p152
    %s155 = sadd.s32 %s154, 1
    %p158 = scmp.eq.s32.totalorder %s15, 1
    %p159 = scmp.ne.s32.totalorder %s154, %s156
    %p160 = scmp.eq.s32.totalorder %s15, 0
    %p161 = por %p159, %p160
    %p162 = scmp.ne.s32.totalorder %s154, %s156
    %p163 = scmp.eq.s32.totalorder %s20, 1
    %p164 = por %p162, %p163
    %p165 = scmp.ne.s32.totalorder %s156, %s157
    %p166 = scmp.eq.s32.totalorder %s20, 0
    %p167 = por %p165, %p166
    %p168 = scmp.ne.s32.totalorder %s156, %s157
    %p169 = scmp.eq.s32.totalorder %s21, 1
    %p170 = por %p168, %p169
    %p172 = scmp.ne.s32.totalorder %s157, %s171
    %p173 = scmp.eq.s32.totalorder %s21, 0
    %p174 = por %p172, %p173
    %s176 = sadd.s32 %s175, 1
    %p179 = scmp.eq.s32.totalorder %s15, 1
    %p180 = scmp.ne.s32.totalorder %s175, %s177
    %p181 = scmp.eq.s32.totalorder %s15, 0
    %p182 = por %p180, %p181
    %p183 = scmp.ne.s32.totalorder %s175, %s177
    %p184 = scmp.eq.s32.totalorder %s20, 1
    %p185 = por %p183, %p184
    %p186 = scmp.ne.s32.totalorder %s177, %s178
    %p187 = scmp.eq.s32.totalorder %s20, 0
    %p188 = por %p186, %p187
    %p189 = scmp.ne.s32.totalorder %s177, %s178
    %p190 = scmp.eq.s32.totalorder %s21, 1
    %p191 = por %p189, %p190
    %p193 = scmp.ne.s32.totalorder %s178, %s192
    %p194 = scmp.eq.s32.totalorder %s21, 0
    %p195 = por %p193, %p194
    %s197 = sadd.s32 %s196, 1
    %p200 = scmp.eq.s32.totalorder %s15, 1
    %p201 = scmp.ne.s32.totalorder %s196, %s198
    %p202 = scmp.eq.s32.totalorder %s15, 0
    %p203 = por %p201, %p202
    %p204 = scmp.ne.s32.totalorder %s196, %s198
    %p205 = scmp.eq.s32.totalorder %s20, 1
    %p206 = por %p204, %p205
    %p207 = scmp.ne.s32.totalorder %s198, %s199
    %p208 = scmp.eq.s32.totalorder %s20, 0
    %p209 = por %p207, %p208
    %p210 = scmp.ne.s32.totalorder %s198, %s199
    %p211 = scmp.eq.s32.totalorder %s21, 1
    %p212 = por %p210, %p211
    %p214 = scmp.ne.s32.totalorder %s199, %s213
    %p215 = scmp.eq.s32.totalorder %s21, 0
    %p216 = por %p214, %p215
    %s217 = ssub.s32 %s15, %s22
    %p218 = scmp.eq.s32.totalorder %s217, 0
    %s220 = sadd.s32 %s219, 1
    %s221 = scalar_select %p218, %s219, %s220
    %p224 = pneg %p218
    %p225 = scmp.eq.s32.totalorder %s15, 1
    %p226 = por %p224, %p225
    %p227 = scmp.ne.s32.totalorder %s219, %s222
    %p228 = scmp.eq.s32.totalorder %s15, 0
    %p229 = por %p227, %p228
    %p230 = scmp.ne.s32.totalorder %s219, %s222
    %p231 = scmp.eq.s32.totalorder %s20, 1
    %p232 = por %p230, %p231
    %p233 = scmp.ne.s32.totalorder %s222, %s223
    %p234 = scmp.eq.s32.totalorder %s20, 0
    %p235 = por %p233, %p234
    %p236 = scmp.ne.s32.totalorder %s222, %s223
    %p237 = scmp.eq.s32.totalorder %s21, 1
    %p238 = por %p236, %p237
    %p240 = scmp.ne.s32.totalorder %s223, %s239
    %p241 = scmp.eq.s32.totalorder %s21, 0
    %p242 = por %p240, %p241
    %p243 = scmp.le.s32.totalorder 1, %s15
    %p244 = scmp.lt.s32.totalorder %s15, 3
    %p245 = pnand %p243, %p244
    %p246 = pneg %p245
    // Predicated region
    $region9: #{tpu_custom_call.1} parent=5 // pred_check
      _
    $region10: #{tpu_custom_call.1} parent=5 // pred_check_branch
      %248 = sbr.rel (%p245) target = $region12
    $region11: #{tpu_custom_call.1} parent=5 // pred_region
      %s249 = ssub.s32 %s15, 1
      // Predicated region
      $region13: #{tpu_custom_call.1} parent=11 // pred_check
        %p250 = pneg %p62
      $region14: #{tpu_custom_call.1} parent=11 // pred_check_branch
        %252 = sbr.rel (%p250) target = $region16
      $region15: #{tpu_custom_call.1} parent=11 // pred_region
        _
      $region16: #{tpu_custom_call.1} parent=11 // pred_fallthru
        _
      // Predicated region
      $region17: #{tpu_custom_call.1} parent=11 // pred_check
        %p253 = pneg %p83
      $region18: #{tpu_custom_call.1} parent=11 // pred_check_branch
        %255 = sbr.rel (%p253) target = $region20
      $region19: #{tpu_custom_call.1} parent=11 // pred_region
        _
      $region20: #{tpu_custom_call.1} parent=11 // pred_fallthru
        _
      // Predicated region
      $region21: #{tpu_custom_call.1} parent=11 // pred_check
        %p256 = pneg %p104
      $region22: #{tpu_custom_call.1} parent=11 // pred_check_branch
        %258 = sbr.rel (%p256) target = $region24
      $region23: #{tpu_custom_call.1} parent=11 // pred_region
        _
      $region24: #{tpu_custom_call.1} parent=11 // pred_fallthru
        _
      // Predicated region
      $region25: #{tpu_custom_call.1} parent=11 // pred_check
        %p259 = pneg %p125
      $region26: #{tpu_custom_call.1} parent=11 // pred_check_branch
        %261 = sbr.rel (%p259) target = $region28
      $region27: #{tpu_custom_call.1} parent=11 // pred_region
        _
      $region28: #{tpu_custom_call.1} parent=11 // pred_fallthru
        _
      // Predicated region
      $region29: #{tpu_custom_call.1} parent=11 // pred_check
        %p262 = pneg %p146
      $region30: #{tpu_custom_call.1} parent=11 // pred_check_branch
        %264 = sbr.rel (%p262) target = $region32
      $region31: #{tpu_custom_call.1} parent=11 // pred_region
        _
      $region32: #{tpu_custom_call.1} parent=11 // pred_fallthru
        _
      // Predicated region
      $region33: #{tpu_custom_call.1} parent=11 // pred_check
        %p265 = pneg %p167
      $region34: #{tpu_custom_call.1} parent=11 // pred_check_branch
        %267 = sbr.rel (%p265) target = $region36
      $region35: #{tpu_custom_call.1} parent=11 // pred_region
        _
      $region36: #{tpu_custom_call.1} parent=11 // pred_fallthru
        _
      // Predicated region
      $region37: #{tpu_custom_call.1} parent=11 // pred_check
        %p268 = pneg %p188
      $region38: #{tpu_custom_call.1} parent=11 // pred_check_branch
        %270 = sbr.rel (%p268) target = $region40
      $region39: #{tpu_custom_call.1} parent=11 // pred_region
        _
      $region40: #{tpu_custom_call.1} parent=11 // pred_fallthru
        _
      // Predicated region
      $region41: #{tpu_custom_call.1} parent=11 // pred_check
        %p271 = pneg %p209
      $region42: #{tpu_custom_call.1} parent=11 // pred_check_branch
        %273 = sbr.rel (%p271) target = $region44
      $region43: #{tpu_custom_call.1} parent=11 // pred_region
        _
      $region44: #{tpu_custom_call.1} parent=11 // pred_fallthru
        _
    $region12: #{tpu_custom_call.1} parent=5 // pred_fallthru
      _
    %p274 = scmp.lt.s32.totalorder %s15, 2
    // Predicated region
    $region45: #{tpu_custom_call.1} parent=5 // pred_check
      %p275 = pneg %p274
    $region46: #{tpu_custom_call.1} parent=5 // pred_check_branch
      %277 = sbr.rel (%p275) target = $region48
    $region47: #{tpu_custom_call.1} parent=5 // pred_region
      // Predicated region
      $region49: #{tpu_custom_call.1} parent=47 // pred_check
        %p278 = pneg %p35
      $region50: #{tpu_custom_call.1} parent=47 // pred_check_branch
        %280 = sbr.rel (%p278) target = $region52
      $region51: #{tpu_custom_call.1} parent=47 // pred_region
        %p281 = scmp.lt.s32.totalorder %s15, 1
        %s282 = scalar_select %p281, %s15, 1
        %s283 = smul.addr %s282, 32
        %s284 = smul.addr %s283, 8
        %s285 = scalar_lea.vmem %s0, %s284
      $region52: #{tpu_custom_call.1} parent=47 // pred_fallthru
        _
    $region48: #{tpu_custom_call.1} parent=5 // pred_fallthru
      _
    %p286 = scmp.le.s32.totalorder 1, %s15
    %p287 = scmp.lt.s32.totalorder %s15, 3
    %p288 = pnand %p286, %p287
    %p289 = pneg %p288
    // Predicated region
    $region53: #{tpu_custom_call.1} parent=5 // pred_check
      _
    $region54: #{tpu_custom_call.1} parent=5 // pred_check_branch
      %291 = sbr.rel (%p288) target = $region56
    $region55: #{tpu_custom_call.1} parent=5 // pred_region
      %s292 = ssub.s32 %s15, 1
      %p293 = scmp.lt.s32.totalorder %s20, 1
      %s294 = scalar_select %p293, %s20, 1
      %s295 = smul.addr %s294, 32
      %s296 = smul.addr %s295, 8
      %s297 = scalar_lea.vmem %s0, %s296
      %p298 = pneg %p41
      %p299 = pneg %p38
      %p300 = pneg %p62
      %p301 = pneg %p59
      %p302 = pneg %p83
      %p303 = pneg %p80
      %p304 = pneg %p104
      %p305 = pneg %p101
      %p306 = pneg %p125
      %p307 = pneg %p122
      %p308 = pneg %p146
      %p309 = pneg %p143
      %p310 = pneg %p167
      %p311 = pneg %p164
      %p312 = pneg %p188
      %p313 = pneg %p185
      %p314 = pneg %p209
      %p315 = pneg %p206
      %p316 = pneg %p235
      %p317 = pneg %p232
      %p318 = scmp.lt.s32.totalorder %s20, 1
      %s319 = scalar_select %p318, %s20, 1
      %s320 = smul.addr %s319, 32
      %s321 = smul.addr %s320, 8
      %s322 = scalar_lea.vmem %s9, %s321
      %p323 = scmp.lt.s32.totalorder %s20, 1
      %s324 = scalar_select %p323, %s20, 1
      %s325 = smul.addr %s324, 32
      %s326 = smul.addr %s325, 8
      %s327 = scalar_lea.vmem %s0, %s326
      %p328 = scmp.lt.s32.totalorder %s20, 1
      %s329 = scalar_select %p328, %s20, 1
      %s330 = smul.addr %s329, 32
      %s331 = smul.addr %s330, 8
      %s332 = scalar_lea.vmem %s9, %s331
      %v334 = vld [vmem:[%s327] sm:$0xff]
      %v335 = vld [vmem:[%s327 + $0x8] sm:$0xff]
      %v336 = vld [vmem:[%s327 + $0x10] sm:$0xff]
      %v337 = vld [vmem:[%s327 + $0x18] sm:$0xff]
      %v338 = vld [vmem:[%s327 + $0x20] sm:$0xff]
      %v339 = vld [vmem:[%s327 + $0x28] sm:$0xff]
      %v340 = vld [vmem:[%s327 + $0x30] sm:$0xff]
      %v341 = vld [vmem:[%s327 + $0x38] sm:$0xff]
      %v342 = vld [vmem:[%s327 + $0x40] sm:$0xff]
      %v343 = vld [vmem:[%s327 + $0x48] sm:$0xff]
      %v344 = vld [vmem:[%s327 + $0x50] sm:$0xff]
      %v345 = vld [vmem:[%s327 + $0x58] sm:$0xff]
      %v346 = vld [vmem:[%s327 + $0x60] sm:$0xff]
      %v347 = vld [vmem:[%s327 + $0x68] sm:$0xff]
      %v348 = vld [vmem:[%s327 + $0x70] sm:$0xff]
      %v349 = vld [vmem:[%s327 + $0x78] sm:$0xff]
      %v350 = vld [vmem:[%s327 + $0x80] sm:$0xff]
      %v351 = vld [vmem:[%s327 + $0x88] sm:$0xff]
      %v352 = vld [vmem:[%s327 + $0x90] sm:$0xff]
      %v353 = vld [vmem:[%s327 + $0x98] sm:$0xff]
      %v354 = vld [vmem:[%s327 + $0xa0] sm:$0xff]
      %v355 = vld [vmem:[%s327 + $0xa8] sm:$0xff]
      %v356 = vld [vmem:[%s327 + $0xb0] sm:$0xff]
      %v357 = vld [vmem:[%s327 + $0xb8] sm:$0xff]
      %v358 = vld [vmem:[%s327 + $0xc0] sm:$0xff]
      %v359 = vld [vmem:[%s327 + $0xc8] sm:$0xff]
      %v360 = vld [vmem:[%s327 + $0xd0] sm:$0xff]
      %v361 = vld [vmem:[%s327 + $0xd8] sm:$0xff]
      %v362 = vld [vmem:[%s327 + $0xe0] sm:$0xff]
      %v363 = vld [vmem:[%s327 + $0xe8] sm:$0xff]
      %v364 = vld [vmem:[%s327 + $0xf0] sm:$0xff]
      %v365 = vld [vmem:[%s327 + $0xf8] sm:$0xff]
      %v366 = vpack.c.bf16 %v335, %v334
      %v367 = vpack.c.bf16 %v337, %v336
      %v368 = vpack.c.bf16 %v339, %v338
      %v369 = vpack.c.bf16 %v341, %v340
      %v370 = vpack.c.bf16 %v343, %v342
      %v371 = vpack.c.bf16 %v345, %v344
      %v372 = vpack.c.bf16 %v347, %v346
      %v373 = vpack.c.bf16 %v349, %v348
      %v374 = vpack.c.bf16 %v351, %v350
      %v375 = vpack.c.bf16 %v353, %v352
      %v376 = vpack.c.bf16 %v355, %v354
      %v377 = vpack.c.bf16 %v357, %v356
      %v378 = vpack.c.bf16 %v359, %v358
      %v379 = vpack.c.bf16 %v361, %v360
      %v380 = vpack.c.bf16 %v363, %v362
      %v381 = vpack.c.bf16 %v365, %v364
      %v382 = vld [vmem:[%s1] sm:$0x3]
      %v383 = vld [vmem:[%s2] sm:$0x1]
      %v385 = vlaneseq
      %v386 = vshrl.u32 %v385, 7
      %v387 = vsub.s32 0, %v386
      %v388 = vrot.slane %v383, %v387
      %vm390 = vcmask 31744
      %v392 = vsel %vm390, %v366, 0
      %v395 = vsel %vm390, %v367, 0
      %v398 = vsel %vm390, %v368, 0
      %v401 = vsel %vm390, %v369, 0
      %v404 = vsel %vm390, %v370, 0
      %v407 = vsel %vm390, %v371, 0
      %v410 = vsel %vm390, %v372, 0
      %v413 = vsel %vm390, %v373, 0
      %v416 = vsel %vm390, %v374, 0
      %v419 = vsel %vm390, %v375, 0
      %v422 = vsel %vm390, %v376, 0
      %v425 = vsel %vm390, %v377, 0
      %v428 = vsel %vm390, %v378, 0
      %v431 = vsel %vm390, %v379, 0
      %v434 = vsel %vm390, %v380, 0
      %v437 = vsel %vm390, %v381, 0
      %vm439 = vcmask 1041408
      %v441 = vsel %vm439, %v382, 0
      %443 = vmatprep.subr.bf16.mxu0 0
      %444 = vmatpush1.bf16.msra.mxu0 %v441
      %445 = vmatprep.subr.bf16.mxu0 0
      %446 = vmatpush1.bf16.msra.mxu0 0
      %447 = vmatprep.subr.bf16.mxu0 0
      %448 = vmatpush1.bf16.msra.mxu0 0
      %449 = vmatprep.subr.bf16.mxu0 0
      %450 = vmatpush1.bf16.msra.mxu0 0
      %451 = vmatprep.subr.bf16.mxu0 0
      %452 = vmatpush1.bf16.msra.mxu0 0
      %453 = vmatprep.subr.bf16.mxu0 0
      %454 = vmatpush1.bf16.msra.mxu0 0
      %455 = vmatprep.subr.bf16.mxu0 0
      %456 = vmatpush1.bf16.msra.mxu0 0
      %457 = vmatprep.subr.bf16.mxu0 0
      %458 = vmatpush1.bf16.msra.mxu0 0
      %459 = vmatprep.subr.bf16.mxu0 0
      %460 = vmatpush1.bf16.msra.mxu0 0
      %461 = vmatprep.subr.bf16.mxu0 0
      %462 = vmatpush1.bf16.msra.mxu0 0
      %463 = vmatprep.subr.bf16.mxu0 0
      %464 = vmatpush1.bf16.msra.mxu0 0
      %465 = vmatprep.subr.bf16.mxu0 0
      %466 = vmatpush1.bf16.msra.mxu0 0
      %467 = vmatprep.subr.bf16.mxu0 0
      %468 = vmatpush1.bf16.msra.mxu0 0
      %469 = vmatprep.subr.bf16.mxu0 0
      %470 = vmatpush1.bf16.msra.mxu0 0
      %471 = vmatprep.subr.bf16.mxu0 0
      %472 = vmatpush1.bf16.msra.mxu0 0
      %473 = vmatprep.subr.bf16.mxu0 0
      %474 = vmatpush1.bf16.msra.mxu0 0
      %475 = vmatprep.mubr.bf16.mxu0 0
      %476 = vmatmul.mubr.bf16.gmra.mrb[0].mxu0 %v392
      %v477 = vpop.f32.mrb[0].mxu0
      %v478 = vadd.f32 %v388, %v477
      %v479 = vpop.f32.mrb[0].mxu0
      %v480 = vpop.f32.mrb[0].mxu0
      %v481 = vadd.f32 %v388, %v480
      %v482 = vpop.f32.mrb[0].mxu0
      %483 = vmatprep.mubr.bf16.mxu0 0
      %484 = vmatmul.mubr.bf16.gmra.mrb[0].mxu0 %v395
      %v485 = vpop.f32.mrb[0].mxu0
      %v486 = vadd.f32 %v388, %v485
      %v487 = vpop.f32.mrb[0].mxu0
      %v488 = vpop.f32.mrb[0].mxu0
      %v489 = vadd.f32 %v388, %v488
      %v490 = vpop.f32.mrb[0].mxu0
      %491 = vmatprep.mubr.bf16.mxu0 0
      %492 = vmatmul.mubr.bf16.gmra.mrb[0].mxu0 %v398
      %v493 = vpop.f32.mrb[0].mxu0
      %v494 = vadd.f32 %v388, %v493
      %v495 = vpop.f32.mrb[0].mxu0
      %v496 = vpop.f32.mrb[0].mxu0
      %v497 = vadd.f32 %v388, %v496
      %v498 = vpop.f32.mrb[0].mxu0
      %499 = vmatprep.mubr.bf16.mxu0 0
      %500 = vmatmul.mubr.bf16.gmra.mrb[0].mxu0 %v401
      %v501 = vpop.f32.mrb[0].mxu0
      %v502 = vadd.f32 %v388, %v501
      %v503 = vpop.f32.mrb[0].mxu0
      %v504 = vpop.f32.mrb[0].mxu0
      %v505 = vadd.f32 %v388, %v504
      %v506 = vpop.f32.mrb[0].mxu0
      %507 = vmatprep.mubr.bf16.mxu0 0
      %508 = vmatmul.mubr.bf16.gmra.mrb[0].mxu0 %v404
      %v509 = vpop.f32.mrb[0].mxu0
      %v510 = vadd.f32 %v388, %v509
      %v511 = vpop.f32.mrb[0].mxu0
      %v512 = vpop.f32.mrb[0].mxu0
      %v513 = vadd.f32 %v388, %v512
      %v514 = vpop.f32.mrb[0].mxu0
      %515 = vmatprep.mubr.bf16.mxu0 0
      %516 = vmatmul.mubr.bf16.gmra.mrb[0].mxu0 %v407
      %v517 = vpop.f32.mrb[0].mxu0
      %v518 = vadd.f32 %v388, %v517
      %v519 = vpop.f32.mrb[0].mxu0
      %v520 = vpop.f32.mrb[0].mxu0
      %v521 = vadd.f32 %v388, %v520
      %v522 = vpop.f32.mrb[0].mxu0
      %523 = vmatprep.mubr.bf16.mxu0 0
      %524 = vmatmul.mubr.bf16.gmra.mrb[0].mxu0 %v410
      %v525 = vpop.f32.mrb[0].mxu0
      %v526 = vadd.f32 %v388, %v525
      %v527 = vpop.f32.mrb[0].mxu0
      %v528 = vpop.f32.mrb[0].mxu0
      %v529 = vadd.f32 %v388, %v528
      %v530 = vpop.f32.mrb[0].mxu0
      %531 = vmatprep.mubr.bf16.mxu0 0
      %532 = vmatmul.mubr.bf16.gmra.mrb[0].mxu0 %v413
      %v533 = vpop.f32.mrb[0].mxu0
      %v534 = vadd.f32 %v388, %v533
      %v535 = vpop.f32.mrb[0].mxu0
      %v536 = vpop.f32.mrb[0].mxu0
      %v537 = vadd.f32 %v388, %v536
      %v538 = vpop.f32.mrb[0].mxu0
      %539 = vmatprep.mubr.bf16.mxu0 0
      %540 = vmatmul.mubr.bf16.gmra.mrb[0].mxu0 %v416
      %v541 = vpop.f32.mrb[0].mxu0
      %v542 = vadd.f32 %v388, %v541
      %v543 = vpop.f32.mrb[0].mxu0
      %v544 = vpop.f32.mrb[0].mxu0
      %v545 = vadd.f32 %v388, %v544
      %v546 = vpop.f32.mrb[0].mxu0
      %547 = vmatprep.mubr.bf16.mxu0 0
      %548 = vmatmul.mubr.bf16.gmra.mrb[0].mxu0 %v419
      %v549 = vpop.f32.mrb[0].mxu0
      %v550 = vadd.f32 %v388, %v549
      %v551 = vpop.f32.mrb[0].mxu0
      %v552 = vpop.f32.mrb[0].mxu0
      %v553 = vadd.f32 %v388, %v552
      %v554 = vpop.f32.mrb[0].mxu0
      %555 = vmatprep.mubr.bf16.mxu0 0
      %556 = vmatmul.mubr.bf16.gmra.mrb[0].mxu0 %v422
      %v557 = vpop.f32.mrb[0].mxu0
      %v558 = vadd.f32 %v388, %v557
      %v559 = vpop.f32.mrb[0].mxu0
      %v560 = vpop.f32.mrb[0].mxu0
      %v561 = vadd.f32 %v388, %v560
      %v562 = vpop.f32.mrb[0].mxu0
      %563 = vmatprep.mubr.bf16.mxu0 0
      %564 = vmatmul.mubr.bf16.gmra.mrb[0].mxu0 %v425
      %v565 = vpop.f32.mrb[0].mxu0
      %v566 = vadd.f32 %v388, %v565
      %v567 = vpop.f32.mrb[0].mxu0
      %v568 = vpop.f32.mrb[0].mxu0
      %v569 = vadd.f32 %v388, %v568
      %v570 = vpop.f32.mrb[0].mxu0
      %571 = vmatprep.mubr.bf16.mxu0 0
      %572 = vmatmul.mubr.bf16.gmra.mrb[0].mxu0 %v428
      %v573 = vpop.f32.mrb[0].mxu0
      %v574 = vadd.f32 %v388, %v573
      %v575 = vpop.f32.mrb[0].mxu0
      %v576 = vpop.f32.mrb[0].mxu0
      %v577 = vadd.f32 %v388, %v576
      %v578 = vpop.f32.mrb[0].mxu0
      %579 = vmatprep.mubr.bf16.mxu0 0
      %580 = vmatmul.mubr.bf16.gmra.mrb[0].mxu0 %v431
      %v581 = vpop.f32.mrb[0].mxu0
      %v582 = vadd.f32 %v388, %v581
      %v583 = vpop.f32.mrb[0].mxu0
      %v584 = vpop.f32.mrb[0].mxu0
      %v585 = vadd.f32 %v388, %v584
      %v586 = vpop.f32.mrb[0].mxu0
      %587 = vmatprep.mubr.bf16.mxu0 0
      %588 = vmatmul.mubr.bf16.gmra.mrb[0].mxu0 %v434
      %v589 = vpop.f32.mrb[0].mxu0
      %v590 = vadd.f32 %v388, %v589
      %v591 = vpop.f32.mrb[0].mxu0
      %v592 = vpop.f32.mrb[0].mxu0
      %v593 = vadd.f32 %v388, %v592
      %v594 = vpop.f32.mrb[0].mxu0
      %595 = vmatprep.mubr.bf16.mxu0 0
      %596 = vmatmul.mubr.bf16.gmra.mrb[0].mxu0 %v437
      %v597 = vpop.f32.mrb[0].mxu0
      %v598 = vadd.f32 %v388, %v597
      %v599 = vpop.f32.mrb[0].mxu0
      %v600 = vpop.f32.mrb[0].mxu0
      %v601 = vadd.f32 %v388, %v600
      %v602 = vpop.f32.mrb[0].mxu0
      %603 = vdwg.mxu0
      %v604 = vmul.f32 %v478, 0.5
      %v605 = vmul.f32 %v481, 0.5
      %v606 = vmul.f32 %v486, 0.5
      %v607 = vmul.f32 %v489, 0.5
      %v608 = vmul.f32 %v494, 0.5
      %v609 = vmul.f32 %v497, 0.5
      %v610 = vmul.f32 %v502, 0.5
      %v611 = vmul.f32 %v505, 0.5
      %v612 = vmul.f32 %v510, 0.5
      %v613 = vmul.f32 %v513, 0.5
      %v614 = vmul.f32 %v518, 0.5
      %v615 = vmul.f32 %v521, 0.5
      %v616 = vmul.f32 %v526, 0.5
      %v617 = vmul.f32 %v529, 0.5
      %v618 = vmul.f32 %v534, 0.5
      %v619 = vmul.f32 %v537, 0.5
      %v620 = vmul.f32 %v542, 0.5
      %v621 = vmul.f32 %v545, 0.5
      %v622 = vmul.f32 %v550, 0.5
      %v623 = vmul.f32 %v553, 0.5
      %v624 = vmul.f32 %v558, 0.5
      %v625 = vmul.f32 %v561, 0.5
      %v626 = vmul.f32 %v566, 0.5
      %v627 = vmul.f32 %v569, 0.5
      %v628 = vmul.f32 %v574, 0.5
      %v629 = vmul.f32 %v577, 0.5
      %v630 = vmul.f32 %v582, 0.5
      %v631 = vmul.f32 %v585, 0.5
      %v632 = vmul.f32 %v590, 0.5
      %v633 = vmul.f32 %v593, 0.5
      %v634 = vmul.f32 %v598, 0.5
      %v635 = vmul.f32 %v601, 0.5
      %v636 = vmul.f32 %v478, 0.044715
      %v637 = vmul.f32 %v481, 0.044715
      %v638 = vmul.f32 %v486, 0.044715
      %v639 = vmul.f32 %v489, 0.044715
      %v640 = vmul.f32 %v494, 0.044715
      %v641 = vmul.f32 %v497, 0.044715
      %v642 = vmul.f32 %v502, 0.044715
      %v643 = vmul.f32 %v505, 0.044715
      %v644 = vmul.f32 %v510, 0.044715
      %v645 = vmul.f32 %v513, 0.044715
      %v646 = vmul.f32 %v518, 0.044715
      %v647 = vmul.f32 %v521, 0.044715
      %v648 = vmul.f32 %v526, 0.044715
      %v649 = vmul.f32 %v529, 0.044715
      %v650 = vmul.f32 %v534, 0.044715
      %v651 = vmul.f32 %v537, 0.044715
      %v652 = vmul.f32 %v542, 0.044715
      %v653 = vmul.f32 %v545, 0.044715
      %v654 = vmul.f32 %v550, 0.044715
      %v655 = vmul.f32 %v553, 0.044715
      %v656 = vmul.f32 %v558, 0.044715
      %v657 = vmul.f32 %v561, 0.044715
      %v658 = vmul.f32 %v566, 0.044715
      %v659 = vmul.f32 %v569, 0.044715
      %v660 = vmul.f32 %v574, 0.044715
      %v661 = vmul.f32 %v577, 0.044715
      %v662 = vmul.f32 %v582, 0.044715
      %v663 = vmul.f32 %v585, 0.044715
      %v664 = vmul.f32 %v590, 0.044715
      %v665 = vmul.f32 %v593, 0.044715
      %v666 = vmul.f32 %v598, 0.044715
      %v667 = vmul.f32 %v601, 0.044715
      %v668 = vmul.f32 %v636, %v478
      %v669 = vmul.f32 %v637, %v481
      %v670 = vmul.f32 %v638, %v486
      %v671 = vmul.f32 %v639, %v489
      %v672 = vmul.f32 %v640, %v494
      %v673 = vmul.f32 %v641, %v497
      %v674 = vmul.f32 %v642, %v502
      %v675 = vmul.f32 %v643, %v505
      %v676 = vmul.f32 %v644, %v510
      %v677 = vmul.f32 %v645, %v513
      %v678 = vmul.f32 %v646, %v518
      %v679 = vmul.f32 %v647, %v521
      %v680 = vmul.f32 %v648, %v526
      %v681 = vmul.f32 %v649, %v529
      %v682 = vmul.f32 %v650, %v534
      %v683 = vmul.f32 %v651, %v537
      %v684 = vmul.f32 %v652, %v542
      %v685 = vmul.f32 %v653, %v545
      %v686 = vmul.f32 %v654, %v550
      %v687 = vmul.f32 %v655, %v553
      %v688 = vmul.f32 %v656, %v558
      %v689 = vmul.f32 %v657, %v561
      %v690 = vmul.f32 %v658, %v566
      %v691 = vmul.f32 %v659, %v569
      %v692 = vmul.f32 %v660, %v574
      %v693 = vmul.f32 %v661, %v577
      %v694 = vmul.f32 %v662, %v582
      %v695 = vmul.f32 %v663, %v585
      %v696 = vmul.f32 %v664, %v590
      %v697 = vmul.f32 %v665, %v593
      %v698 = vmul.f32 %v666, %v598
      %v699 = vmul.f32 %v667, %v601
      %v700 = vmul.f32 %v668, %v478
      %v701 = vmul.f32 %v669, %v481
      %v702 = vmul.f32 %v670, %v486
      %v703 = vmul.f32 %v671, %v489
      %v704 = vmul.f32 %v672, %v494
      %v705 = vmul.f32 %v673, %v497
      %v706 = vmul.f32 %v674, %v502
      %v707 = vmul.f32 %v675, %v505
      %v708 = vmul.f32 %v676, %v510
      %v709 = vmul.f32 %v677, %v513
      %v710 = vmul.f32 %v678, %v518
      %v711 = vmul.f32 %v679, %v521
      %v712 = vmul.f32 %v680, %v526
      %v713 = vmul.f32 %v681, %v529
      %v714 = vmul.f32 %v682, %v534
      %v715 = vmul.f32 %v683, %v537
      %v716 = vmul.f32 %v684, %v542
      %v717 = vmul.f32 %v685, %v545
      %v718 = vmul.f32 %v686, %v550
      %v719 = vmul.f32 %v687, %v553
      %v720 = vmul.f32 %v688, %v558
      %v721 = vmul.f32 %v689, %v561
      %v722 = vmul.f32 %v690, %v566
      %v723 = vmul.f32 %v691, %v569
      %v724 = vmul.f32 %v692, %v574
      %v725 = vmul.f32 %v693, %v577
      %v726 = vmul.f32 %v694, %v582
      %v727 = vmul.f32 %v695, %v585
      %v728 = vmul.f32 %v696, %v590
      %v729 = vmul.f32 %v697, %v593
      %v730 = vmul.f32 %v698, %v598
      %v731 = vmul.f32 %v699, %v601
      %v732 = vadd.f32 %v478, %v700
      %v733 = vadd.f32 %v481, %v701
      %v734 = vadd.f32 %v486, %v702
      %v735 = vadd.f32 %v489, %v703
      %v736 = vadd.f32 %v494, %v704
      %v737 = vadd.f32 %v497, %v705
      %v738 = vadd.f32 %v502, %v706
      %v739 = vadd.f32 %v505, %v707
      %v740 = vadd.f32 %v510, %v708
      %v741 = vadd.f32 %v513, %v709
      %v742 = vadd.f32 %v518, %v710
      %v743 = vadd.f32 %v521, %v711
      %v744 = vadd.f32 %v526, %v712
      %v745 = vadd.f32 %v529, %v713
      %v746 = vadd.f32 %v534, %v714
      %v747 = vadd.f32 %v537, %v715
      %v748 = vadd.f32 %v542, %v716
      %v749 = vadd.f32 %v545, %v717
      %v750 = vadd.f32 %v550, %v718
      %v751 = vadd.f32 %v553, %v719
      %v752 = vadd.f32 %v558, %v720
      %v753 = vadd.f32 %v561, %v721
      %v754 = vadd.f32 %v566, %v722
      %v755 = vadd.f32 %v569, %v723
      %v756 = vadd.f32 %v574, %v724
      %v757 = vadd.f32 %v577, %v725
      %v758 = vadd.f32 %v582, %v726
      %v759 = vadd.f32 %v585, %v727
      %v760 = vadd.f32 %v590, %v728
      %v761 = vadd.f32 %v593, %v729
      %v762 = vadd.f32 %v598, %v730
      %v763 = vadd.f32 %v601, %v731
      %v764 = vmul.f32 %v732, 0.7978846
      %v765 = vmul.f32 %v733, 0.7978846
      %v766 = vmul.f32 %v734, 0.7978846
      %v767 = vmul.f32 %v735, 0.7978846
      %v768 = vmul.f32 %v736, 0.7978846
      %v769 = vmul.f32 %v737, 0.7978846
      %v770 = vmul.f32 %v738, 0.7978846
      %v771 = vmul.f32 %v739, 0.7978846
      %v772 = vmul.f32 %v740, 0.7978846
      %v773 = vmul.f32 %v741, 0.7978846
      %v774 = vmul.f32 %v742, 0.7978846
      %v775 = vmul.f32 %v743, 0.7978846
      %v776 = vmul.f32 %v744, 0.7978846
      %v777 = vmul.f32 %v745, 0.7978846
      %v778 = vmul.f32 %v746, 0.7978846
      %v779 = vmul.f32 %v747, 0.7978846
      %v780 = vmul.f32 %v748, 0.7978846
      %v781 = vmul.f32 %v749, 0.7978846
      %v782 = vmul.f32 %v750, 0.7978846
      %v783 = vmul.f32 %v751, 0.7978846
      %v784 = vmul.f32 %v752, 0.7978846
      %v785 = vmul.f32 %v753, 0.7978846
      %v786 = vmul.f32 %v754, 0.7978846
      %v787 = vmul.f32 %v755, 0.7978846
      %v788 = vmul.f32 %v756, 0.7978846
      %v789 = vmul.f32 %v757, 0.7978846
      %v790 = vmul.f32 %v758, 0.7978846
      %v791 = vmul.f32 %v759, 0.7978846
      %v792 = vmul.f32 %v760, 0.7978846
      %v793 = vmul.f32 %v761, 0.7978846
      %v794 = vmul.f32 %v762, 0.7978846
      %v795 = vmul.f32 %v763, 0.7978846
      %v796 = vtanh.pop %v764
      %v797 = vtanh.pop %v765
      %v798 = vtanh.pop %v766
      %v799 = vtanh.pop %v767
      %v800 = vtanh.pop %v768
      %v801 = vtanh.pop %v769
      %v802 = vtanh.pop %v770
      %v803 = vtanh.pop %v771
      %v804 = vtanh.pop %v772
      %v805 = vtanh.pop %v773
      %v806 = vtanh.pop %v774
      %v807 = vtanh.pop %v775
      %v808 = vtanh.pop %v776
      %v809 = vtanh.pop %v777
      %v810 = vtanh.pop %v778
      %v811 = vtanh.pop %v779
      %v812 = vtanh.pop %v780
      %v813 = vtanh.pop %v781
      %v814 = vtanh.pop %v782
      %v815 = vtanh.pop %v783
      %v816 = vtanh.pop %v784
      %v817 = vtanh.pop %v785
      %v818 = vtanh.pop %v786
      %v819 = vtanh.pop %v787
      %v820 = vtanh.pop %v788
      %v821 = vtanh.pop %v789
      %v822 = vtanh.pop %v790
      %v823 = vtanh.pop %v791
      %v824 = vtanh.pop %v792
      %v825 = vtanh.pop %v793
      %v826 = vtanh.pop %v794
      %v827 = vtanh.pop %v795
      %v828 = vadd.f32 %v796, 1.0
      %v829 = vadd.f32 %v797, 1.0
      %v830 = vadd.f32 %v798, 1.0
      %v831 = vadd.f32 %v799, 1.0
      %v832 = vadd.f32 %v800, 1.0
      %v833 = vadd.f32 %v801, 1.0
      %v834 = vadd.f32 %v802, 1.0
      %v835 = vadd.f32 %v803, 1.0
      %v836 = vadd.f32 %v804, 1.0
      %v837 = vadd.f32 %v805, 1.0
      %v838 = vadd.f32 %v806, 1.0
      %v839 = vadd.f32 %v807, 1.0
      %v840 = vadd.f32 %v808, 1.0
      %v841 = vadd.f32 %v809, 1.0
      %v842 = vadd.f32 %v810, 1.0
      %v843 = vadd.f32 %v811, 1.0
      %v844 = vadd.f32 %v812, 1.0
      %v845 = vadd.f32 %v813, 1.0
      %v846 = vadd.f32 %v814, 1.0
      %v847 = vadd.f32 %v815, 1.0
      %v848 = vadd.f32 %v816, 1.0
      %v849 = vadd.f32 %v817, 1.0
      %v850 = vadd.f32 %v818, 1.0
      %v851 = vadd.f32 %v819, 1.0
      %v852 = vadd.f32 %v820, 1.0
      %v853 = vadd.f32 %v821, 1.0
      %v854 = vadd.f32 %v822, 1.0
      %v855 = vadd.f32 %v823, 1.0
      %v856 = vadd.f32 %v824, 1.0
      %v857 = vadd.f32 %v825, 1.0
      %v858 = vadd.f32 %v826, 1.0
      %v859 = vadd.f32 %v827, 1.0
      %v860 = vmul.f32 %v604, %v828
      %v861 = vmul.f32 %v605, %v829
      %v862 = vmul.f32 %v606, %v830
      %v863 = vmul.f32 %v607, %v831
      %v864 = vmul.f32 %v608, %v832
      %v865 = vmul.f32 %v609, %v833
      %v866 = vmul.f32 %v610, %v834
      %v867 = vmul.f32 %v611, %v835
      %v868 = vmul.f32 %v612, %v836
      %v869 = vmul.f32 %v613, %v837
      %v870 = vmul.f32 %v614, %v838
      %v871 = vmul.f32 %v615, %v839
      %v872 = vmul.f32 %v616, %v840
      %v873 = vmul.f32 %v617, %v841
      %v874 = vmul.f32 %v618, %v842
      %v875 = vmul.f32 %v619, %v843
      %v876 = vmul.f32 %v620, %v844
      %v877 = vmul.f32 %v621, %v845
      %v878 = vmul.f32 %v622, %v846
      %v879 = vmul.f32 %v623, %v847
      %v880 = vmul.f32 %v624, %v848
      %v881 = vmul.f32 %v625, %v849
      %v882 = vmul.f32 %v626, %v850
      %v883 = vmul.f32 %v627, %v851
      %v884 = vmul.f32 %v628, %v852
      %v885 = vmul.f32 %v629, %v853
      %v886 = vmul.f32 %v630, %v854
      %v887 = vmul.f32 %v631, %v855
      %v888 = vmul.f32 %v632, %v856
      %v889 = vmul.f32 %v633, %v857
      %v890 = vmul.f32 %v634, %v858
      %v891 = vmul.f32 %v635, %v859
      %v892 = vlaneseq
      %v893 = vshrl.u32 %v892, 7
      %v894 = vadd.s32 %v893, 8
      %v895 = vadd.s32 %v893, 16
      %v896 = vadd.s32 %v893, 24
      %v897 = vadd.s32 %v893, 32
      %v898 = vadd.s32 %v893, 40
      %v899 = vadd.s32 %v893, 48
      %v900 = vadd.s32 %v893, 56
      %v901 = vadd.s32 %v893, 64
      %v902 = vadd.s32 %v893, 72
      %v903 = vadd.s32 %v893, 80
      %v904 = vadd.s32 %v893, 88
      %v905 = vadd.s32 %v893, 96
      %v906 = vadd.s32 %v893, 104
      %v907 = vadd.s32 %v893, 112
      %v908 = vadd.s32 %v893, 120
      %v909 = vadd.s32 %v893, 128
      %v910 = vadd.s32 %v893, 136
      %v911 = vadd.s32 %v893, 144
      %v912 = vadd.s32 %v893, 152
      %v913 = vadd.s32 %v893, 160
      %v914 = vadd.s32 %v893, 168
      %v915 = vadd.s32 %v893, 176
      %v916 = vadd.s32 %v893, 184
      %v917 = vadd.s32 %v893, 192
      %v918 = vadd.s32 %v893, 200
      %v919 = vadd.s32 %v893, 208
      %v920 = vadd.s32 %v893, 216
      %v921 = vadd.s32 %v893, 224
      %v922 = vadd.s32 %v893, 232
      %v923 = vadd.s32 %v893, 240
      %v924 = vadd.s32 %v893, 248
      %vm925 = vcmp.lt.s32.totalorder %v893, 0
      %v926 = vsub.s32 0, %v893
      %v927 = vsel %vm925, %v926, %v893
      %v928 = vshrl.u32 %v927, 4
      %v929 = vand.u32 %v927, 15
      %v930 = vsub.s32 0, %v929
      %v931 = vsel %vm925, %v930, %v929
      %vm932 = vcmp.lt.s32.totalorder %v894, 0
      %v933 = vsub.s32 0, %v894
      %v934 = vsel %vm932, %v933, %v894
      %v935 = vshrl.u32 %v934, 4
      %v936 = vand.u32 %v934, 15
      %v937 = vsub.s32 0, %v936
      %v938 = vsel %vm932, %v937, %v936
      %vm939 = vcmp.lt.s32.totalorder %v895, 0
      %v940 = vsub.s32 0, %v895
      %v941 = vsel %vm939, %v940, %v895
      %v942 = vshrl.u32 %v941, 4
      %v943 = vand.u32 %v941, 15
      %v944 = vsub.s32 0, %v943
      %v945 = vsel %vm939, %v944, %v943
      %vm946 = vcmp.lt.s32.totalorder %v896, 0
      %v947 = vsub.s32 0, %v896
      %v948 = vsel %vm946, %v947, %v896
      %v949 = vshrl.u32 %v948, 4
      %v950 = vand.u32 %v948, 15
      %v951 = vsub.s32 0, %v950
      %v952 = vsel %vm946, %v951, %v950
      %vm953 = vcmp.lt.s32.totalorder %v897, 0
      %v954 = vsub.s32 0, %v897
      %v955 = vsel %vm953, %v954, %v897
      %v956 = vshrl.u32 %v955, 4
      %v957 = vand.u32 %v955, 15
      %v958 = vsub.s32 0, %v957
      %v959 = vsel %vm953, %v958, %v957
      %vm960 = vcmp.lt.s32.totalorder %v898, 0
      %v961 = vsub.s32 0, %v898
      %v962 = vsel %vm960, %v961, %v898
      %v963 = vshrl.u32 %v962, 4
      %v964 = vand.u32 %v962, 15
      %v965 = vsub.s32 0, %v964
      %v966 = vsel %vm960, %v965, %v964
      %vm967 = vcmp.lt.s32.totalorder %v899, 0
      %v968 = vsub.s32 0, %v899
      %v969 = vsel %vm967, %v968, %v899
      %v970 = vshrl.u32 %v969, 4
      %v971 = vand.u32 %v969, 15
      %v972 = vsub.s32 0, %v971
      %v973 = vsel %vm967, %v972, %v971
      %vm974 = vcmp.lt.s32.totalorder %v900, 0
      %v975 = vsub.s32 0, %v900
      %v976 = vsel %vm974, %v975, %v900
      %v977 = vshrl.u32 %v976, 4
      %v978 = vand.u32 %v976, 15
      %v979 = vsub.s32 0, %v978
      %v980 = vsel %vm974, %v979, %v978
      %vm981 = vcmp.lt.s32.totalorder %v901, 0
      %v982 = vsub.s32 0, %v901
      %v983 = vsel %vm981, %v982, %v901
      %v984 = vshrl.u32 %v983, 4
      %v985 = vand.u32 %v983, 15
      %v986 = vsub.s32 0, %v985
      %v987 = vsel %vm981, %v986, %v985
      %vm988 = vcmp.lt.s32.totalorder %v902, 0
      %v989 = vsub.s32 0, %v902
      %v990 = vsel %vm988, %v989, %v902
      %v991 = vshrl.u32 %v990, 4
      %v992 = vand.u32 %v990, 15
      %v993 = vsub.s32 0, %v992
      %v994 = vsel %vm988, %v993, %v992
      %vm995 = vcmp.lt.s32.totalorder %v903, 0
      %v996 = vsub.s32 0, %v903
      %v997 = vsel %vm995, %v996, %v903
      %v998 = vshrl.u32 %v997, 4
      %v999 = vand.u32 %v997, 15
      %v1000 = vsub.s32 0, %v999
      %v1001 = vsel %vm995, %v1000, %v999
      %vm1002 = vcmp.lt.s32.totalorder %v904, 0
      %v1003 = vsub.s32 0, %v904
      %v1004 = vsel %vm1002, %v1003, %v904
      %v1005 = vshrl.u32 %v1004, 4
      %v1006 = vand.u32 %v1004, 15
      %v1007 = vsub.s32 0, %v1006
      %v1008 = vsel %vm1002, %v1007, %v1006
      %vm1009 = vcmp.lt.s32.totalorder %v905, 0
      %v1010 = vsub.s32 0, %v905
      %v1011 = vsel %vm1009, %v1010, %v905
      %v1012 = vshrl.u32 %v1011, 4
      %v1013 = vand.u32 %v1011, 15
      %v1014 = vsub.s32 0, %v1013
      %v1015 = vsel %vm1009, %v1014, %v1013
      %vm1016 = vcmp.lt.s32.totalorder %v906, 0
      %v1017 = vsub.s32 0, %v906
      %v1018 = vsel %vm1016, %v1017, %v906
      %v1019 = vshrl.u32 %v1018, 4
      %v1020 = vand.u32 %v1018, 15
      %v1021 = vsub.s32 0, %v1020
      %v1022 = vsel %vm1016, %v1021, %v1020
      %vm1023 = vcmp.lt.s32.totalorder %v907, 0
      %v1024 = vsub.s32 0, %v907
      %v1025 = vsel %vm1023, %v1024, %v907
      %v1026 = vshrl.u32 %v1025, 4
      %v1027 = vand.u32 %v1025, 15
      %v1028 = vsub.s32 0, %v1027
      %v1029 = vsel %vm1023, %v1028, %v1027
      %vm1030 = vcmp.lt.s32.totalorder %v908, 0
      %v1031 = vsub.s32 0, %v908
      %v1032 = vsel %vm1030, %v1031, %v908
      %v1033 = vshrl.u32 %v1032, 4
      %v1034 = vand.u32 %v1032, 15
      %v1035 = vsub.s32 0, %v1034
      %v1036 = vsel %vm1030, %v1035, %v1034
      %vm1037 = vcmp.lt.s32.totalorder %v909, 0
      %v1038 = vsub.s32 0, %v909
      %v1039 = vsel %vm1037, %v1038, %v909
      %v1040 = vshrl.u32 %v1039, 4
      %v1041 = vand.u32 %v1039, 15
      %v1042 = vsub.s32 0, %v1041
      %v1043 = vsel %vm1037, %v1042, %v1041
      %vm1044 = vcmp.lt.s32.totalorder %v910, 0
      %v1045 = vsub.s32 0, %v910
      %v1046 = vsel %vm1044, %v1045, %v910
      %v1047 = vshrl.u32 %v1046, 4
      %v1048 = vand.u32 %v1046, 15
      %v1049 = vsub.s32 0, %v1048
      %v1050 = vsel %vm1044, %v1049, %v1048
      %vm1051 = vcmp.lt.s32.totalorder %v911, 0
      %v1052 = vsub.s32 0, %v911
      %v1053 = vsel %vm1051, %v1052, %v911
      %v1054 = vshrl.u32 %v1053, 4
      %v1055 = vand.u32 %v1053, 15
      %v1056 = vsub.s32 0, %v1055
      %v1057 = vsel %vm1051, %v1056, %v1055
      %vm1058 = vcmp.lt.s32.totalorder %v912, 0
      %v1059 = vsub.s32 0, %v912
      %v1060 = vsel %vm1058, %v1059, %v912
      %v1061 = vshrl.u32 %v1060, 4
      %v1062 = vand.u32 %v1060, 15
      %v1063 = vsub.s32 0, %v1062
      %v1064 = vsel %vm1058, %v1063, %v1062
      %vm1065 = vcmp.lt.s32.totalorder %v913, 0
      %v1066 = vsub.s32 0, %v913
      %v1067 = vsel %vm1065, %v1066, %v913
      %v1068 = vshrl.u32 %v1067, 4
      %v1069 = vand.u32 %v1067, 15
      %v1070 = vsub.s32 0, %v1069
      %v1071 = vsel %vm1065, %v1070, %v1069
      %vm1072 = vcmp.lt.s32.totalorder %v914, 0
      %v1073 = vsub.s32 0, %v914
      %v1074 = vsel %vm1072, %v1073, %v914
      %v1075 = vshrl.u32 %v1074, 4
      %v1076 = vand.u32 %v1074, 15
      %v1077 = vsub.s32 0, %v1076
      %v1078 = vsel %vm1072, %v1077, %v1076
      %vm1079 = vcmp.lt.s32.totalorder %v915, 0
      %v1080 = vsub.s32 0, %v915
      %v1081 = vsel %vm1079, %v1080, %v915
      %v1082 = vshrl.u32 %v1081, 4
      %v1083 = vand.u32 %v1081, 15
      %v1084 = vsub.s32 0, %v1083
      %v1085 = vsel %vm1079, %v1084, %v1083
      %vm1086 = vcmp.lt.s32.totalorder %v916, 0
      %v1087 = vsub.s32 0, %v916
      %v1088 = vsel %vm1086, %v1087, %v916
      %v1089 = vshrl.u32 %v1088, 4
      %v1090 = vand.u32 %v1088, 15
      %v1091 = vsub.s32 0, %v1090
      %v1092 = vsel %vm1086, %v1091, %v1090
      %vm1093 = vcmp.lt.s32.totalorder %v917, 0
      %v1094 = vsub.s32 0, %v917
      %v1095 = vsel %vm1093, %v1094, %v917
      %v1096 = vshrl.u32 %v1095, 4
      %v1097 = vand.u32 %v1095, 15
      %v1098 = vsub.s32 0, %v1097
      %v1099 = vsel %vm1093, %v1098, %v1097
      %vm1100 = vcmp.lt.s32.totalorder %v918, 0
      %v1101 = vsub.s32 0, %v918
      %v1102 = vsel %vm1100, %v1101, %v918
      %v1103 = vshrl.u32 %v1102, 4
      %v1104 = vand.u32 %v1102, 15
      %v1105 = vsub.s32 0, %v1104
      %v1106 = vsel %vm1100, %v1105, %v1104
      %vm1107 = vcmp.lt.s32.totalorder %v919, 0
      %v1108 = vsub.s32 0, %v919
      %v1109 = vsel %vm1107, %v1108, %v919
      %v1110 = vshrl.u32 %v1109, 4
      %v1111 = vand.u32 %v1109, 15
      %v1112 = vsub.s32 0, %v1111
      %v1113 = vsel %vm1107, %v1112, %v1111
      %vm1114 = vcmp.lt.s32.totalorder %v920, 0
      %v1115 = vsub.s32 0, %v920
      %v1116 = vsel %vm1114, %v1115, %v920
      %v1117 = vshrl.u32 %v1116, 4
      %v1118 = vand.u32 %v1116, 15
      %v1119 = vsub.s32 0, %v1118
      %v1120 = vsel %vm1114, %v1119, %v1118
      %vm1121 = vcmp.lt.s32.totalorder %v921, 0
      %v1122 = vsub.s32 0, %v921
      %v1123 = vsel %vm1121, %v1122, %v921
      %v1124 = vshrl.u32 %v1123, 4
      %v1125 = vand.u32 %v1123, 15
      %v1126 = vsub.s32 0, %v1125
      %v1127 = vsel %vm1121, %v1126, %v1125
      %vm1128 = vcmp.lt.s32.totalorder %v922, 0
      %v1129 = vsub.s32 0, %v922
      %v1130 = vsel %vm1128, %v1129, %v922
      %v1131 = vshrl.u32 %v1130, 4
      %v1132 = vand.u32 %v1130, 15
      %v1133 = vsub.s32 0, %v1132
      %v1134 = vsel %vm1128, %v1133, %v1132
      %vm1135 = vcmp.lt.s32.totalorder %v923, 0
      %v1136 = vsub.s32 0, %v923
      %v1137 = vsel %vm1135, %v1136, %v923
      %v1138 = vshrl.u32 %v1137, 4
      %v1139 = vand.u32 %v1137, 15
      %v1140 = vsub.s32 0, %v1139
      %v1141 = vsel %vm1135, %v1140, %v1139
      %vm1142 = vcmp.lt.s32.totalorder %v924, 0
      %v1143 = vsub.s32 0, %v924
      %v1144 = vsel %vm1142, %v1143, %v924
      %v1145 = vshrl.u32 %v1144, 4
      %v1146 = vand.u32 %v1144, 15
      %v1147 = vsub.s32 0, %v1146
      %v1148 = vsel %vm1142, %v1147, %v1146
      %vm1149 = vcmp.ne.s32.totalorder %v931, 0
      %vm1150 = vcmp.ne.s32.totalorder %v938, 0
      %vm1151 = vcmp.ne.s32.totalorder %v945, 0
      %vm1152 = vcmp.ne.s32.totalorder %v952, 0
      %vm1153 = vcmp.ne.s32.totalorder %v959, 0
      %vm1154 = vcmp.ne.s32.totalorder %v966, 0
      %vm1155 = vcmp.ne.s32.totalorder %v973, 0
      %vm1156 = vcmp.ne.s32.totalorder %v980, 0
      %vm1157 = vcmp.ne.s32.totalorder %v987, 0
      %vm1158 = vcmp.ne.s32.totalorder %v994, 0
      %vm1159 = vcmp.ne.s32.totalorder %v1001, 0
      %vm1160 = vcmp.ne.s32.totalorder %v1008, 0
      %vm1161 = vcmp.ne.s32.totalorder %v1015, 0
      %vm1162 = vcmp.ne.s32.totalorder %v1022, 0
      %vm1163 = vcmp.ne.s32.totalorder %v1029, 0
      %vm1164 = vcmp.ne.s32.totalorder %v1036, 0
      %vm1165 = vcmp.ne.s32.totalorder %v1043, 0
      %vm1166 = vcmp.ne.s32.totalorder %v1050, 0
      %vm1167 = vcmp.ne.s32.totalorder %v1057, 0
      %vm1168 = vcmp.ne.s32.totalorder %v1064, 0
      %vm1169 = vcmp.ne.s32.totalorder %v1071, 0
      %vm1170 = vcmp.ne.s32.totalorder %v1078, 0
      %vm1171 = vcmp.ne.s32.totalorder %v1085, 0
      %vm1172 = vcmp.ne.s32.totalorder %v1092, 0
      %vm1173 = vcmp.ne.s32.totalorder %v1099, 0
      %vm1174 = vcmp.ne.s32.totalorder %v1106, 0
      %vm1175 = vcmp.ne.s32.totalorder %v1113, 0
      %vm1176 = vcmp.ne.s32.totalorder %v1120, 0
      %vm1177 = vcmp.ne.s32.totalorder %v1127, 0
      %vm1178 = vcmp.ne.s32.totalorder %v1134, 0
      %vm1179 = vcmp.ne.s32.totalorder %v1141, 0
      %vm1180 = vcmp.ne.s32.totalorder %v1148, 0
      %vm1181 = vcmp.lt.s32.totalorder %v931, 0
      %vm1182 = vcmp.lt.s32.totalorder %v938, 0
      %vm1183 = vcmp.lt.s32.totalorder %v945, 0
      %vm1184 = vcmp.lt.s32.totalorder %v952, 0
      %vm1185 = vcmp.lt.s32.totalorder %v959, 0
      %vm1186 = vcmp.lt.s32.totalorder %v966, 0
      %vm1187 = vcmp.lt.s32.totalorder %v973, 0
      %vm1188 = vcmp.lt.s32.totalorder %v980, 0
      %vm1189 = vcmp.lt.s32.totalorder %v987, 0
      %vm1190 = vcmp.lt.s32.totalorder %v994, 0
      %vm1191 = vcmp.lt.s32.totalorder %v1001, 0
      %vm1192 = vcmp.lt.s32.totalorder %v1008, 0
      %vm1193 = vcmp.lt.s32.totalorder %v1015, 0
      %vm1194 = vcmp.lt.s32.totalorder %v1022, 0
      %vm1195 = vcmp.lt.s32.totalorder %v1029, 0
      %vm1196 = vcmp.lt.s32.totalorder %v1036, 0
      %vm1197 = vcmp.lt.s32.totalorder %v1043, 0
      %vm1198 = vcmp.lt.s32.totalorder %v1050, 0
      %vm1199 = vcmp.lt.s32.totalorder %v1057, 0
      %vm1200 = vcmp.lt.s32.totalorder %v1064, 0
      %vm1201 = vcmp.lt.s32.totalorder %v1071, 0
      %vm1202 = vcmp.lt.s32.totalorder %v1078, 0
      %vm1203 = vcmp.lt.s32.totalorder %v1085, 0
      %vm1204 = vcmp.lt.s32.totalorder %v1092, 0
      %vm1205 = vcmp.lt.s32.totalorder %v1099, 0
      %vm1206 = vcmp.lt.s32.totalorder %v1106, 0
      %vm1207 = vcmp.lt.s32.totalorder %v1113, 0
      %vm1208 = vcmp.lt.s32.totalorder %v1120, 0
      %vm1209 = vcmp.lt.s32.totalorder %v1127, 0
      %vm1210 = vcmp.lt.s32.totalorder %v1134, 0
      %vm1211 = vcmp.lt.s32.totalorder %v1141, 0
      %vm1212 = vcmp.lt.s32.totalorder %v1148, 0
      %vm1213 = vmand %vm1181, %vm1149
      %vm1214 = vmand %vm1182, %vm1150
      %vm1215 = vmand %vm1183, %vm1151
      %vm1216 = vmand %vm1184, %vm1152
      %vm1217 = vmand %vm1185, %vm1153
      %vm1218 = vmand %vm1186, %vm1154
      %vm1219 = vmand %vm1187, %vm1155
      %vm1220 = vmand %vm1188, %vm1156
      %vm1221 = vmand %vm1189, %vm1157
      %vm1222 = vmand %vm1190, %vm1158
      %vm1223 = vmand %vm1191, %vm1159
      %vm1224 = vmand %vm1192, %vm1160
      %vm1225 = vmand %vm1193, %vm1161
      %vm1226 = vmand %vm1194, %vm1162
      %vm1227 = vmand %vm1195, %vm1163
      %vm1228 = vmand %vm1196, %vm1164
      %vm1229 = vmand %vm1197, %vm1165
      %vm1230 = vmand %vm1198, %vm1166
      %vm1231 = vmand %vm1199, %vm1167
      %vm1232 = vmand %vm1200, %vm1168
      %vm1233 = vmand %vm1201, %vm1169
      %vm1234 = vmand %vm1202, %vm1170
      %vm1235 = vmand %vm1203, %vm1171
      %vm1236 = vmand %vm1204, %vm1172
      %vm1237 = vmand %vm1205, %vm1173
      %vm1238 = vmand %vm1206, %vm1174
      %vm1239 = vmand %vm1207, %vm1175
      %vm1240 = vmand %vm1208, %vm1176
      %vm1241 = vmand %vm1209, %vm1177
      %vm1242 = vmand %vm1210, %vm1178
      %vm1243 = vmand %vm1211, %vm1179
      %vm1244 = vmand %vm1212, %vm1180
      %v1245 = vadd.s32 %v931, 16
      %v1246 = vadd.s32 %v938, 16
      %v1247 = vadd.s32 %v945, 16
      %v1248 = vadd.s32 %v952, 16
      %v1249 = vadd.s32 %v959, 16
      %v1250 = vadd.s32 %v966, 16
      %v1251 = vadd.s32 %v973, 16
      %v1252 = vadd.s32 %v980, 16
      %v1253 = vadd.s32 %v987, 16
      %v1254 = vadd.s32 %v994, 16
      %v1255 = vadd.s32 %v1001, 16
      %v1256 = vadd.s32 %v1008, 16
      %v1257 = vadd.s32 %v1015, 16
      %v1258 = vadd.s32 %v1022, 16
      %v1259 = vadd.s32 %v1029, 16
      %v1260 = vadd.s32 %v1036, 16
      %v1261 = vadd.s32 %v1043, 16
      %v1262 = vadd.s32 %v1050, 16
      %v1263 = vadd.s32 %v1057, 16
      %v1264 = vadd.s32 %v1064, 16
      %v1265 = vadd.s32 %v1071, 16
      %v1266 = vadd.s32 %v1078, 16
      %v1267 = vadd.s32 %v1085, 16
      %v1268 = vadd.s32 %v1092, 16
      %v1269 = vadd.s32 %v1099, 16
      %v1270 = vadd.s32 %v1106, 16
      %v1271 = vadd.s32 %v1113, 16
      %v1272 = vadd.s32 %v1120, 16
      %v1273 = vadd.s32 %v1127, 16
      %v1274 = vadd.s32 %v1134, 16
      %v1275 = vadd.s32 %v1141, 16
      %v1276 = vadd.s32 %v1148, 16
      %v1277 = vsel %vm1213, %v1245, %v931
      %v1278 = vsel %vm1214, %v1246, %v938
      %v1279 = vsel %vm1215, %v1247, %v945
      %v1280 = vsel %vm1216, %v1248, %v952
      %v1281 = vsel %vm1217, %v1249, %v959
      %v1282 = vsel %vm1218, %v1250, %v966
      %v1283 = vsel %vm1219, %v1251, %v973
      %v1284 = vsel %vm1220, %v1252, %v980
      %v1285 = vsel %vm1221, %v1253, %v987
      %v1286 = vsel %vm1222, %v1254, %v994
      %v1287 = vsel %vm1223, %v1255, %v1001
      %v1288 = vsel %vm1224, %v1256, %v1008
      %v1289 = vsel %vm1225, %v1257, %v1015
      %v1290 = vsel %vm1226, %v1258, %v1022
      %v1291 = vsel %vm1227, %v1259, %v1029
      %v1292 = vsel %vm1228, %v1260, %v1036
      %v1293 = vsel %vm1229, %v1261, %v1043
      %v1294 = vsel %vm1230, %v1262, %v1050
      %v1295 = vsel %vm1231, %v1263, %v1057
      %v1296 = vsel %vm1232, %v1264, %v1064
      %v1297 = vsel %vm1233, %v1265, %v1071
      %v1298 = vsel %vm1234, %v1266, %v1078
      %v1299 = vsel %vm1235, %v1267, %v1085
      %v1300 = vsel %vm1236, %v1268, %v1092
      %v1301 = vsel %vm1237, %v1269, %v1099
      %v1302 = vsel %vm1238, %v1270, %v1106
      %v1303 = vsel %vm1239, %v1271, %v1113
      %v1304 = vsel %vm1240, %v1272, %v1120
      %v1305 = vsel %vm1241, %v1273, %v1127
      %v1306 = vsel %vm1242, %v1274, %v1134
      %v1307 = vsel %vm1243, %v1275, %v1141
      %v1308 = vsel %vm1244, %v1276, %v1148
      %v1309 = vrot.slane %v860, 7
      %v1310 = vrot.slane %v861, 7
      %v1311 = vrot.slane %v862, 7
      %v1312 = vrot.slane %v863, 7
      %v1313 = vrot.slane %v864, 7
      %v1314 = vrot.slane %v865, 7
      %v1315 = vrot.slane %v866, 7
      %v1316 = vrot.slane %v867, 7
      %v1317 = vrot.slane %v868, 7
      %v1318 = vrot.slane %v869, 7
      %v1319 = vrot.slane %v870, 7
      %v1320 = vrot.slane %v871, 7
      %v1321 = vrot.slane %v872, 7
      %v1322 = vrot.slane %v873, 7
      %v1323 = vrot.slane %v874, 7
      %v1324 = vrot.slane %v875, 7
      %v1325 = vrot.slane %v876, 7
      %v1326 = vrot.slane %v877, 7
      %v1327 = vrot.slane %v878, 7
      %v1328 = vrot.slane %v879, 7
      %v1329 = vrot.slane %v880, 7
      %v1330 = vrot.slane %v881, 7
      %v1331 = vrot.slane %v882, 7
      %v1332 = vrot.slane %v883, 7
      %v1333 = vrot.slane %v884, 7
      %v1334 = vrot.slane %v885, 7
      %v1335 = vrot.slane %v886, 7
      %v1336 = vrot.slane %v887, 7
      %v1337 = vrot.slane %v888, 7
      %v1338 = vrot.slane %v889, 7
      %v1339 = vrot.slane %v890, 7
      %v1340 = vrot.slane %v891, 7
      %vm1341 = vcmp.lt.s32.totalorder %v893, 1
      %v1342 = vsel %vm1341, %v1339, %v1340
      %v1343 = vsel %vm1341, %v1338, %v1339
      %v1344 = vsel %vm1341, %v1337, %v1338
      %v1345 = vsel %vm1341, %v1336, %v1337
      %v1346 = vsel %vm1341, %v1335, %v1336
      %v1347 = vsel %vm1341, %v1334, %v1335
      %v1348 = vsel %vm1341, %v1333, %v1334
      %v1349 = vsel %vm1341, %v1332, %v1333
      %v1350 = vsel %vm1341, %v1331, %v1332
      %v1351 = vsel %vm1341, %v1330, %v1331
      %v1352 = vsel %vm1341, %v1329, %v1330
      %v1353 = vsel %vm1341, %v1328, %v1329
      %v1354 = vsel %vm1341, %v1327, %v1328
      %v1355 = vsel %vm1341, %v1326, %v1327
      %v1356 = vsel %vm1341, %v1325, %v1326
      %v1357 = vsel %vm1341, %v1324, %v1325
      %v1358 = vsel %vm1341, %v1323, %v1324
      %v1359 = vsel %vm1341, %v1322, %v1323
      %v1360 = vsel %vm1341, %v1321, %v1322
      %v1361 = vsel %vm1341, %v1320, %v1321
      %v1362 = vsel %vm1341, %v1319, %v1320
      %v1363 = vsel %vm1341, %v1318, %v1319
      %v1364 = vsel %vm1341, %v1317, %v1318
      %v1365 = vsel %vm1341, %v1316, %v1317
      %v1366 = vsel %vm1341, %v1315, %v1316
      %v1367 = vsel %vm1341, %v1314, %v1315
      %v1368 = vsel %vm1341, %v1313, %v1314
      %v1369 = vsel %vm1341, %v1312, %v1313
      %v1370 = vsel %vm1341, %v1311, %v1312
      %v1371 = vsel %vm1341, %v1310, %v1311
      %v1372 = vsel %vm1341, %v1309, %v1310
      %v1373 = vsel %vm1341, %v1340, %v1309
      %v1374 = vadd.s32 %v1277, 4294967295
      %v1375 = vadd.s32 %v1278, 4294967295
      %v1376 = vadd.s32 %v1279, 4294967295
      %v1377 = vadd.s32 %v1280, 4294967295
      %v1378 = vadd.s32 %v1281, 4294967295
      %v1379 = vadd.s32 %v1282, 4294967295
      %v1380 = vadd.s32 %v1283, 4294967295
      %v1381 = vadd.s32 %v1284, 4294967295
      %v1382 = vadd.s32 %v1285, 4294967295
      %v1383 = vadd.s32 %v1286, 4294967295
      %v1384 = vadd.s32 %v1287, 4294967295
      %v1385 = vadd.s32 %v1288, 4294967295
      %v1386 = vadd.s32 %v1289, 4294967295
      %v1387 = vadd.s32 %v1290, 4294967295
      %v1388 = vadd.s32 %v1291, 4294967295
      %v1389 = vadd.s32 %v1292, 4294967295
      %v1390 = vadd.s32 %v1293, 4294967295
      %v1391 = vadd.s32 %v1294, 4294967295
      %v1392 = vadd.s32 %v1295, 4294967295
      %v1393 = vadd.s32 %v1296, 4294967295
      %v1394 = vadd.s32 %v1297, 4294967295
      %v1395 = vadd.s32 %v1298, 4294967295
      %v1396 = vadd.s32 %v1299, 4294967295
      %v1397 = vadd.s32 %v1300, 4294967295
      %v1398 = vadd.s32 %v1301, 4294967295
      %v1399 = vadd.s32 %v1302, 4294967295
      %v1400 = vadd.s32 %v1303, 4294967295
      %v1401 = vadd.s32 %v1304, 4294967295
      %v1402 = vadd.s32 %v1305, 4294967295
      %v1403 = vadd.s32 %v1306, 4294967295
      %v1404 = vadd.s32 %v1307, 4294967295
      %v1405 = vadd.s32 %v1308, 4294967295
      %vm1406 = vcmp.ge.s32.totalorder %v1374, 0
      %vm1407 = vcmp.ge.s32.totalorder %v1375, 0
      %vm1408 = vcmp.ge.s32.totalorder %v1376, 0
      %vm1409 = vcmp.ge.s32.totalorder %v1377, 0
      %vm1410 = vcmp.ge.s32.totalorder %v1378, 0
      %vm1411 = vcmp.ge.s32.totalorder %v1379, 0
      %vm1412 = vcmp.ge.s32.totalorder %v1380, 0
      %vm1413 = vcmp.ge.s32.totalorder %v1381, 0
      %vm1414 = vcmp.ge.s32.totalorder %v1382, 0
      %vm1415 = vcmp.ge.s32.totalorder %v1383, 0
      %vm1416 = vcmp.ge.s32.totalorder %v1384, 0
      %vm1417 = vcmp.ge.s32.totalorder %v1385, 0
      %vm1418 = vcmp.ge.s32.totalorder %v1386, 0
      %vm1419 = vcmp.ge.s32.totalorder %v1387, 0
      %vm1420 = vcmp.ge.s32.totalorder %v1388, 0
      %vm1421 = vcmp.ge.s32.totalorder %v1389, 0
      %vm1422 = vcmp.ge.s32.totalorder %v1390, 0
      %vm1423 = vcmp.ge.s32.totalorder %v1391, 0
      %vm1424 = vcmp.ge.s32.totalorder %v1392, 0
      %vm1425 = vcmp.ge.s32.totalorder %v1393, 0
      %vm1426 = vcmp.ge.s32.totalorder %v1394, 0
      %vm1427 = vcmp.ge.s32.totalorder %v1395, 0
      %vm1428 = vcmp.ge.s32.totalorder %v1396, 0
      %vm1429 = vcmp.ge.s32.totalorder %v1397, 0
      %vm1430 = vcmp.ge.s32.totalorder %v1398, 0
      %vm1431 = vcmp.ge.s32.totalorder %v1399, 0
      %vm1432 = vcmp.ge.s32.totalorder %v1400, 0
      %vm1433 = vcmp.ge.s32.totalorder %v1401, 0
      %vm1434 = vcmp.ge.s32.totalorder %v1402, 0
      %vm1435 = vcmp.ge.s32.totalorder %v1403, 0
      %vm1436 = vcmp.ge.s32.totalorder %v1404, 0
      %vm1437 = vcmp.ge.s32.totalorder %v1405, 0
      %vm1438 = vcmp.lt.s32.totalorder %v1374, 16
      %vm1439 = vcmp.lt.s32.totalorder %v1375, 16
      %vm1440 = vcmp.lt.s32.totalorder %v1376, 16
      %vm1441 = vcmp.lt.s32.totalorder %v1377, 16
      %vm1442 = vcmp.lt.s32.totalorder %v1378, 16
      %vm1443 = vcmp.lt.s32.totalorder %v1379, 16
      %vm1444 = vcmp.lt.s32.totalorder %v1380, 16
      %vm1445 = vcmp.lt.s32.totalorder %v1381, 16
      %vm1446 = vcmp.lt.s32.totalorder %v1382, 16
      %vm1447 = vcmp.lt.s32.totalorder %v1383, 16
      %vm1448 = vcmp.lt.s32.totalorder %v1384, 16
      %vm1449 = vcmp.lt.s32.totalorder %v1385, 16
      %vm1450 = vcmp.lt.s32.totalorder %v1386, 16
      %vm1451 = vcmp.lt.s32.totalorder %v1387, 16
      %vm1452 = vcmp.lt.s32.totalorder %v1388, 16
      %vm1453 = vcmp.lt.s32.totalorder %v1389, 16
      %vm1454 = vcmp.lt.s32.totalorder %v1390, 16
      %vm1455 = vcmp.lt.s32.totalorder %v1391, 16
      %vm1456 = vcmp.lt.s32.totalorder %v1392, 16
      %vm1457 = vcmp.lt.s32.totalorder %v1393, 16
      %vm1458 = vcmp.lt.s32.totalorder %v1394, 16
      %vm1459 = vcmp.lt.s32.totalorder %v1395, 16
      %vm1460 = vcmp.lt.s32.totalorder %v1396, 16
      %vm1461 = vcmp.lt.s32.totalorder %v1397, 16
      %vm1462 = vcmp.lt.s32.totalorder %v1398, 16
      %vm1463 = vcmp.lt.s32.totalorder %v1399, 16
      %vm1464 = vcmp.lt.s32.totalorder %v1400, 16
      %vm1465 = vcmp.lt.s32.totalorder %v1401, 16
      %vm1466 = vcmp.lt.s32.totalorder %v1402, 16
      %vm1467 = vcmp.lt.s32.totalorder %v1403, 16
      %vm1468 = vcmp.lt.s32.totalorder %v1404, 16
      %vm1469 = vcmp.lt.s32.totalorder %v1405, 16
      %vm1470 = vmand %vm1406, %vm1438
      %vm1471 = vmand %vm1407, %vm1439
      %vm1472 = vmand %vm1408, %vm1440
      %vm1473 = vmand %vm1409, %vm1441
      %vm1474 = vmand %vm1410, %vm1442
      %vm1475 = vmand %vm1411, %vm1443
      %vm1476 = vmand %vm1412, %vm1444
      %vm1477 = vmand %vm1413, %vm1445
      %vm1478 = vmand %vm1414, %vm1446
      %vm1479 = vmand %vm1415, %vm1447
      %vm1480 = vmand %vm1416, %vm1448
      %vm1481 = vmand %vm1417, %vm1449
      %vm1482 = vmand %vm1418, %vm1450
      %vm1483 = vmand %vm1419, %vm1451
      %vm1484 = vmand %vm1420, %vm1452
      %vm1485 = vmand %vm1421, %vm1453
      %vm1486 = vmand %vm1422, %vm1454
      %vm1487 = vmand %vm1423, %vm1455
      %vm1488 = vmand %vm1424, %vm1456
      %vm1489 = vmand %vm1425, %vm1457
      %vm1490 = vmand %vm1426, %vm1458
      %vm1491 = vmand %vm1427, %vm1459
      %vm1492 = vmand %vm1428, %vm1460
      %vm1493 = vmand %vm1429, %vm1461
      %vm1494 = vmand %vm1430, %vm1462
      %vm1495 = vmand %vm1431, %vm1463
      %vm1496 = vmand %vm1432, %vm1464
      %vm1497 = vmand %vm1433, %vm1465
      %vm1498 = vmand %vm1434, %vm1466
      %vm1499 = vmand %vm1435, %vm1467
      %vm1500 = vmand %vm1436, %vm1468
      %vm1501 = vmand %vm1437, %vm1469
      %v1502 = vadd.s32 %v893, 4294967280
      %v1503 = vadd.s32 %v894, 4294967280
      %v1504 = vadd.s32 %v895, 4294967280
      %v1505 = vadd.s32 %v896, 4294967280
      %v1506 = vadd.s32 %v897, 4294967280
      %v1507 = vadd.s32 %v898, 4294967280
      %v1508 = vadd.s32 %v899, 4294967280
      %v1509 = vadd.s32 %v900, 4294967280
      %v1510 = vadd.s32 %v901, 4294967280
      %v1511 = vadd.s32 %v902, 4294967280
      %v1512 = vadd.s32 %v903, 4294967280
      %v1513 = vadd.s32 %v904, 4294967280
      %v1514 = vadd.s32 %v905, 4294967280
      %v1515 = vadd.s32 %v906, 4294967280
      %v1516 = vadd.s32 %v907, 4294967280
      %v1517 = vadd.s32 %v908, 4294967280
      %v1518 = vadd.s32 %v909, 4294967280
      %v1519 = vadd.s32 %v910, 4294967280
      %v1520 = vadd.s32 %v911, 4294967280
      %v1521 = vadd.s32 %v912, 4294967280
      %v1522 = vadd.s32 %v913, 4294967280
      %v1523 = vadd.s32 %v914, 4294967280
      %v1524 = vadd.s32 %v915, 4294967280
      %v1525 = vadd.s32 %v916, 4294967280
      %v1526 = vadd.s32 %v917, 4294967280
      %v1527 = vadd.s32 %v918, 4294967280
      %v1528 = vadd.s32 %v919, 4294967280
      %v1529 = vadd.s32 %v920, 4294967280
      %v1530 = vadd.s32 %v921, 4294967280
      %v1531 = vadd.s32 %v922, 4294967280
      %v1532 = vadd.s32 %v923, 4294967280
      %v1533 = vadd.s32 %v924, 4294967280
      %vm1534 = vcmp.ge.s32.totalorder %v1502, 0
      %vm1535 = vcmp.ge.s32.totalorder %v1503, 0
      %vm1536 = vcmp.ge.s32.totalorder %v1504, 0
      %vm1537 = vcmp.ge.s32.totalorder %v1505, 0
      %vm1538 = vcmp.ge.s32.totalorder %v1506, 0
      %vm1539 = vcmp.ge.s32.totalorder %v1507, 0
      %vm1540 = vcmp.ge.s32.totalorder %v1508, 0
      %vm1541 = vcmp.ge.s32.totalorder %v1509, 0
      %vm1542 = vcmp.ge.s32.totalorder %v1510, 0
      %vm1543 = vcmp.ge.s32.totalorder %v1511, 0
      %vm1544 = vcmp.ge.s32.totalorder %v1512, 0
      %vm1545 = vcmp.ge.s32.totalorder %v1513, 0
      %vm1546 = vcmp.ge.s32.totalorder %v1514, 0
      %vm1547 = vcmp.ge.s32.totalorder %v1515, 0
      %vm1548 = vcmp.ge.s32.totalorder %v1516, 0
      %vm1549 = vcmp.ge.s32.totalorder %v1517, 0
      %vm1550 = vcmp.ge.s32.totalorder %v1518, 0
      %vm1551 = vcmp.ge.s32.totalorder %v1519, 0
      %vm1552 = vcmp.ge.s32.totalorder %v1520, 0
      %vm1553 = vcmp.ge.s32.totalorder %v1521, 0
      %vm1554 = vcmp.ge.s32.totalorder %v1522, 0
      %vm1555 = vcmp.ge.s32.totalorder %v1523, 0
      %vm1556 = vcmp.ge.s32.totalorder %v1524, 0
      %vm1557 = vcmp.ge.s32.totalorder %v1525, 0
      %vm1558 = vcmp.ge.s32.totalorder %v1526, 0
      %vm1559 = vcmp.ge.s32.totalorder %v1527, 0
      %vm1560 = vcmp.ge.s32.totalorder %v1528, 0
      %vm1561 = vcmp.ge.s32.totalorder %v1529, 0
      %vm1562 = vcmp.ge.s32.totalorder %v1530, 0
      %vm1563 = vcmp.ge.s32.totalorder %v1531, 0
      %vm1564 = vcmp.ge.s32.totalorder %v1532, 0
      %vm1565 = vcmp.ge.s32.totalorder %v1533, 0
      %vm1566 = vmand %vm1470, %vm1534
      %vm1567 = vmand %vm1471, %vm1535
      %vm1568 = vmand %vm1472, %vm1536
      %vm1569 = vmand %vm1473, %vm1537
      %vm1570 = vmand %vm1474, %vm1538
      %vm1571 = vmand %vm1475, %vm1539
      %vm1572 = vmand %vm1476, %vm1540
      %vm1573 = vmand %vm1477, %vm1541
      %vm1574 = vmand %vm1478, %vm1542
      %vm1575 = vmand %vm1479, %vm1543
      %vm1576 = vmand %vm1480, %vm1544
      %vm1577 = vmand %vm1481, %vm1545
      %vm1578 = vmand %vm1482, %vm1546
      %vm1579 = vmand %vm1483, %vm1547
      %vm1580 = vmand %vm1484, %vm1548
      %vm1581 = vmand %vm1485, %vm1549
      %vm1582 = vmand %vm1486, %vm1550
      %vm1583 = vmand %vm1487, %vm1551
      %vm1584 = vmand %vm1488, %vm1552
      %vm1585 = vmand %vm1489, %vm1553
      %vm1586 = vmand %vm1490, %vm1554
      %vm1587 = vmand %vm1491, %vm1555
      %vm1588 = vmand %vm1492, %vm1556
      %vm1589 = vmand %vm1493, %vm1557
      %vm1590 = vmand %vm1494, %vm1558
      %vm1591 = vmand %vm1495, %vm1559
      %vm1592 = vmand %vm1496, %vm1560
      %vm1593 = vmand %vm1497, %vm1561
      %vm1594 = vmand %vm1498, %vm1562
      %vm1595 = vmand %vm1499, %vm1563
      %vm1596 = vmand %vm1500, %vm1564
      %vm1597 = vmand %vm1501, %vm1565
      %vm1598 = vcmp.lt.s32.totalorder %v1502, 256
      %vm1599 = vcmp.lt.s32.totalorder %v1503, 256
      %vm1600 = vcmp.lt.s32.totalorder %v1504, 256
      %vm1601 = vcmp.lt.s32.totalorder %v1505, 256
      %vm1602 = vcmp.lt.s32.totalorder %v1506, 256
      %vm1603 = vcmp.lt.s32.totalorder %v1507, 256
      %vm1604 = vcmp.lt.s32.totalorder %v1508, 256
      %vm1605 = vcmp.lt.s32.totalorder %v1509, 256
      %vm1606 = vcmp.lt.s32.totalorder %v1510, 256
      %vm1607 = vcmp.lt.s32.totalorder %v1511, 256
      %vm1608 = vcmp.lt.s32.totalorder %v1512, 256
      %vm1609 = vcmp.lt.s32.totalorder %v1513, 256
      %vm1610 = vcmp.lt.s32.totalorder %v1514, 256
      %vm1611 = vcmp.lt.s32.totalorder %v1515, 256
      %vm1612 = vcmp.lt.s32.totalorder %v1516, 256
      %vm1613 = vcmp.lt.s32.totalorder %v1517, 256
      %vm1614 = vcmp.lt.s32.totalorder %v1518, 256
      %vm1615 = vcmp.lt.s32.totalorder %v1519, 256
      %vm1616 = vcmp.lt.s32.totalorder %v1520, 256
      %vm1617 = vcmp.lt.s32.totalorder %v1521, 256
      %vm1618 = vcmp.lt.s32.totalorder %v1522, 256
      %vm1619 = vcmp.lt.s32.totalorder %v1523, 256
      %vm1620 = vcmp.lt.s32.totalorder %v1524, 256
      %vm1621 = vcmp.lt.s32.totalorder %v1525, 256
      %vm1622 = vcmp.lt.s32.totalorder %v1526, 256
      %vm1623 = vcmp.lt.s32.totalorder %v1527, 256
      %vm1624 = vcmp.lt.s32.totalorder %v1528, 256
      %vm1625 = vcmp.lt.s32.totalorder %v1529, 256
      %vm1626 = vcmp.lt.s32.totalorder %v1530, 256
      %vm1627 = vcmp.lt.s32.totalorder %v1531, 256
      %vm1628 = vcmp.lt.s32.totalorder %v1532, 256
      %vm1629 = vcmp.lt.s32.totalorder %v1533, 256
      %vm1630 = vmand %vm1566, %vm1598
      %vm1631 = vmand %vm1567, %vm1599
      %vm1632 = vmand %vm1568, %vm1600
      %vm1633 = vmand %vm1569, %vm1601
      %vm1634 = vmand %vm1570, %vm1602
      %vm1635 = vmand %vm1571, %vm1603
      %vm1636 = vmand %vm1572, %vm1604
      %vm1637 = vmand %vm1573, %vm1605
      %vm1638 = vmand %vm1574, %vm1606
      %vm1639 = vmand %vm1575, %vm1607
      %vm1640 = vmand %vm1576, %vm1608
      %vm1641 = vmand %vm1577, %vm1609
      %vm1642 = vmand %vm1578, %vm1610
      %vm1643 = vmand %vm1579, %vm1611
      %vm1644 = vmand %vm1580, %vm1612
      %vm1645 = vmand %vm1581, %vm1613
      %vm1646 = vmand %vm1582, %vm1614
      %vm1647 = vmand %vm1583, %vm1615
      %vm1648 = vmand %vm1584, %vm1616
      %vm1649 = vmand %vm1585, %vm1617
      %vm1650 = vmand %vm1586, %vm1618
      %vm1651 = vmand %vm1587, %vm1619
      %vm1652 = vmand %vm1588, %vm1620
      %vm1653 = vmand %vm1589, %vm1621
      %vm1654 = vmand %vm1590, %vm1622
      %vm1655 = vmand %vm1591, %vm1623
      %vm1656 = vmand %vm1592, %vm1624
      %vm1657 = vmand %vm1593, %vm1625
      %vm1658 = vmand %vm1594, %vm1626
      %vm1659 = vmand %vm1595, %vm1627
      %vm1660 = vmand %vm1596, %vm1628
      %vm1661 = vmand %vm1597, %vm1629
      %v1662 = vsel %vm1630, 1, 0
      %v1663 = vsel %vm1631, 1, 0
      %v1664 = vsel %vm1632, 1, 0
      %v1665 = vsel %vm1633, 1, 0
      %v1666 = vsel %vm1634, 1, 0
      %v1667 = vsel %vm1635, 1, 0
      %v1668 = vsel %vm1636, 1, 0
      %v1669 = vsel %vm1637, 1, 0
      %v1670 = vsel %vm1638, 1, 0
      %v1671 = vsel %vm1639, 1, 0
      %v1672 = vsel %vm1640, 1, 0
      %v1673 = vsel %vm1641, 1, 0
      %v1674 = vsel %vm1642, 1, 0
      %v1675 = vsel %vm1643, 1, 0
      %v1676 = vsel %vm1644, 1, 0
      %v1677 = vsel %vm1645, 1, 0
      %v1678 = vsel %vm1646, 1, 0
      %v1679 = vsel %vm1647, 1, 0
      %v1680 = vsel %vm1648, 1, 0
      %v1681 = vsel %vm1649, 1, 0
      %v1682 = vsel %vm1650, 1, 0
      %v1683 = vsel %vm1651, 1, 0
      %v1684 = vsel %vm1652, 1, 0
      %v1685 = vsel %vm1653, 1, 0
      %v1686 = vsel %vm1654, 1, 0
      %v1687 = vsel %vm1655, 1, 0
      %v1688 = vsel %vm1656, 1, 0
      %v1689 = vsel %vm1657, 1, 0
      %v1690 = vsel %vm1658, 1, 0
      %v1691 = vsel %vm1659, 1, 0
      %v1692 = vsel %vm1660, 1, 0
      %v1693 = vsel %vm1661, 1, 0
      %v1694 = vcvt.s32.f32 %v1662
      %v1695 = vcvt.s32.f32 %v1663
      %v1696 = vcvt.s32.f32 %v1664
      %v1697 = vcvt.s32.f32 %v1665
      %v1698 = vcvt.s32.f32 %v1666
      %v1699 = vcvt.s32.f32 %v1667
      %v1700 = vcvt.s32.f32 %v1668
      %v1701 = vcvt.s32.f32 %v1669
      %v1702 = vcvt.s32.f32 %v1670
      %v1703 = vcvt.s32.f32 %v1671
      %v1704 = vcvt.s32.f32 %v1672
      %v1705 = vcvt.s32.f32 %v1673
      %v1706 = vcvt.s32.f32 %v1674
      %v1707 = vcvt.s32.f32 %v1675
      %v1708 = vcvt.s32.f32 %v1676
      %v1709 = vcvt.s32.f32 %v1677
      %v1710 = vcvt.s32.f32 %v1678
      %v1711 = vcvt.s32.f32 %v1679
      %v1712 = vcvt.s32.f32 %v1680
      %v1713 = vcvt.s32.f32 %v1681
      %v1714 = vcvt.s32.f32 %v1682
      %v1715 = vcvt.s32.f32 %v1683
      %v1716 = vcvt.s32.f32 %v1684
      %v1717 = vcvt.s32.f32 %v1685
      %v1718 = vcvt.s32.f32 %v1686
      %v1719 = vcvt.s32.f32 %v1687
      %v1720 = vcvt.s32.f32 %v1688
      %v1721 = vcvt.s32.f32 %v1689
      %v1722 = vcvt.s32.f32 %v1690
      %v1723 = vcvt.s32.f32 %v1691
      %v1724 = vcvt.s32.f32 %v1692
      %v1725 = vcvt.s32.f32 %v1693
      %v1726 = vmul.f32 %v1343, %v1694
      %v1727 = vmul.f32 %v1342, %v1695
      %v1728 = vmul.f32 %v1373, %v1696
      %v1729 = vmul.f32 %v1372, %v1697
      %v1730 = vmul.f32 %v1371, %v1698
      %v1731 = vmul.f32 %v1370, %v1699
      %v1732 = vmul.f32 %v1369, %v1700
      %v1733 = vmul.f32 %v1368, %v1701
      %v1734 = vmul.f32 %v1367, %v1702
      %v1735 = vmul.f32 %v1366, %v1703
      %v1736 = vmul.f32 %v1365, %v1704
      %v1737 = vmul.f32 %v1364, %v1705
      %v1738 = vmul.f32 %v1363, %v1706
      %v1739 = vmul.f32 %v1362, %v1707
      %v1740 = vmul.f32 %v1361, %v1708
      %v1741 = vmul.f32 %v1360, %v1709
      %v1742 = vmul.f32 %v1359, %v1710
      %v1743 = vmul.f32 %v1358, %v1711
      %v1744 = vmul.f32 %v1357, %v1712
      %v1745 = vmul.f32 %v1356, %v1713
      %v1746 = vmul.f32 %v1355, %v1714
      %v1747 = vmul.f32 %v1354, %v1715
      %v1748 = vmul.f32 %v1353, %v1716
      %v1749 = vmul.f32 %v1352, %v1717
      %v1750 = vmul.f32 %v1351, %v1718
      %v1751 = vmul.f32 %v1350, %v1719
      %v1752 = vmul.f32 %v1349, %v1720
      %v1753 = vmul.f32 %v1348, %v1721
      %v1754 = vmul.f32 %v1347, %v1722
      %v1755 = vmul.f32 %v1346, %v1723
      %v1756 = vmul.f32 %v1345, %v1724
      %v1757 = vmul.f32 %v1344, %v1725
      %vm1758 = vcmp.ge.s32.totalorder %v1277, 0
      %vm1759 = vcmp.ge.s32.totalorder %v1278, 0
      %vm1760 = vcmp.ge.s32.totalorder %v1279, 0
      %vm1761 = vcmp.ge.s32.totalorder %v1280, 0
      %vm1762 = vcmp.ge.s32.totalorder %v1281, 0
      %vm1763 = vcmp.ge.s32.totalorder %v1282, 0
      %vm1764 = vcmp.ge.s32.totalorder %v1283, 0
      %vm1765 = vcmp.ge.s32.totalorder %v1284, 0
      %vm1766 = vcmp.ge.s32.totalorder %v1285, 0
      %vm1767 = vcmp.ge.s32.totalorder %v1286, 0
      %vm1768 = vcmp.ge.s32.totalorder %v1287, 0
      %vm1769 = vcmp.ge.s32.totalorder %v1288, 0
      %vm1770 = vcmp.ge.s32.totalorder %v1289, 0
      %vm1771 = vcmp.ge.s32.totalorder %v1290, 0
      %vm1772 = vcmp.ge.s32.totalorder %v1291, 0
      %vm1773 = vcmp.ge.s32.totalorder %v1292, 0
      %vm1774 = vcmp.ge.s32.totalorder %v1293, 0
      %vm1775 = vcmp.ge.s32.totalorder %v1294, 0
      %vm1776 = vcmp.ge.s32.totalorder %v1295, 0
      %vm1777 = vcmp.ge.s32.totalorder %v1296, 0
      %vm1778 = vcmp.ge.s32.totalorder %v1297, 0
      %vm1779 = vcmp.ge.s32.totalorder %v1298, 0
      %vm1780 = vcmp.ge.s32.totalorder %v1299, 0
      %vm1781 = vcmp.ge.s32.totalorder %v1300, 0
      %vm1782 = vcmp.ge.s32.totalorder %v1301, 0
      %vm1783 = vcmp.ge.s32.totalorder %v1302, 0
      %vm1784 = vcmp.ge.s32.totalorder %v1303, 0
      %vm1785 = vcmp.ge.s32.totalorder %v1304, 0
      %vm1786 = vcmp.ge.s32.totalorder %v1305, 0
      %vm1787 = vcmp.ge.s32.totalorder %v1306, 0
      %vm1788 = vcmp.ge.s32.totalorder %v1307, 0
      %vm1789 = vcmp.ge.s32.totalorder %v1308, 0
      %vm1790 = vcmp.lt.s32.totalorder %v1277, 16
      %vm1791 = vcmp.lt.s32.totalorder %v1278, 16
      %vm1792 = vcmp.lt.s32.totalorder %v1279, 16
      %vm1793 = vcmp.lt.s32.totalorder %v1280, 16
      %vm1794 = vcmp.lt.s32.totalorder %v1281, 16
      %vm1795 = vcmp.lt.s32.totalorder %v1282, 16
      %vm1796 = vcmp.lt.s32.totalorder %v1283, 16
      %vm1797 = vcmp.lt.s32.totalorder %v1284, 16
      %vm1798 = vcmp.lt.s32.totalorder %v1285, 16
      %vm1799 = vcmp.lt.s32.totalorder %v1286, 16
      %vm1800 = vcmp.lt.s32.totalorder %v1287, 16
      %vm1801 = vcmp.lt.s32.totalorder %v1288, 16
      %vm1802 = vcmp.lt.s32.totalorder %v1289, 16
      %vm1803 = vcmp.lt.s32.totalorder %v1290, 16
      %vm1804 = vcmp.lt.s32.totalorder %v1291, 16
      %vm1805 = vcmp.lt.s32.totalorder %v1292, 16
      %vm1806 = vcmp.lt.s32.totalorder %v1293, 16
      %vm1807 = vcmp.lt.s32.totalorder %v1294, 16
      %vm1808 = vcmp.lt.s32.totalorder %v1295, 16
      %vm1809 = vcmp.lt.s32.totalorder %v1296, 16
      %vm1810 = vcmp.lt.s32.totalorder %v1297, 16
      %vm1811 = vcmp.lt.s32.totalorder %v1298, 16
      %vm1812 = vcmp.lt.s32.totalorder %v1299, 16
      %vm1813 = vcmp.lt.s32.totalorder %v1300, 16
      %vm1814 = vcmp.lt.s32.totalorder %v1301, 16
      %vm1815 = vcmp.lt.s32.totalorder %v1302, 16
      %vm1816 = vcmp.lt.s32.totalorder %v1303, 16
      %vm1817 = vcmp.lt.s32.totalorder %v1304, 16
      %vm1818 = vcmp.lt.s32.totalorder %v1305, 16
      %vm1819 = vcmp.lt.s32.totalorder %v1306, 16
      %vm1820 = vcmp.lt.s32.totalorder %v1307, 16
      %vm1821 = vcmp.lt.s32.totalorder %v1308, 16
      %vm1822 = vmand %vm1758, %vm1790
      %vm1823 = vmand %vm1759, %vm1791
      %vm1824 = vmand %vm1760, %vm1792
      %vm1825 = vmand %vm1761, %vm1793
      %vm1826 = vmand %vm1762, %vm1794
      %vm1827 = vmand %vm1763, %vm1795
      %vm1828 = vmand %vm1764, %vm1796
      %vm1829 = vmand %vm1765, %vm1797
      %vm1830 = vmand %vm1766, %vm1798
      %vm1831 = vmand %vm1767, %vm1799
      %vm1832 = vmand %vm1768, %vm1800
      %vm1833 = vmand %vm1769, %vm1801
      %vm1834 = vmand %vm1770, %vm1802
      %vm1835 = vmand %vm1771, %vm1803
      %vm1836 = vmand %vm1772, %vm1804
      %vm1837 = vmand %vm1773, %vm1805
      %vm1838 = vmand %vm1774, %vm1806
      %vm1839 = vmand %vm1775, %vm1807
      %vm1840 = vmand %vm1776, %vm1808
      %vm1841 = vmand %vm1777, %vm1809
      %vm1842 = vmand %vm1778, %vm1810
      %vm1843 = vmand %vm1779, %vm1811
      %vm1844 = vmand %vm1780, %vm1812
      %vm1845 = vmand %vm1781, %vm1813
      %vm1846 = vmand %vm1782, %vm1814
      %vm1847 = vmand %vm1783, %vm1815
      %vm1848 = vmand %vm1784, %vm1816
      %vm1849 = vmand %vm1785, %vm1817
      %vm1850 = vmand %vm1786, %vm1818
      %vm1851 = vmand %vm1787, %vm1819
      %vm1852 = vmand %vm1788, %vm1820
      %vm1853 = vmand %vm1789, %vm1821
      %vm1854 = vmand %vm1822, %vm1534
      %vm1855 = vmand %vm1823, %vm1535
      %vm1856 = vmand %vm1824, %vm1536
      %vm1857 = vmand %vm1825, %vm1537
      %vm1858 = vmand %vm1826, %vm1538
      %vm1859 = vmand %vm1827, %vm1539
      %vm1860 = vmand %vm1828, %vm1540
      %vm1861 = vmand %vm1829, %vm1541
      %vm1862 = vmand %vm1830, %vm1542
      %vm1863 = vmand %vm1831, %vm1543
      %vm1864 = vmand %vm1832, %vm1544
      %vm1865 = vmand %vm1833, %vm1545
      %vm1866 = vmand %vm1834, %vm1546
      %vm1867 = vmand %vm1835, %vm1547
      %vm1868 = vmand %vm1836, %vm1548
      %vm1869 = vmand %vm1837, %vm1549
      %vm1870 = vmand %vm1838, %vm1550
      %vm1871 = vmand %vm1839, %vm1551
      %vm1872 = vmand %vm1840, %vm1552
      %vm1873 = vmand %vm1841, %vm1553
      %vm1874 = vmand %vm1842, %vm1554
      %vm1875 = vmand %vm1843, %vm1555
      %vm1876 = vmand %vm1844, %vm1556
      %vm1877 = vmand %vm1845, %vm1557
      %vm1878 = vmand %vm1846, %vm1558
      %vm1879 = vmand %vm1847, %vm1559
      %vm1880 = vmand %vm1848, %vm1560
      %vm1881 = vmand %vm1849, %vm1561
      %vm1882 = vmand %vm1850, %vm1562
      %vm1883 = vmand %vm1851, %vm1563
      %vm1884 = vmand %vm1852, %vm1564
      %vm1885 = vmand %vm1853, %vm1565
      %vm1886 = vmand %vm1854, %vm1598
      %vm1887 = vmand %vm1855, %vm1599
      %vm1888 = vmand %vm1856, %vm1600
      %vm1889 = vmand %vm1857, %vm1601
      %vm1890 = vmand %vm1858, %vm1602
      %vm1891 = vmand %vm1859, %vm1603
      %vm1892 = vmand %vm1860, %vm1604
      %vm1893 = vmand %vm1861, %vm1605
      %vm1894 = vmand %vm1862, %vm1606
      %vm1895 = vmand %vm1863, %vm1607
      %vm1896 = vmand %vm1864, %vm1608
      %vm1897 = vmand %vm1865, %vm1609
      %vm1898 = vmand %vm1866, %vm1610
      %vm1899 = vmand %vm1867, %vm1611
      %vm1900 = vmand %vm1868, %vm1612
      %vm1901 = vmand %vm1869, %vm1613
      %vm1902 = vmand %vm1870, %vm1614
      %vm1903 = vmand %vm1871, %vm1615
      %vm1904 = vmand %vm1872, %vm1616
      %vm1905 = vmand %vm1873, %vm1617
      %vm1906 = vmand %vm1874, %vm1618
      %vm1907 = vmand %vm1875, %vm1619
      %vm1908 = vmand %vm1876, %vm1620
      %vm1909 = vmand %vm1877, %vm1621
      %vm1910 = vmand %vm1878, %vm1622
      %vm1911 = vmand %vm1879, %vm1623
      %vm1912 = vmand %vm1880, %vm1624
      %vm1913 = vmand %vm1881, %vm1625
      %vm1914 = vmand %vm1882, %vm1626
      %vm1915 = vmand %vm1883, %vm1627
      %vm1916 = vmand %vm1884, %vm1628
      %vm1917 = vmand %vm1885, %vm1629
      %v1918 = vsel %vm1886, 1, 0
      %v1919 = vsel %vm1887, 1, 0
      %v1920 = vsel %vm1888, 1, 0
      %v1921 = vsel %vm1889, 1, 0
      %v1922 = vsel %vm1890, 1, 0
      %v1923 = vsel %vm1891, 1, 0
      %v1924 = vsel %vm1892, 1, 0
      %v1925 = vsel %vm1893, 1, 0
      %v1926 = vsel %vm1894, 1, 0
      %v1927 = vsel %vm1895, 1, 0
      %v1928 = vsel %vm1896, 1, 0
      %v1929 = vsel %vm1897, 1, 0
      %v1930 = vsel %vm1898, 1, 0
      %v1931 = vsel %vm1899, 1, 0
      %v1932 = vsel %vm1900, 1, 0
      %v1933 = vsel %vm1901, 1, 0
      %v1934 = vsel %vm1902, 1, 0
      %v1935 = vsel %vm1903, 1, 0
      %v1936 = vsel %vm1904, 1, 0
      %v1937 = vsel %vm1905, 1, 0
      %v1938 = vsel %vm1906, 1, 0
      %v1939 = vsel %vm1907, 1, 0
      %v1940 = vsel %vm1908, 1, 0
      %v1941 = vsel %vm1909, 1, 0
      %v1942 = vsel %vm1910, 1, 0
      %v1943 = vsel %vm1911, 1, 0
      %v1944 = vsel %vm1912, 1, 0
      %v1945 = vsel %vm1913, 1, 0
      %v1946 = vsel %vm1914, 1, 0
      %v1947 = vsel %vm1915, 1, 0
      %v1948 = vsel %vm1916, 1, 0
      %v1949 = vsel %vm1917, 1, 0
      %v1950 = vcvt.s32.f32 %v1918
      %v1951 = vcvt.s32.f32 %v1919
      %v1952 = vcvt.s32.f32 %v1920
      %v1953 = vcvt.s32.f32 %v1921
      %v1954 = vcvt.s32.f32 %v1922
      %v1955 = vcvt.s32.f32 %v1923
      %v1956 = vcvt.s32.f32 %v1924
      %v1957 = vcvt.s32.f32 %v1925
      %v1958 = vcvt.s32.f32 %v1926
      %v1959 = vcvt.s32.f32 %v1927
      %v1960 = vcvt.s32.f32 %v1928
      %v1961 = vcvt.s32.f32 %v1929
      %v1962 = vcvt.s32.f32 %v1930
      %v1963 = vcvt.s32.f32 %v1931
      %v1964 = vcvt.s32.f32 %v1932
      %v1965 = vcvt.s32.f32 %v1933
      %v1966 = vcvt.s32.f32 %v1934
      %v1967 = vcvt.s32.f32 %v1935
      %v1968 = vcvt.s32.f32 %v1936
      %v1969 = vcvt.s32.f32 %v1937
      %v1970 = vcvt.s32.f32 %v1938
      %v1971 = vcvt.s32.f32 %v1939
      %v1972 = vcvt.s32.f32 %v1940
      %v1973 = vcvt.s32.f32 %v1941
      %v1974 = vcvt.s32.f32 %v1942
      %v1975 = vcvt.s32.f32 %v1943
      %v1976 = vcvt.s32.f32 %v1944
      %v1977 = vcvt.s32.f32 %v1945
      %v1978 = vcvt.s32.f32 %v1946
      %v1979 = vcvt.s32.f32 %v1947
      %v1980 = vcvt.s32.f32 %v1948
      %v1981 = vcvt.s32.f32 %v1949
      %v1982 = vmul.f32 %v890, %v1950
      %v1983 = vmul.f32 %v891, %v1951
      %v1984 = vmul.f32 %v860, %v1952
      %v1985 = vmul.f32 %v861, %v1953
      %v1986 = vmul.f32 %v862, %v1954
      %v1987 = vmul.f32 %v863, %v1955
      %v1988 = vmul.f32 %v864, %v1956
      %v1989 = vmul.f32 %v865, %v1957
      %v1990 = vmul.f32 %v866, %v1958
      %v1991 = vmul.f32 %v867, %v1959
      %v1992 = vmul.f32 %v868, %v1960
      %v1993 = vmul.f32 %v869, %v1961
      %v1994 = vmul.f32 %v870, %v1962
      %v1995 = vmul.f32 %v871, %v1963
      %v1996 = vmul.f32 %v872, %v1964
      %v1997 = vmul.f32 %v873, %v1965
      %v1998 = vmul.f32 %v874, %v1966
      %v1999 = vmul.f32 %v875, %v1967
      %v2000 = vmul.f32 %v876, %v1968
      %v2001 = vmul.f32 %v877, %v1969
      %v2002 = vmul.f32 %v878, %v1970
      %v2003 = vmul.f32 %v879, %v1971
      %v2004 = vmul.f32 %v880, %v1972
      %v2005 = vmul.f32 %v881, %v1973
      %v2006 = vmul.f32 %v882, %v1974
      %v2007 = vmul.f32 %v883, %v1975
      %v2008 = vmul.f32 %v884, %v1976
      %v2009 = vmul.f32 %v885, %v1977
      %v2010 = vmul.f32 %v886, %v1978
      %v2011 = vmul.f32 %v887, %v1979
      %v2012 = vmul.f32 %v888, %v1980
      %v2013 = vmul.f32 %v889, %v1981
      %v2014 = vrot.slane %v860, 1
      %v2015 = vrot.slane %v861, 1
      %v2016 = vrot.slane %v862, 1
      %v2017 = vrot.slane %v863, 1
      %v2018 = vrot.slane %v864, 1
      %v2019 = vrot.slane %v865, 1
      %v2020 = vrot.slane %v866, 1
      %v2021 = vrot.slane %v867, 1
      %v2022 = vrot.slane %v868, 1
      %v2023 = vrot.slane %v869, 1
      %v2024 = vrot.slane %v870, 1
      %v2025 = vrot.slane %v871, 1
      %v2026 = vrot.slane %v872, 1
      %v2027 = vrot.slane %v873, 1
      %v2028 = vrot.slane %v874, 1
      %v2029 = vrot.slane %v875, 1
      %v2030 = vrot.slane %v876, 1
      %v2031 = vrot.slane %v877, 1
      %v2032 = vrot.slane %v878, 1
      %v2033 = vrot.slane %v879, 1
      %v2034 = vrot.slane %v880, 1
      %v2035 = vrot.slane %v881, 1
      %v2036 = vrot.slane %v882, 1
      %v2037 = vrot.slane %v883, 1
      %v2038 = vrot.slane %v884, 1
      %v2039 = vrot.slane %v885, 1
      %v2040 = vrot.slane %v886, 1
      %v2041 = vrot.slane %v887, 1
      %v2042 = vrot.slane %v888, 1
      %v2043 = vrot.slane %v889, 1
      %v2044 = vrot.slane %v890, 1
      %v2045 = vrot.slane %v891, 1
      %vm2046 = vcmp.lt.s32.totalorder %v893, 7
      %v2047 = vsel %vm2046, %v2044, %v2045
      %v2048 = vsel %vm2046, %v2043, %v2044
      %v2049 = vsel %vm2046, %v2042, %v2043
      %v2050 = vsel %vm2046, %v2041, %v2042
      %v2051 = vsel %vm2046, %v2040, %v2041
      %v2052 = vsel %vm2046, %v2039, %v2040
      %v2053 = vsel %vm2046, %v2038, %v2039
      %v2054 = vsel %vm2046, %v2037, %v2038
      %v2055 = vsel %vm2046, %v2036, %v2037
      %v2056 = vsel %vm2046, %v2035, %v2036
      %v2057 = vsel %vm2046, %v2034, %v2035
      %v2058 = vsel %vm2046, %v2033, %v2034
      %v2059 = vsel %vm2046, %v2032, %v2033
      %v2060 = vsel %vm2046, %v2031, %v2032
      %v2061 = vsel %vm2046, %v2030, %v2031
      %v2062 = vsel %vm2046, %v2029, %v2030
      %v2063 = vsel %vm2046, %v2028, %v2029
      %v2064 = vsel %vm2046, %v2027, %v2028
      %v2065 = vsel %vm2046, %v2026, %v2027
      %v2066 = vsel %vm2046, %v2025, %v2026
      %v2067 = vsel %vm2046, %v2024, %v2025
      %v2068 = vsel %vm2046, %v2023, %v2024
      %v2069 = vsel %vm2046, %v2022, %v2023
      %v2070 = vsel %vm2046, %v2021, %v2022
      %v2071 = vsel %vm2046, %v2020, %v2021
      %v2072 = vsel %vm2046, %v2019, %v2020
      %v2073 = vsel %vm2046, %v2018, %v2019
      %v2074 = vsel %vm2046, %v2017, %v2018
      %v2075 = vsel %vm2046, %v2016, %v2017
      %v2076 = vsel %vm2046, %v2015, %v2016
      %v2077 = vsel %vm2046, %v2014, %v2015
      %v2078 = vsel %vm2046, %v2045, %v2014
      %v2079 = vadd.s32 %v1277, 1
      %v2080 = vadd.s32 %v1278, 1
      %v2081 = vadd.s32 %v1279, 1
      %v2082 = vadd.s32 %v1280, 1
      %v2083 = vadd.s32 %v1281, 1
      %v2084 = vadd.s32 %v1282, 1
      %v2085 = vadd.s32 %v1283, 1
      %v2086 = vadd.s32 %v1284, 1
      %v2087 = vadd.s32 %v1285, 1
      %v2088 = vadd.s32 %v1286, 1
      %v2089 = vadd.s32 %v1287, 1
      %v2090 = vadd.s32 %v1288, 1
      %v2091 = vadd.s32 %v1289, 1
      %v2092 = vadd.s32 %v1290, 1
      %v2093 = vadd.s32 %v1291, 1
      %v2094 = vadd.s32 %v1292, 1
      %v2095 = vadd.s32 %v1293, 1
      %v2096 = vadd.s32 %v1294, 1
      %v2097 = vadd.s32 %v1295, 1
      %v2098 = vadd.s32 %v1296, 1
      %v2099 = vadd.s32 %v1297, 1
      %v2100 = vadd.s32 %v1298, 1
      %v2101 = vadd.s32 %v1299, 1
      %v2102 = vadd.s32 %v1300, 1
      %v2103 = vadd.s32 %v1301, 1
      %v2104 = vadd.s32 %v1302, 1
      %v2105 = vadd.s32 %v1303, 1
      %v2106 = vadd.s32 %v1304, 1
      %v2107 = vadd.s32 %v1305, 1
      %v2108 = vadd.s32 %v1306, 1
      %v2109 = vadd.s32 %v1307, 1
      %v2110 = vadd.s32 %v1308, 1
      %vm2111 = vcmp.ge.s32.totalorder %v2079, 0
      %vm2112 = vcmp.ge.s32.totalorder %v2080, 0
      %vm2113 = vcmp.ge.s32.totalorder %v2081, 0
      %vm2114 = vcmp.ge.s32.totalorder %v2082, 0
      %vm2115 = vcmp.ge.s32.totalorder %v2083, 0
      %vm2116 = vcmp.ge.s32.totalorder %v2084, 0
      %vm2117 = vcmp.ge.s32.totalorder %v2085, 0
      %vm2118 = vcmp.ge.s32.totalorder %v2086, 0
      %vm2119 = vcmp.ge.s32.totalorder %v2087, 0
      %vm2120 = vcmp.ge.s32.totalorder %v2088, 0
      %vm2121 = vcmp.ge.s32.totalorder %v2089, 0
      %vm2122 = vcmp.ge.s32.totalorder %v2090, 0
      %vm2123 = vcmp.ge.s32.totalorder %v2091, 0
      %vm2124 = vcmp.ge.s32.totalorder %v2092, 0
      %vm2125 = vcmp.ge.s32.totalorder %v2093, 0
      %vm2126 = vcmp.ge.s32.totalorder %v2094, 0
      %vm2127 = vcmp.ge.s32.totalorder %v2095, 0
      %vm2128 = vcmp.ge.s32.totalorder %v2096, 0
      %vm2129 = vcmp.ge.s32.totalorder %v2097, 0
      %vm2130 = vcmp.ge.s32.totalorder %v2098, 0
      %vm2131 = vcmp.ge.s32.totalorder %v2099, 0
      %vm2132 = vcmp.ge.s32.totalorder %v2100, 0
      %vm2133 = vcmp.ge.s32.totalorder %v2101, 0
      %vm2134 = vcmp.ge.s32.totalorder %v2102, 0
      %vm2135 = vcmp.ge.s32.totalorder %v2103, 0
      %vm2136 = vcmp.ge.s32.totalorder %v2104, 0
      %vm2137 = vcmp.ge.s32.totalorder %v2105, 0
      %vm2138 = vcmp.ge.s32.totalorder %v2106, 0
      %vm2139 = vcmp.ge.s32.totalorder %v2107, 0
      %vm2140 = vcmp.ge.s32.totalorder %v2108, 0
      %vm2141 = vcmp.ge.s32.totalorder %v2109, 0
      %vm2142 = vcmp.ge.s32.totalorder %v2110, 0
      %vm2143 = vcmp.lt.s32.totalorder %v2079, 16
      %vm2144 = vcmp.lt.s32.totalorder %v2080, 16
      %vm2145 = vcmp.lt.s32.totalorder %v2081, 16
      %vm2146 = vcmp.lt.s32.totalorder %v2082, 16
      %vm2147 = vcmp.lt.s32.totalorder %v2083, 16
      %vm2148 = vcmp.lt.s32.totalorder %v2084, 16
      %vm2149 = vcmp.lt.s32.totalorder %v2085, 16
      %vm2150 = vcmp.lt.s32.totalorder %v2086, 16
      %vm2151 = vcmp.lt.s32.totalorder %v2087, 16
      %vm2152 = vcmp.lt.s32.totalorder %v2088, 16
      %vm2153 = vcmp.lt.s32.totalorder %v2089, 16
      %vm2154 = vcmp.lt.s32.totalorder %v2090, 16
      %vm2155 = vcmp.lt.s32.totalorder %v2091, 16
      %vm2156 = vcmp.lt.s32.totalorder %v2092, 16
      %vm2157 = vcmp.lt.s32.totalorder %v2093, 16
      %vm2158 = vcmp.lt.s32.totalorder %v2094, 16
      %vm2159 = vcmp.lt.s32.totalorder %v2095, 16
      %vm2160 = vcmp.lt.s32.totalorder %v2096, 16
      %vm2161 = vcmp.lt.s32.totalorder %v2097, 16
      %vm2162 = vcmp.lt.s32.totalorder %v2098, 16
      %vm2163 = vcmp.lt.s32.totalorder %v2099, 16
      %vm2164 = vcmp.lt.s32.totalorder %v2100, 16
      %vm2165 = vcmp.lt.s32.totalorder %v2101, 16
      %vm2166 = vcmp.lt.s32.totalorder %v2102, 16
      %vm2167 = vcmp.lt.s32.totalorder %v2103, 16
      %vm2168 = vcmp.lt.s32.totalorder %v2104, 16
      %vm2169 = vcmp.lt.s32.totalorder %v2105, 16
      %vm2170 = vcmp.lt.s32.totalorder %v2106, 16
      %vm2171 = vcmp.lt.s32.totalorder %v2107, 16
      %vm2172 = vcmp.lt.s32.totalorder %v2108, 16
      %vm2173 = vcmp.lt.s32.totalorder %v2109, 16
      %vm2174 = vcmp.lt.s32.totalorder %v2110, 16
      %vm2175 = vmand %vm2111, %vm2143
      %vm2176 = vmand %vm2112, %vm2144
      %vm2177 = vmand %vm2113, %vm2145
      %vm2178 = vmand %vm2114, %vm2146
      %vm2179 = vmand %vm2115, %vm2147
      %vm2180 = vmand %vm2116, %vm2148
      %vm2181 = vmand %vm2117, %vm2149
      %vm2182 = vmand %vm2118, %vm2150
      %vm2183 = vmand %vm2119, %vm2151
      %vm2184 = vmand %vm2120, %vm2152
      %vm2185 = vmand %vm2121, %vm2153
      %vm2186 = vmand %vm2122, %vm2154
      %vm2187 = vmand %vm2123, %vm2155
      %vm2188 = vmand %vm2124, %vm2156
      %vm2189 = vmand %vm2125, %vm2157
      %vm2190 = vmand %vm2126, %vm2158
      %vm2191 = vmand %vm2127, %vm2159
      %vm2192 = vmand %vm2128, %vm2160
      %vm2193 = vmand %vm2129, %vm2161
      %vm2194 = vmand %vm2130, %vm2162
      %vm2195 = vmand %vm2131, %vm2163
      %vm2196 = vmand %vm2132, %vm2164
      %vm2197 = vmand %vm2133, %vm2165
      %vm2198 = vmand %vm2134, %vm2166
      %vm2199 = vmand %vm2135, %vm2167
      %vm2200 = vmand %vm2136, %vm2168
      %vm2201 = vmand %vm2137, %vm2169
      %vm2202 = vmand %vm2138, %vm2170
      %vm2203 = vmand %vm2139, %vm2171
      %vm2204 = vmand %vm2140, %vm2172
      %vm2205 = vmand %vm2141, %vm2173
      %vm2206 = vmand %vm2142, %vm2174
      %vm2207 = vmand %vm2175, %vm1534
      %vm2208 = vmand %vm2176, %vm1535
      %vm2209 = vmand %vm2177, %vm1536
      %vm2210 = vmand %vm2178, %vm1537
      %vm2211 = vmand %vm2179, %vm1538
      %vm2212 = vmand %vm2180, %vm1539
      %vm2213 = vmand %vm2181, %vm1540
      %vm2214 = vmand %vm2182, %vm1541
      %vm2215 = vmand %vm2183, %vm1542
      %vm2216 = vmand %vm2184, %vm1543
      %vm2217 = vmand %vm2185, %vm1544
      %vm2218 = vmand %vm2186, %vm1545
      %vm2219 = vmand %vm2187, %vm1546
      %vm2220 = vmand %vm2188, %vm1547
      %vm2221 = vmand %vm2189, %vm1548
      %vm2222 = vmand %vm2190, %vm1549
      %vm2223 = vmand %vm2191, %vm1550
      %vm2224 = vmand %vm2192, %vm1551
      %vm2225 = vmand %vm2193, %vm1552
      %vm2226 = vmand %vm2194, %vm1553
      %vm2227 = vmand %vm2195, %vm1554
      %vm2228 = vmand %vm2196, %vm1555
      %vm2229 = vmand %vm2197, %vm1556
      %vm2230 = vmand %vm2198, %vm1557
      %vm2231 = vmand %vm2199, %vm1558
      %vm2232 = vmand %vm2200, %vm1559
      %vm2233 = vmand %vm2201, %vm1560
      %vm2234 = vmand %vm2202, %vm1561
      %vm2235 = vmand %vm2203, %vm1562
      %vm2236 = vmand %vm2204, %vm1563
      %vm2237 = vmand %vm2205, %vm1564
      %vm2238 = vmand %vm2206, %vm1565
      %vm2239 = vmand %vm2207, %vm1598
      %vm2240 = vmand %vm2208, %vm1599
      %vm2241 = vmand %vm2209, %vm1600
      %vm2242 = vmand %vm2210, %vm1601
      %vm2243 = vmand %vm2211, %vm1602
      %vm2244 = vmand %vm2212, %vm1603
      %vm2245 = vmand %vm2213, %vm1604
      %vm2246 = vmand %vm2214, %vm1605
      %vm2247 = vmand %vm2215, %vm1606
      %vm2248 = vmand %vm2216, %vm1607
      %vm2249 = vmand %vm2217, %vm1608
      %vm2250 = vmand %vm2218, %vm1609
      %vm2251 = vmand %vm2219, %vm1610
      %vm2252 = vmand %vm2220, %vm1611
      %vm2253 = vmand %vm2221, %vm1612
      %vm2254 = vmand %vm2222, %vm1613
      %vm2255 = vmand %vm2223, %vm1614
      %vm2256 = vmand %vm2224, %vm1615
      %vm2257 = vmand %vm2225, %vm1616
      %vm2258 = vmand %vm2226, %vm1617
      %vm2259 = vmand %vm2227, %vm1618
      %vm2260 = vmand %vm2228, %vm1619
      %vm2261 = vmand %vm2229, %vm1620
      %vm2262 = vmand %vm2230, %vm1621
      %vm2263 = vmand %vm2231, %vm1622
      %vm2264 = vmand %vm2232, %vm1623
      %vm2265 = vmand %vm2233, %vm1624
      %vm2266 = vmand %vm2234, %vm1625
      %vm2267 = vmand %vm2235, %vm1626
      %vm2268 = vmand %vm2236, %vm1627
      %vm2269 = vmand %vm2237, %vm1628
      %vm2270 = vmand %vm2238, %vm1629
      %v2271 = vsel %vm2239, 1, 0
      %v2272 = vsel %vm2240, 1, 0
      %v2273 = vsel %vm2241, 1, 0
      %v2274 = vsel %vm2242, 1, 0
      %v2275 = vsel %vm2243, 1, 0
      %v2276 = vsel %vm2244, 1, 0
      %v2277 = vsel %vm2245, 1, 0
      %v2278 = vsel %vm2246, 1, 0
      %v2279 = vsel %vm2247, 1, 0
      %v2280 = vsel %vm2248, 1, 0
      %v2281 = vsel %vm2249, 1, 0
      %v2282 = vsel %vm2250, 1, 0
      %v2283 = vsel %vm2251, 1, 0
      %v2284 = vsel %vm2252, 1, 0
      %v2285 = vsel %vm2253, 1, 0
      %v2286 = vsel %vm2254, 1, 0
      %v2287 = vsel %vm2255, 1, 0
      %v2288 = vsel %vm2256, 1, 0
      %v2289 = vsel %vm2257, 1, 0
      %v2290 = vsel %vm2258, 1, 0
      %v2291 = vsel %vm2259, 1, 0
      %v2292 = vsel %vm2260, 1, 0
      %v2293 = vsel %vm2261, 1, 0
      %v2294 = vsel %vm2262, 1, 0
      %v2295 = vsel %vm2263, 1, 0
      %v2296 = vsel %vm2264, 1, 0
      %v2297 = vsel %vm2265, 1, 0
      %v2298 = vsel %vm2266, 1, 0
      %v2299 = vsel %vm2267, 1, 0
      %v2300 = vsel %vm2268, 1, 0
      %v2301 = vsel %vm2269, 1, 0
      %v2302 = vsel %vm2270, 1, 0
      %v2303 = vcvt.s32.f32 %v2271
      %v2304 = vcvt.s32.f32 %v2272
      %v2305 = vcvt.s32.f32 %v2273
      %v2306 = vcvt.s32.f32 %v2274
      %v2307 = vcvt.s32.f32 %v2275
      %v2308 = vcvt.s32.f32 %v2276
      %v2309 = vcvt.s32.f32 %v2277
      %v2310 = vcvt.s32.f32 %v2278
      %v2311 = vcvt.s32.f32 %v2279
      %v2312 = vcvt.s32.f32 %v2280
      %v2313 = vcvt.s32.f32 %v2281
      %v2314 = vcvt.s32.f32 %v2282
      %v2315 = vcvt.s32.f32 %v2283
      %v2316 = vcvt.s32.f32 %v2284
      %v2317 = vcvt.s32.f32 %v2285
      %v2318 = vcvt.s32.f32 %v2286
      %v2319 = vcvt.s32.f32 %v2287
      %v2320 = vcvt.s32.f32 %v2288
      %v2321 = vcvt.s32.f32 %v2289
      %v2322 = vcvt.s32.f32 %v2290
      %v2323 = vcvt.s32.f32 %v2291
      %v2324 = vcvt.s32.f32 %v2292
      %v2325 = vcvt.s32.f32 %v2293
      %v2326 = vcvt.s32.f32 %v2294
      %v2327 = vcvt.s32.f32 %v2295
      %v2328 = vcvt.s32.f32 %v2296
      %v2329 = vcvt.s32.f32 %v2297
      %v2330 = vcvt.s32.f32 %v2298
      %v2331 = vcvt.s32.f32 %v2299
      %v2332 = vcvt.s32.f32 %v2300
      %v2333 = vcvt.s32.f32 %v2301
      %v2334 = vcvt.s32.f32 %v2302
      %v2335 = vmul.f32 %v2047, %v2303
      %v2336 = vmul.f32 %v2078, %v2304
      %v2337 = vmul.f32 %v2077, %v2305
      %v2338 = vmul.f32 %v2076, %v2306
      %v2339 = vmul.f32 %v2075, %v2307
      %v2340 = vmul.f32 %v2074, %v2308
      %v2341 = vmul.f32 %v2073, %v2309
      %v2342 = vmul.f32 %v2072, %v2310
      %v2343 = vmul.f32 %v2071, %v2311
      %v2344 = vmul.f32 %v2070, %v2312
      %v2345 = vmul.f32 %v2069, %v2313
      %v2346 = vmul.f32 %v2068, %v2314
      %v2347 = vmul.f32 %v2067, %v2315
      %v2348 = vmul.f32 %v2066, %v2316
      %v2349 = vmul.f32 %v2065, %v2317
      %v2350 = vmul.f32 %v2064, %v2318
      %v2351 = vmul.f32 %v2063, %v2319
      %v2352 = vmul.f32 %v2062, %v2320
      %v2353 = vmul.f32 %v2061, %v2321
      %v2354 = vmul.f32 %v2060, %v2322
      %v2355 = vmul.f32 %v2059, %v2323
      %v2356 = vmul.f32 %v2058, %v2324
      %v2357 = vmul.f32 %v2057, %v2325
      %v2358 = vmul.f32 %v2056, %v2326
      %v2359 = vmul.f32 %v2055, %v2327
      %v2360 = vmul.f32 %v2054, %v2328
      %v2361 = vmul.f32 %v2053, %v2329
      %v2362 = vmul.f32 %v2052, %v2330
      %v2363 = vmul.f32 %v2051, %v2331
      %v2364 = vmul.f32 %v2050, %v2332
      %v2365 = vmul.f32 %v2049, %v2333
      %v2366 = vmul.f32 %v2048, %v2334
      %vm2367 = vcmp.ge.s32.totalorder %v893, 0
      %vm2368 = vcmp.ge.s32.totalorder %v894, 0
      %vm2369 = vcmp.ge.s32.totalorder %v895, 0
      %vm2370 = vcmp.ge.s32.totalorder %v896, 0
      %vm2371 = vcmp.ge.s32.totalorder %v897, 0
      %vm2372 = vcmp.ge.s32.totalorder %v898, 0
      %vm2373 = vcmp.ge.s32.totalorder %v899, 0
      %vm2374 = vcmp.ge.s32.totalorder %v900, 0
      %vm2375 = vcmp.ge.s32.totalorder %v901, 0
      %vm2376 = vcmp.ge.s32.totalorder %v902, 0
      %vm2377 = vcmp.ge.s32.totalorder %v903, 0
      %vm2378 = vcmp.ge.s32.totalorder %v904, 0
      %vm2379 = vcmp.ge.s32.totalorder %v905, 0
      %vm2380 = vcmp.ge.s32.totalorder %v906, 0
      %vm2381 = vcmp.ge.s32.totalorder %v907, 0
      %vm2382 = vcmp.ge.s32.totalorder %v908, 0
      %vm2383 = vcmp.ge.s32.totalorder %v909, 0
      %vm2384 = vcmp.ge.s32.totalorder %v910, 0
      %vm2385 = vcmp.ge.s32.totalorder %v911, 0
      %vm2386 = vcmp.ge.s32.totalorder %v912, 0
      %vm2387 = vcmp.ge.s32.totalorder %v913, 0
      %vm2388 = vcmp.ge.s32.totalorder %v914, 0
      %vm2389 = vcmp.ge.s32.totalorder %v915, 0
      %vm2390 = vcmp.ge.s32.totalorder %v916, 0
      %vm2391 = vcmp.ge.s32.totalorder %v917, 0
      %vm2392 = vcmp.ge.s32.totalorder %v918, 0
      %vm2393 = vcmp.ge.s32.totalorder %v919, 0
      %vm2394 = vcmp.ge.s32.totalorder %v920, 0
      %vm2395 = vcmp.ge.s32.totalorder %v921, 0
      %vm2396 = vcmp.ge.s32.totalorder %v922, 0
      %vm2397 = vcmp.ge.s32.totalorder %v923, 0
      %vm2398 = vcmp.ge.s32.totalorder %v924, 0
      %vm2399 = vmand %vm1470, %vm2367
      %vm2400 = vmand %vm1471, %vm2368
      %vm2401 = vmand %vm1472, %vm2369
      %vm2402 = vmand %vm1473, %vm2370
      %vm2403 = vmand %vm1474, %vm2371
      %vm2404 = vmand %vm1475, %vm2372
      %vm2405 = vmand %vm1476, %vm2373
      %vm2406 = vmand %vm1477, %vm2374
      %vm2407 = vmand %vm1478, %vm2375
      %vm2408 = vmand %vm1479, %vm2376
      %vm2409 = vmand %vm1480, %vm2377
      %vm2410 = vmand %vm1481, %vm2378
      %vm2411 = vmand %vm1482, %vm2379
      %vm2412 = vmand %vm1483, %vm2380
      %vm2413 = vmand %vm1484, %vm2381
      %vm2414 = vmand %vm1485, %vm2382
      %vm2415 = vmand %vm1486, %vm2383
      %vm2416 = vmand %vm1487, %vm2384
      %vm2417 = vmand %vm1488, %vm2385
      %vm2418 = vmand %vm1489, %vm2386
      %vm2419 = vmand %vm1490, %vm2387
      %vm2420 = vmand %vm1491, %vm2388
      %vm2421 = vmand %vm1492, %vm2389
      %vm2422 = vmand %vm1493, %vm2390
      %vm2423 = vmand %vm1494, %vm2391
      %vm2424 = vmand %vm1495, %vm2392
      %vm2425 = vmand %vm1496, %vm2393
      %vm2426 = vmand %vm1497, %vm2394
      %vm2427 = vmand %vm1498, %vm2395
      %vm2428 = vmand %vm1499, %vm2396
      %vm2429 = vmand %vm1500, %vm2397
      %vm2430 = vmand %vm1501, %vm2398
      %vm2431 = vcmp.lt.s32.totalorder %v893, 256
      %vm2432 = vcmp.lt.s32.totalorder %v894, 256
      %vm2433 = vcmp.lt.s32.totalorder %v895, 256
      %vm2434 = vcmp.lt.s32.totalorder %v896, 256
      %vm2435 = vcmp.lt.s32.totalorder %v897, 256
      %vm2436 = vcmp.lt.s32.totalorder %v898, 256
      %vm2437 = vcmp.lt.s32.totalorder %v899, 256
      %vm2438 = vcmp.lt.s32.totalorder %v900, 256
      %vm2439 = vcmp.lt.s32.totalorder %v901, 256
      %vm2440 = vcmp.lt.s32.totalorder %v902, 256
      %vm2441 = vcmp.lt.s32.totalorder %v903, 256
      %vm2442 = vcmp.lt.s32.totalorder %v904, 256
      %vm2443 = vcmp.lt.s32.totalorder %v905, 256
      %vm2444 = vcmp.lt.s32.totalorder %v906, 256
      %vm2445 = vcmp.lt.s32.totalorder %v907, 256
      %vm2446 = vcmp.lt.s32.totalorder %v908, 256
      %vm2447 = vcmp.lt.s32.totalorder %v909, 256
      %vm2448 = vcmp.lt.s32.totalorder %v910, 256
      %vm2449 = vcmp.lt.s32.totalorder %v911, 256
      %vm2450 = vcmp.lt.s32.totalorder %v912, 256
      %vm2451 = vcmp.lt.s32.totalorder %v913, 256
      %vm2452 = vcmp.lt.s32.totalorder %v914, 256
      %vm2453 = vcmp.lt.s32.totalorder %v915, 256
      %vm2454 = vcmp.lt.s32.totalorder %v916, 256
      %vm2455 = vcmp.lt.s32.totalorder %v917, 256
      %vm2456 = vcmp.lt.s32.totalorder %v918, 256
      %vm2457 = vcmp.lt.s32.totalorder %v919, 256
      %vm2458 = vcmp.lt.s32.totalorder %v920, 256
      %vm2459 = vcmp.lt.s32.totalorder %v921, 256
      %vm2460 = vcmp.lt.s32.totalorder %v922, 256
      %vm2461 = vcmp.lt.s32.totalorder %v923, 256
      %vm2462 = vcmp.lt.s32.totalorder %v924, 256
      %vm2463 = vmand %vm2399, %vm2431
      %vm2464 = vmand %vm2400, %vm2432
      %vm2465 = vmand %vm2401, %vm2433
      %vm2466 = vmand %vm2402, %vm2434
      %vm2467 = vmand %vm2403, %vm2435
      %vm2468 = vmand %vm2404, %vm2436
      %vm2469 = vmand %vm2405, %vm2437
      %vm2470 = vmand %vm2406, %vm2438
      %vm2471 = vmand %vm2407, %vm2439
      %vm2472 = vmand %vm2408, %vm2440
      %vm2473 = vmand %vm2409, %vm2441
      %vm2474 = vmand %vm2410, %vm2442
      %vm2475 = vmand %vm2411, %vm2443
      %vm2476 = vmand %vm2412, %vm2444
      %vm2477 = vmand %vm2413, %vm2445
      %vm2478 = vmand %vm2414, %vm2446
      %vm2479 = vmand %vm2415, %vm2447
      %vm2480 = vmand %vm2416, %vm2448
      %vm2481 = vmand %vm2417, %vm2449
      %vm2482 = vmand %vm2418, %vm2450
      %vm2483 = vmand %vm2419, %vm2451
      %vm2484 = vmand %vm2420, %vm2452
      %vm2485 = vmand %vm2421, %vm2453
      %vm2486 = vmand %vm2422, %vm2454
      %vm2487 = vmand %vm2423, %vm2455
      %vm2488 = vmand %vm2424, %vm2456
      %vm2489 = vmand %vm2425, %vm2457
      %vm2490 = vmand %vm2426, %vm2458
      %vm2491 = vmand %vm2427, %vm2459
      %vm2492 = vmand %vm2428, %vm2460
      %vm2493 = vmand %vm2429, %vm2461
      %vm2494 = vmand %vm2430, %vm2462
      %v2495 = vsel %vm2463, 1, 0
      %v2496 = vsel %vm2464, 1, 0
      %v2497 = vsel %vm2465, 1, 0
      %v2498 = vsel %vm2466, 1, 0
      %v2499 = vsel %vm2467, 1, 0
      %v2500 = vsel %vm2468, 1, 0
      %v2501 = vsel %vm2469, 1, 0
      %v2502 = vsel %vm2470, 1, 0
      %v2503 = vsel %vm2471, 1, 0
      %v2504 = vsel %vm2472, 1, 0
      %v2505 = vsel %vm2473, 1, 0
      %v2506 = vsel %vm2474, 1, 0
      %v2507 = vsel %vm2475, 1, 0
      %v2508 = vsel %vm2476, 1, 0
      %v2509 = vsel %vm2477, 1, 0
      %v2510 = vsel %vm2478, 1, 0
      %v2511 = vsel %vm2479, 1, 0
      %v2512 = vsel %vm2480, 1, 0
      %v2513 = vsel %vm2481, 1, 0
      %v2514 = vsel %vm2482, 1, 0
      %v2515 = vsel %vm2483, 1, 0
      %v2516 = vsel %vm2484, 1, 0
      %v2517 = vsel %vm2485, 1, 0
      %v2518 = vsel %vm2486, 1, 0
      %v2519 = vsel %vm2487, 1, 0
      %v2520 = vsel %vm2488, 1, 0
      %v2521 = vsel %vm2489, 1, 0
      %v2522 = vsel %vm2490, 1, 0
      %v2523 = vsel %vm2491, 1, 0
      %v2524 = vsel %vm2492, 1, 0
      %v2525 = vsel %vm2493, 1, 0
      %v2526 = vsel %vm2494, 1, 0
      %v2527 = vcvt.s32.f32 %v2495
      %v2528 = vcvt.s32.f32 %v2496
      %v2529 = vcvt.s32.f32 %v2497
      %v2530 = vcvt.s32.f32 %v2498
      %v2531 = vcvt.s32.f32 %v2499
      %v2532 = vcvt.s32.f32 %v2500
      %v2533 = vcvt.s32.f32 %v2501
      %v2534 = vcvt.s32.f32 %v2502
      %v2535 = vcvt.s32.f32 %v2503
      %v2536 = vcvt.s32.f32 %v2504
      %v2537 = vcvt.s32.f32 %v2505
      %v2538 = vcvt.s32.f32 %v2506
      %v2539 = vcvt.s32.f32 %v2507
      %v2540 = vcvt.s32.f32 %v2508
      %v2541 = vcvt.s32.f32 %v2509
      %v2542 = vcvt.s32.f32 %v2510
      %v2543 = vcvt.s32.f32 %v2511
      %v2544 = vcvt.s32.f32 %v2512
      %v2545 = vcvt.s32.f32 %v2513
      %v2546 = vcvt.s32.f32 %v2514
      %v2547 = vcvt.s32.f32 %v2515
      %v2548 = vcvt.s32.f32 %v2516
      %v2549 = vcvt.s32.f32 %v2517
      %v2550 = vcvt.s32.f32 %v2518
      %v2551 = vcvt.s32.f32 %v2519
      %v2552 = vcvt.s32.f32 %v2520
      %v2553 = vcvt.s32.f32 %v2521
      %v2554 = vcvt.s32.f32 %v2522
      %v2555 = vcvt.s32.f32 %v2523
      %v2556 = vcvt.s32.f32 %v2524
      %v2557 = vcvt.s32.f32 %v2525
      %v2558 = vcvt.s32.f32 %v2526
      %v2559 = vmul.f32 %v1373, %v2527
      %v2560 = vmul.f32 %v1372, %v2528
      %v2561 = vmul.f32 %v1371, %v2529
      %v2562 = vmul.f32 %v1370, %v2530
      %v2563 = vmul.f32 %v1369, %v2531
      %v2564 = vmul.f32 %v1368, %v2532
      %v2565 = vmul.f32 %v1367, %v2533
      %v2566 = vmul.f32 %v1366, %v2534
      %v2567 = vmul.f32 %v1365, %v2535
      %v2568 = vmul.f32 %v1364, %v2536
      %v2569 = vmul.f32 %v1363, %v2537
      %v2570 = vmul.f32 %v1362, %v2538
      %v2571 = vmul.f32 %v1361, %v2539
      %v2572 = vmul.f32 %v1360, %v2540
      %v2573 = vmul.f32 %v1359, %v2541
      %v2574 = vmul.f32 %v1358, %v2542
      %v2575 = vmul.f32 %v1357, %v2543
      %v2576 = vmul.f32 %v1356, %v2544
      %v2577 = vmul.f32 %v1355, %v2545
      %v2578 = vmul.f32 %v1354, %v2546
      %v2579 = vmul.f32 %v1353, %v2547
      %v2580 = vmul.f32 %v1352, %v2548
      %v2581 = vmul.f32 %v1351, %v2549
      %v2582 = vmul.f32 %v1350, %v2550
      %v2583 = vmul.f32 %v1349, %v2551
      %v2584 = vmul.f32 %v1348, %v2552
      %v2585 = vmul.f32 %v1347, %v2553
      %v2586 = vmul.f32 %v1346, %v2554
      %v2587 = vmul.f32 %v1345, %v2555
      %v2588 = vmul.f32 %v1344, %v2556
      %v2589 = vmul.f32 %v1343, %v2557
      %v2590 = vmul.f32 %v1342, %v2558
      %vm2591 = vmand %vm2175, %vm2367
      %vm2592 = vmand %vm2176, %vm2368
      %vm2593 = vmand %vm2177, %vm2369
      %vm2594 = vmand %vm2178, %vm2370
      %vm2595 = vmand %vm2179, %vm2371
      %vm2596 = vmand %vm2180, %vm2372
      %vm2597 = vmand %vm2181, %vm2373
      %vm2598 = vmand %vm2182, %vm2374
      %vm2599 = vmand %vm2183, %vm2375
      %vm2600 = vmand %vm2184, %vm2376
      %vm2601 = vmand %vm2185, %vm2377
      %vm2602 = vmand %vm2186, %vm2378
      %vm2603 = vmand %vm2187, %vm2379
      %vm2604 = vmand %vm2188, %vm2380
      %vm2605 = vmand %vm2189, %vm2381
      %vm2606 = vmand %vm2190, %vm2382
      %vm2607 = vmand %vm2191, %vm2383
      %vm2608 = vmand %vm2192, %vm2384
      %vm2609 = vmand %vm2193, %vm2385
      %vm2610 = vmand %vm2194, %vm2386
      %vm2611 = vmand %vm2195, %vm2387
      %vm2612 = vmand %vm2196, %vm2388
      %vm2613 = vmand %vm2197, %vm2389
      %vm2614 = vmand %vm2198, %vm2390
      %vm2615 = vmand %vm2199, %vm2391
      %vm2616 = vmand %vm2200, %vm2392
      %vm2617 = vmand %vm2201, %vm2393
      %vm2618 = vmand %vm2202, %vm2394
      %vm2619 = vmand %vm2203, %vm2395
      %vm2620 = vmand %vm2204, %vm2396
      %vm2621 = vmand %vm2205, %vm2397
      %vm2622 = vmand %vm2206, %vm2398
      %vm2623 = vmand %vm2591, %vm2431
      %vm2624 = vmand %vm2592, %vm2432
      %vm2625 = vmand %vm2593, %vm2433
      %vm2626 = vmand %vm2594, %vm2434
      %vm2627 = vmand %vm2595, %vm2435
      %vm2628 = vmand %vm2596, %vm2436
      %vm2629 = vmand %vm2597, %vm2437
      %vm2630 = vmand %vm2598, %vm2438
      %vm2631 = vmand %vm2599, %vm2439
      %vm2632 = vmand %vm2600, %vm2440
      %vm2633 = vmand %vm2601, %vm2441
      %vm2634 = vmand %vm2602, %vm2442
      %vm2635 = vmand %vm2603, %vm2443
      %vm2636 = vmand %vm2604, %vm2444
      %vm2637 = vmand %vm2605, %vm2445
      %vm2638 = vmand %vm2606, %vm2446
      %vm2639 = vmand %vm2607, %vm2447
      %vm2640 = vmand %vm2608, %vm2448
      %vm2641 = vmand %vm2609, %vm2449
      %vm2642 = vmand %vm2610, %vm2450
      %vm2643 = vmand %vm2611, %vm2451
      %vm2644 = vmand %vm2612, %vm2452
      %vm2645 = vmand %vm2613, %vm2453
      %vm2646 = vmand %vm2614, %vm2454
      %vm2647 = vmand %vm2615, %vm2455
      %vm2648 = vmand %vm2616, %vm2456
      %vm2649 = vmand %vm2617, %vm2457
      %vm2650 = vmand %vm2618, %vm2458
      %vm2651 = vmand %vm2619, %vm2459
      %vm2652 = vmand %vm2620, %vm2460
      %vm2653 = vmand %vm2621, %vm2461
      %vm2654 = vmand %vm2622, %vm2462
      %v2655 = vsel %vm2623, 1, 0
      %v2656 = vsel %vm2624, 1, 0
      %v2657 = vsel %vm2625, 1, 0
      %v2658 = vsel %vm2626, 1, 0
      %v2659 = vsel %vm2627, 1, 0
      %v2660 = vsel %vm2628, 1, 0
      %v2661 = vsel %vm2629, 1, 0
      %v2662 = vsel %vm2630, 1, 0
      %v2663 = vsel %vm2631, 1, 0
      %v2664 = vsel %vm2632, 1, 0
      %v2665 = vsel %vm2633, 1, 0
      %v2666 = vsel %vm2634, 1, 0
      %v2667 = vsel %vm2635, 1, 0
      %v2668 = vsel %vm2636, 1, 0
      %v2669 = vsel %vm2637, 1, 0
      %v2670 = vsel %vm2638, 1, 0
      %v2671 = vsel %vm2639, 1, 0
      %v2672 = vsel %vm2640, 1, 0
      %v2673 = vsel %vm2641, 1, 0
      %v2674 = vsel %vm2642, 1, 0
      %v2675 = vsel %vm2643, 1, 0
      %v2676 = vsel %vm2644, 1, 0
      %v2677 = vsel %vm2645, 1, 0
      %v2678 = vsel %vm2646, 1, 0
      %v2679 = vsel %vm2647, 1, 0
      %v2680 = vsel %vm2648, 1, 0
      %v2681 = vsel %vm2649, 1, 0
      %v2682 = vsel %vm2650, 1, 0
      %v2683 = vsel %vm2651, 1, 0
      %v2684 = vsel %vm2652, 1, 0
      %v2685 = vsel %vm2653, 1, 0
      %v2686 = vsel %vm2654, 1, 0
      %v2687 = vcvt.s32.f32 %v2655
      %v2688 = vcvt.s32.f32 %v2656
      %v2689 = vcvt.s32.f32 %v2657
      %v2690 = vcvt.s32.f32 %v2658
      %v2691 = vcvt.s32.f32 %v2659
      %v2692 = vcvt.s32.f32 %v2660
      %v2693 = vcvt.s32.f32 %v2661
      %v2694 = vcvt.s32.f32 %v2662
      %v2695 = vcvt.s32.f32 %v2663
      %v2696 = vcvt.s32.f32 %v2664
      %v2697 = vcvt.s32.f32 %v2665
      %v2698 = vcvt.s32.f32 %v2666
      %v2699 = vcvt.s32.f32 %v2667
      %v2700 = vcvt.s32.f32 %v2668
      %v2701 = vcvt.s32.f32 %v2669
      %v2702 = vcvt.s32.f32 %v2670
      %v2703 = vcvt.s32.f32 %v2671
      %v2704 = vcvt.s32.f32 %v2672
      %v2705 = vcvt.s32.f32 %v2673
      %v2706 = vcvt.s32.f32 %v2674
      %v2707 = vcvt.s32.f32 %v2675
      %v2708 = vcvt.s32.f32 %v2676
      %v2709 = vcvt.s32.f32 %v2677
      %v2710 = vcvt.s32.f32 %v2678
      %v2711 = vcvt.s32.f32 %v2679
      %v2712 = vcvt.s32.f32 %v2680
      %v2713 = vcvt.s32.f32 %v2681
      %v2714 = vcvt.s32.f32 %v2682
      %v2715 = vcvt.s32.f32 %v2683
      %v2716 = vcvt.s32.f32 %v2684
      %v2717 = vcvt.s32.f32 %v2685
      %v2718 = vcvt.s32.f32 %v2686
      %v2719 = vmul.f32 %v2077, %v2687
      %v2720 = vmul.f32 %v2076, %v2688
      %v2721 = vmul.f32 %v2075, %v2689
      %v2722 = vmul.f32 %v2074, %v2690
      %v2723 = vmul.f32 %v2073, %v2691
      %v2724 = vmul.f32 %v2072, %v2692
      %v2725 = vmul.f32 %v2071, %v2693
      %v2726 = vmul.f32 %v2070, %v2694
      %v2727 = vmul.f32 %v2069, %v2695
      %v2728 = vmul.f32 %v2068, %v2696
      %v2729 = vmul.f32 %v2067, %v2697
      %v2730 = vmul.f32 %v2066, %v2698
      %v2731 = vmul.f32 %v2065, %v2699
      %v2732 = vmul.f32 %v2064, %v2700
      %v2733 = vmul.f32 %v2063, %v2701
      %v2734 = vmul.f32 %v2062, %v2702
      %v2735 = vmul.f32 %v2061, %v2703
      %v2736 = vmul.f32 %v2060, %v2704
      %v2737 = vmul.f32 %v2059, %v2705
      %v2738 = vmul.f32 %v2058, %v2706
      %v2739 = vmul.f32 %v2057, %v2707
      %v2740 = vmul.f32 %v2056, %v2708
      %v2741 = vmul.f32 %v2055, %v2709
      %v2742 = vmul.f32 %v2054, %v2710
      %v2743 = vmul.f32 %v2053, %v2711
      %v2744 = vmul.f32 %v2052, %v2712
      %v2745 = vmul.f32 %v2051, %v2713
      %v2746 = vmul.f32 %v2050, %v2714
      %v2747 = vmul.f32 %v2049, %v2715
      %v2748 = vmul.f32 %v2048, %v2716
      %v2749 = vmul.f32 %v2047, %v2717
      %v2750 = vmul.f32 %v2078, %v2718
      %v2751 = vadd.s32 %v894, 16
      %v2752 = vadd.s32 %v895, 16
      %v2753 = vadd.s32 %v896, 16
      %v2754 = vadd.s32 %v897, 16
      %v2755 = vadd.s32 %v898, 16
      %v2756 = vadd.s32 %v899, 16
      %v2757 = vadd.s32 %v900, 16
      %v2758 = vadd.s32 %v901, 16
      %v2759 = vadd.s32 %v902, 16
      %v2760 = vadd.s32 %v903, 16
      %v2761 = vadd.s32 %v904, 16
      %v2762 = vadd.s32 %v905, 16
      %v2763 = vadd.s32 %v906, 16
      %v2764 = vadd.s32 %v907, 16
      %v2765 = vadd.s32 %v908, 16
      %v2766 = vadd.s32 %v909, 16
      %v2767 = vadd.s32 %v910, 16
      %v2768 = vadd.s32 %v911, 16
      %v2769 = vadd.s32 %v912, 16
      %v2770 = vadd.s32 %v913, 16
      %v2771 = vadd.s32 %v914, 16
      %v2772 = vadd.s32 %v915, 16
      %v2773 = vadd.s32 %v916, 16
      %v2774 = vadd.s32 %v917, 16
      %v2775 = vadd.s32 %v918, 16
      %v2776 = vadd.s32 %v919, 16
      %v2777 = vadd.s32 %v920, 16
      %v2778 = vadd.s32 %v921, 16
      %v2779 = vadd.s32 %v922, 16
      %v2780 = vadd.s32 %v923, 16
      %v2781 = vadd.s32 %v924, 16
      %vm2782 = vcmp.ge.s32.totalorder %v2751, 0
      %vm2783 = vcmp.ge.s32.totalorder %v2752, 0
      %vm2784 = vcmp.ge.s32.totalorder %v2753, 0
      %vm2785 = vcmp.ge.s32.totalorder %v2754, 0
      %vm2786 = vcmp.ge.s32.totalorder %v2755, 0
      %vm2787 = vcmp.ge.s32.totalorder %v2756, 0
      %vm2788 = vcmp.ge.s32.totalorder %v2757, 0
      %vm2789 = vcmp.ge.s32.totalorder %v2758, 0
      %vm2790 = vcmp.ge.s32.totalorder %v2759, 0
      %vm2791 = vcmp.ge.s32.totalorder %v2760, 0
      %vm2792 = vcmp.ge.s32.totalorder %v2761, 0
      %vm2793 = vcmp.ge.s32.totalorder %v2762, 0
      %vm2794 = vcmp.ge.s32.totalorder %v2763, 0
      %vm2795 = vcmp.ge.s32.totalorder %v2764, 0
      %vm2796 = vcmp.ge.s32.totalorder %v2765, 0
      %vm2797 = vcmp.ge.s32.totalorder %v2766, 0
      %vm2798 = vcmp.ge.s32.totalorder %v2767, 0
      %vm2799 = vcmp.ge.s32.totalorder %v2768, 0
      %vm2800 = vcmp.ge.s32.totalorder %v2769, 0
      %vm2801 = vcmp.ge.s32.totalorder %v2770, 0
      %vm2802 = vcmp.ge.s32.totalorder %v2771, 0
      %vm2803 = vcmp.ge.s32.totalorder %v2772, 0
      %vm2804 = vcmp.ge.s32.totalorder %v2773, 0
      %vm2805 = vcmp.ge.s32.totalorder %v2774, 0
      %vm2806 = vcmp.ge.s32.totalorder %v2775, 0
      %vm2807 = vcmp.ge.s32.totalorder %v2776, 0
      %vm2808 = vcmp.ge.s32.totalorder %v2777, 0
      %vm2809 = vcmp.ge.s32.totalorder %v2778, 0
      %vm2810 = vcmp.ge.s32.totalorder %v2779, 0
      %vm2811 = vcmp.ge.s32.totalorder %v2780, 0
      %vm2812 = vcmp.ge.s32.totalorder %v2781, 0
      %vm2813 = vmand %vm1470, %vm2369
      %vm2814 = vmand %vm1471, %vm2782
      %vm2815 = vmand %vm1472, %vm2783
      %vm2816 = vmand %vm1473, %vm2784
      %vm2817 = vmand %vm1474, %vm2785
      %vm2818 = vmand %vm1475, %vm2786
      %vm2819 = vmand %vm1476, %vm2787
      %vm2820 = vmand %vm1477, %vm2788
      %vm2821 = vmand %vm1478, %vm2789
      %vm2822 = vmand %vm1479, %vm2790
      %vm2823 = vmand %vm1480, %vm2791
      %vm2824 = vmand %vm1481, %vm2792
      %vm2825 = vmand %vm1482, %vm2793
      %vm2826 = vmand %vm1483, %vm2794
      %vm2827 = vmand %vm1484, %vm2795
      %vm2828 = vmand %vm1485, %vm2796
      %vm2829 = vmand %vm1486, %vm2797
      %vm2830 = vmand %vm1487, %vm2798
      %vm2831 = vmand %vm1488, %vm2799
      %vm2832 = vmand %vm1489, %vm2800
      %vm2833 = vmand %vm1490, %vm2801
      %vm2834 = vmand %vm1491, %vm2802
      %vm2835 = vmand %vm1492, %vm2803
      %vm2836 = vmand %vm1493, %vm2804
      %vm2837 = vmand %vm1494, %vm2805
      %vm2838 = vmand %vm1495, %vm2806
      %vm2839 = vmand %vm1496, %vm2807
      %vm2840 = vmand %vm1497, %vm2808
      %vm2841 = vmand %vm1498, %vm2809
      %vm2842 = vmand %vm1499, %vm2810
      %vm2843 = vmand %vm1500, %vm2811
      %vm2844 = vmand %vm1501, %vm2812
      %vm2845 = vcmp.lt.s32.totalorder %v2751, 256
      %vm2846 = vcmp.lt.s32.totalorder %v2752, 256
      %vm2847 = vcmp.lt.s32.totalorder %v2753, 256
      %vm2848 = vcmp.lt.s32.totalorder %v2754, 256
      %vm2849 = vcmp.lt.s32.totalorder %v2755, 256
      %vm2850 = vcmp.lt.s32.totalorder %v2756, 256
      %vm2851 = vcmp.lt.s32.totalorder %v2757, 256
      %vm2852 = vcmp.lt.s32.totalorder %v2758, 256
      %vm2853 = vcmp.lt.s32.totalorder %v2759, 256
      %vm2854 = vcmp.lt.s32.totalorder %v2760, 256
      %vm2855 = vcmp.lt.s32.totalorder %v2761, 256
      %vm2856 = vcmp.lt.s32.totalorder %v2762, 256
      %vm2857 = vcmp.lt.s32.totalorder %v2763, 256
      %vm2858 = vcmp.lt.s32.totalorder %v2764, 256
      %vm2859 = vcmp.lt.s32.totalorder %v2765, 256
      %vm2860 = vcmp.lt.s32.totalorder %v2766, 256
      %vm2861 = vcmp.lt.s32.totalorder %v2767, 256
      %vm2862 = vcmp.lt.s32.totalorder %v2768, 256
      %vm2863 = vcmp.lt.s32.totalorder %v2769, 256
      %vm2864 = vcmp.lt.s32.totalorder %v2770, 256
      %vm2865 = vcmp.lt.s32.totalorder %v2771, 256
      %vm2866 = vcmp.lt.s32.totalorder %v2772, 256
      %vm2867 = vcmp.lt.s32.totalorder %v2773, 256
      %vm2868 = vcmp.lt.s32.totalorder %v2774, 256
      %vm2869 = vcmp.lt.s32.totalorder %v2775, 256
      %vm2870 = vcmp.lt.s32.totalorder %v2776, 256
      %vm2871 = vcmp.lt.s32.totalorder %v2777, 256
      %vm2872 = vcmp.lt.s32.totalorder %v2778, 256
      %vm2873 = vcmp.lt.s32.totalorder %v2779, 256
      %vm2874 = vcmp.lt.s32.totalorder %v2780, 256
      %vm2875 = vcmp.lt.s32.totalorder %v2781, 256
      %vm2876 = vmand %vm2813, %vm2433
      %vm2877 = vmand %vm2814, %vm2845
      %vm2878 = vmand %vm2815, %vm2846
      %vm2879 = vmand %vm2816, %vm2847
      %vm2880 = vmand %vm2817, %vm2848
      %vm2881 = vmand %vm2818, %vm2849
      %vm2882 = vmand %vm2819, %vm2850
      %vm2883 = vmand %vm2820, %vm2851
      %vm2884 = vmand %vm2821, %vm2852
      %vm2885 = vmand %vm2822, %vm2853
      %vm2886 = vmand %vm2823, %vm2854
      %vm2887 = vmand %vm2824, %vm2855
      %vm2888 = vmand %vm2825, %vm2856
      %vm2889 = vmand %vm2826, %vm2857
      %vm2890 = vmand %vm2827, %vm2858
      %vm2891 = vmand %vm2828, %vm2859
      %vm2892 = vmand %vm2829, %vm2860
      %vm2893 = vmand %vm2830, %vm2861
      %vm2894 = vmand %vm2831, %vm2862
      %vm2895 = vmand %vm2832, %vm2863
      %vm2896 = vmand %vm2833, %vm2864
      %vm2897 = vmand %vm2834, %vm2865
      %vm2898 = vmand %vm2835, %vm2866
      %vm2899 = vmand %vm2836, %vm2867
      %vm2900 = vmand %vm2837, %vm2868
      %vm2901 = vmand %vm2838, %vm2869
      %vm2902 = vmand %vm2839, %vm2870
      %vm2903 = vmand %vm2840, %vm2871
      %vm2904 = vmand %vm2841, %vm2872
      %vm2905 = vmand %vm2842, %vm2873
      %vm2906 = vmand %vm2843, %vm2874
      %vm2907 = vmand %vm2844, %vm2875
      %v2908 = vsel %vm2876, 1, 0
      %v2909 = vsel %vm2877, 1, 0
      %v2910 = vsel %vm2878, 1, 0
      %v2911 = vsel %vm2879, 1, 0
      %v2912 = vsel %vm2880, 1, 0
      %v2913 = vsel %vm2881, 1, 0
      %v2914 = vsel %vm2882, 1, 0
      %v2915 = vsel %vm2883, 1, 0
      %v2916 = vsel %vm2884, 1, 0
      %v2917 = vsel %vm2885, 1, 0
      %v2918 = vsel %vm2886, 1, 0
      %v2919 = vsel %vm2887, 1, 0
      %v2920 = vsel %vm2888, 1, 0
      %v2921 = vsel %vm2889, 1, 0
      %v2922 = vsel %vm2890, 1, 0
      %v2923 = vsel %vm2891, 1, 0
      %v2924 = vsel %vm2892, 1, 0
      %v2925 = vsel %vm2893, 1, 0
      %v2926 = vsel %vm2894, 1, 0
      %v2927 = vsel %vm2895, 1, 0
      %v2928 = vsel %vm2896, 1, 0
      %v2929 = vsel %vm2897, 1, 0
      %v2930 = vsel %vm2898, 1, 0
      %v2931 = vsel %vm2899, 1, 0
      %v2932 = vsel %vm2900, 1, 0
      %v2933 = vsel %vm2901, 1, 0
      %v2934 = vsel %vm2902, 1, 0
      %v2935 = vsel %vm2903, 1, 0
      %v2936 = vsel %vm2904, 1, 0
      %v2937 = vsel %vm2905, 1, 0
      %v2938 = vsel %vm2906, 1, 0
      %v2939 = vsel %vm2907, 1, 0
      %v2940 = vcvt.s32.f32 %v2908
      %v2941 = vcvt.s32.f32 %v2909
      %v2942 = vcvt.s32.f32 %v2910
      %v2943 = vcvt.s32.f32 %v2911
      %v2944 = vcvt.s32.f32 %v2912
      %v2945 = vcvt.s32.f32 %v2913
      %v2946 = vcvt.s32.f32 %v2914
      %v2947 = vcvt.s32.f32 %v2915
      %v2948 = vcvt.s32.f32 %v2916
      %v2949 = vcvt.s32.f32 %v2917
      %v2950 = vcvt.s32.f32 %v2918
      %v2951 = vcvt.s32.f32 %v2919
      %v2952 = vcvt.s32.f32 %v2920
      %v2953 = vcvt.s32.f32 %v2921
      %v2954 = vcvt.s32.f32 %v2922
      %v2955 = vcvt.s32.f32 %v2923
      %v2956 = vcvt.s32.f32 %v2924
      %v2957 = vcvt.s32.f32 %v2925
      %v2958 = vcvt.s32.f32 %v2926
      %v2959 = vcvt.s32.f32 %v2927
      %v2960 = vcvt.s32.f32 %v2928
      %v2961 = vcvt.s32.f32 %v2929
      %v2962 = vcvt.s32.f32 %v2930
      %v2963 = vcvt.s32.f32 %v2931
      %v2964 = vcvt.s32.f32 %v2932
      %v2965 = vcvt.s32.f32 %v2933
      %v2966 = vcvt.s32.f32 %v2934
      %v2967 = vcvt.s32.f32 %v2935
      %v2968 = vcvt.s32.f32 %v2936
      %v2969 = vcvt.s32.f32 %v2937
      %v2970 = vcvt.s32.f32 %v2938
      %v2971 = vcvt.s32.f32 %v2939
      %v2972 = vmul.f32 %v1371, %v2940
      %v2973 = vmul.f32 %v1370, %v2941
      %v2974 = vmul.f32 %v1369, %v2942
      %v2975 = vmul.f32 %v1368, %v2943
      %v2976 = vmul.f32 %v1367, %v2944
      %v2977 = vmul.f32 %v1366, %v2945
      %v2978 = vmul.f32 %v1365, %v2946
      %v2979 = vmul.f32 %v1364, %v2947
      %v2980 = vmul.f32 %v1363, %v2948
      %v2981 = vmul.f32 %v1362, %v2949
      %v2982 = vmul.f32 %v1361, %v2950
      %v2983 = vmul.f32 %v1360, %v2951
      %v2984 = vmul.f32 %v1359, %v2952
      %v2985 = vmul.f32 %v1358, %v2953
      %v2986 = vmul.f32 %v1357, %v2954
      %v2987 = vmul.f32 %v1356, %v2955
      %v2988 = vmul.f32 %v1355, %v2956
      %v2989 = vmul.f32 %v1354, %v2957
      %v2990 = vmul.f32 %v1353, %v2958
      %v2991 = vmul.f32 %v1352, %v2959
      %v2992 = vmul.f32 %v1351, %v2960
      %v2993 = vmul.f32 %v1350, %v2961
      %v2994 = vmul.f32 %v1349, %v2962
      %v2995 = vmul.f32 %v1348, %v2963
      %v2996 = vmul.f32 %v1347, %v2964
      %v2997 = vmul.f32 %v1346, %v2965
      %v2998 = vmul.f32 %v1345, %v2966
      %v2999 = vmul.f32 %v1344, %v2967
      %v3000 = vmul.f32 %v1343, %v2968
      %v3001 = vmul.f32 %v1342, %v2969
      %v3002 = vmul.f32 %v1373, %v2970
      %v3003 = vmul.f32 %v1372, %v2971
      %vm3004 = vmand %vm1822, %vm2369
      %vm3005 = vmand %vm1823, %vm2782
      %vm3006 = vmand %vm1824, %vm2783
      %vm3007 = vmand %vm1825, %vm2784
      %vm3008 = vmand %vm1826, %vm2785
      %vm3009 = vmand %vm1827, %vm2786
      %vm3010 = vmand %vm1828, %vm2787
      %vm3011 = vmand %vm1829, %vm2788
      %vm3012 = vmand %vm1830, %vm2789
      %vm3013 = vmand %vm1831, %vm2790
      %vm3014 = vmand %vm1832, %vm2791
      %vm3015 = vmand %vm1833, %vm2792
      %vm3016 = vmand %vm1834, %vm2793
      %vm3017 = vmand %vm1835, %vm2794
      %vm3018 = vmand %vm1836, %vm2795
      %vm3019 = vmand %vm1837, %vm2796
      %vm3020 = vmand %vm1838, %vm2797
      %vm3021 = vmand %vm1839, %vm2798
      %vm3022 = vmand %vm1840, %vm2799
      %vm3023 = vmand %vm1841, %vm2800
      %vm3024 = vmand %vm1842, %vm2801
      %vm3025 = vmand %vm1843, %vm2802
      %vm3026 = vmand %vm1844, %vm2803
      %vm3027 = vmand %vm1845, %vm2804
      %vm3028 = vmand %vm1846, %vm2805
      %vm3029 = vmand %vm1847, %vm2806
      %vm3030 = vmand %vm1848, %vm2807
      %vm3031 = vmand %vm1849, %vm2808
      %vm3032 = vmand %vm1850, %vm2809
      %vm3033 = vmand %vm1851, %vm2810
      %vm3034 = vmand %vm1852, %vm2811
      %vm3035 = vmand %vm1853, %vm2812
      %vm3036 = vmand %vm3004, %vm2433
      %vm3037 = vmand %vm3005, %vm2845
      %vm3038 = vmand %vm3006, %vm2846
      %vm3039 = vmand %vm3007, %vm2847
      %vm3040 = vmand %vm3008, %vm2848
      %vm3041 = vmand %vm3009, %vm2849
      %vm3042 = vmand %vm3010, %vm2850
      %vm3043 = vmand %vm3011, %vm2851
      %vm3044 = vmand %vm3012, %vm2852
      %vm3045 = vmand %vm3013, %vm2853
      %vm3046 = vmand %vm3014, %vm2854
      %vm3047 = vmand %vm3015, %vm2855
      %vm3048 = vmand %vm3016, %vm2856
      %vm3049 = vmand %vm3017, %vm2857
      %vm3050 = vmand %vm3018, %vm2858
      %vm3051 = vmand %vm3019, %vm2859
      %vm3052 = vmand %vm3020, %vm2860
      %vm3053 = vmand %vm3021, %vm2861
      %vm3054 = vmand %vm3022, %vm2862
      %vm3055 = vmand %vm3023, %vm2863
      %vm3056 = vmand %vm3024, %vm2864
      %vm3057 = vmand %vm3025, %vm2865
      %vm3058 = vmand %vm3026, %vm2866
      %vm3059 = vmand %vm3027, %vm2867
      %vm3060 = vmand %vm3028, %vm2868
      %vm3061 = vmand %vm3029, %vm2869
      %vm3062 = vmand %vm3030, %vm2870
      %vm3063 = vmand %vm3031, %vm2871
      %vm3064 = vmand %vm3032, %vm2872
      %vm3065 = vmand %vm3033, %vm2873
      %vm3066 = vmand %vm3034, %vm2874
      %vm3067 = vmand %vm3035, %vm2875
      %v3068 = vsel %vm3036, 1, 0
      %v3069 = vsel %vm3037, 1, 0
      %v3070 = vsel %vm3038, 1, 0
      %v3071 = vsel %vm3039, 1, 0
      %v3072 = vsel %vm3040, 1, 0
      %v3073 = vsel %vm3041, 1, 0
      %v3074 = vsel %vm3042, 1, 0
      %v3075 = vsel %vm3043, 1, 0
      %v3076 = vsel %vm3044, 1, 0
      %v3077 = vsel %vm3045, 1, 0
      %v3078 = vsel %vm3046, 1, 0
      %v3079 = vsel %vm3047, 1, 0
      %v3080 = vsel %vm3048, 1, 0
      %v3081 = vsel %vm3049, 1, 0
      %v3082 = vsel %vm3050, 1, 0
      %v3083 = vsel %vm3051, 1, 0
      %v3084 = vsel %vm3052, 1, 0
      %v3085 = vsel %vm3053, 1, 0
      %v3086 = vsel %vm3054, 1, 0
      %v3087 = vsel %vm3055, 1, 0
      %v3088 = vsel %vm3056, 1, 0
      %v3089 = vsel %vm3057, 1, 0
      %v3090 = vsel %vm3058, 1, 0
      %v3091 = vsel %vm3059, 1, 0
      %v3092 = vsel %vm3060, 1, 0
      %v3093 = vsel %vm3061, 1, 0
      %v3094 = vsel %vm3062, 1, 0
      %v3095 = vsel %vm3063, 1, 0
      %v3096 = vsel %vm3064, 1, 0
      %v3097 = vsel %vm3065, 1, 0
      %v3098 = vsel %vm3066, 1, 0
      %v3099 = vsel %vm3067, 1, 0
      %v3100 = vcvt.s32.f32 %v3068
      %v3101 = vcvt.s32.f32 %v3069
      %v3102 = vcvt.s32.f32 %v3070
      %v3103 = vcvt.s32.f32 %v3071
      %v3104 = vcvt.s32.f32 %v3072
      %v3105 = vcvt.s32.f32 %v3073
      %v3106 = vcvt.s32.f32 %v3074
      %v3107 = vcvt.s32.f32 %v3075
      %v3108 = vcvt.s32.f32 %v3076
      %v3109 = vcvt.s32.f32 %v3077
      %v3110 = vcvt.s32.f32 %v3078
      %v3111 = vcvt.s32.f32 %v3079
      %v3112 = vcvt.s32.f32 %v3080
      %v3113 = vcvt.s32.f32 %v3081
      %v3114 = vcvt.s32.f32 %v3082
      %v3115 = vcvt.s32.f32 %v3083
      %v3116 = vcvt.s32.f32 %v3084
      %v3117 = vcvt.s32.f32 %v3085
      %v3118 = vcvt.s32.f32 %v3086
      %v3119 = vcvt.s32.f32 %v3087
      %v3120 = vcvt.s32.f32 %v3088
      %v3121 = vcvt.s32.f32 %v3089
      %v3122 = vcvt.s32.f32 %v3090
      %v3123 = vcvt.s32.f32 %v3091
      %v3124 = vcvt.s32.f32 %v3092
      %v3125 = vcvt.s32.f32 %v3093
      %v3126 = vcvt.s32.f32 %v3094
      %v3127 = vcvt.s32.f32 %v3095
      %v3128 = vcvt.s32.f32 %v3096
      %v3129 = vcvt.s32.f32 %v3097
      %v3130 = vcvt.s32.f32 %v3098
      %v3131 = vcvt.s32.f32 %v3099
      %v3132 = vmul.f32 %v862, %v3100
      %v3133 = vmul.f32 %v863, %v3101
      %v3134 = vmul.f32 %v864, %v3102
      %v3135 = vmul.f32 %v865, %v3103
      %v3136 = vmul.f32 %v866, %v3104
      %v3137 = vmul.f32 %v867, %v3105
      %v3138 = vmul.f32 %v868, %v3106
      %v3139 = vmul.f32 %v869, %v3107
      %v3140 = vmul.f32 %v870, %v3108
      %v3141 = vmul.f32 %v871, %v3109
      %v3142 = vmul.f32 %v872, %v3110
      %v3143 = vmul.f32 %v873, %v3111
      %v3144 = vmul.f32 %v874, %v3112
      %v3145 = vmul.f32 %v875, %v3113
      %v3146 = vmul.f32 %v876, %v3114
      %v3147 = vmul.f32 %v877, %v3115
      %v3148 = vmul.f32 %v878, %v3116
      %v3149 = vmul.f32 %v879, %v3117
      %v3150 = vmul.f32 %v880, %v3118
      %v3151 = vmul.f32 %v881, %v3119
      %v3152 = vmul.f32 %v882, %v3120
      %v3153 = vmul.f32 %v883, %v3121
      %v3154 = vmul.f32 %v884, %v3122
      %v3155 = vmul.f32 %v885, %v3123
      %v3156 = vmul.f32 %v886, %v3124
      %v3157 = vmul.f32 %v887, %v3125
      %v3158 = vmul.f32 %v888, %v3126
      %v3159 = vmul.f32 %v889, %v3127
      %v3160 = vmul.f32 %v890, %v3128
      %v3161 = vmul.f32 %v891, %v3129
      %v3162 = vmul.f32 %v860, %v3130
      %v3163 = vmul.f32 %v861, %v3131
      %vm3164 = vmand %vm2175, %vm2369
      %vm3165 = vmand %vm2176, %vm2782
      %vm3166 = vmand %vm2177, %vm2783
      %vm3167 = vmand %vm2178, %vm2784
      %vm3168 = vmand %vm2179, %vm2785
      %vm3169 = vmand %vm2180, %vm2786
      %vm3170 = vmand %vm2181, %vm2787
      %vm3171 = vmand %vm2182, %vm2788
      %vm3172 = vmand %vm2183, %vm2789
      %vm3173 = vmand %vm2184, %vm2790
      %vm3174 = vmand %vm2185, %vm2791
      %vm3175 = vmand %vm2186, %vm2792
      %vm3176 = vmand %vm2187, %vm2793
      %vm3177 = vmand %vm2188, %vm2794
      %vm3178 = vmand %vm2189, %vm2795
      %vm3179 = vmand %vm2190, %vm2796
      %vm3180 = vmand %vm2191, %vm2797
      %vm3181 = vmand %vm2192, %vm2798
      %vm3182 = vmand %vm2193, %vm2799
      %vm3183 = vmand %vm2194, %vm2800
      %vm3184 = vmand %vm2195, %vm2801
      %vm3185 = vmand %vm2196, %vm2802
      %vm3186 = vmand %vm2197, %vm2803
      %vm3187 = vmand %vm2198, %vm2804
      %vm3188 = vmand %vm2199, %vm2805
      %vm3189 = vmand %vm2200, %vm2806
      %vm3190 = vmand %vm2201, %vm2807
      %vm3191 = vmand %vm2202, %vm2808
      %vm3192 = vmand %vm2203, %vm2809
      %vm3193 = vmand %vm2204, %vm2810
      %vm3194 = vmand %vm2205, %vm2811
      %vm3195 = vmand %vm2206, %vm2812
      %vm3196 = vmand %vm3164, %vm2433
      %vm3197 = vmand %vm3165, %vm2845
      %vm3198 = vmand %vm3166, %vm2846
      %vm3199 = vmand %vm3167, %vm2847
      %vm3200 = vmand %vm3168, %vm2848
      %vm3201 = vmand %vm3169, %vm2849
      %vm3202 = vmand %vm3170, %vm2850
      %vm3203 = vmand %vm3171, %vm2851
      %vm3204 = vmand %vm3172, %vm2852
      %vm3205 = vmand %vm3173, %vm2853
      %vm3206 = vmand %vm3174, %vm2854
      %vm3207 = vmand %vm3175, %vm2855
      %vm3208 = vmand %vm3176, %vm2856
      %vm3209 = vmand %vm3177, %vm2857
      %vm3210 = vmand %vm3178, %vm2858
      %vm3211 = vmand %vm3179, %vm2859
      %vm3212 = vmand %vm3180, %vm2860
      %vm3213 = vmand %vm3181, %vm2861
      %vm3214 = vmand %vm3182, %vm2862
      %vm3215 = vmand %vm3183, %vm2863
      %vm3216 = vmand %vm3184, %vm2864
      %vm3217 = vmand %vm3185, %vm2865
      %vm3218 = vmand %vm3186, %vm2866
      %vm3219 = vmand %vm3187, %vm2867
      %vm3220 = vmand %vm3188, %vm2868
      %vm3221 = vmand %vm3189, %vm2869
      %vm3222 = vmand %vm3190, %vm2870
      %vm3223 = vmand %vm3191, %vm2871
      %vm3224 = vmand %vm3192, %vm2872
      %vm3225 = vmand %vm3193, %vm2873
      %vm3226 = vmand %vm3194, %vm2874
      %vm3227 = vmand %vm3195, %vm2875
      %v3228 = vsel %vm3196, 1, 0
      %v3229 = vsel %vm3197, 1, 0
      %v3230 = vsel %vm3198, 1, 0
      %v3231 = vsel %vm3199, 1, 0
      %v3232 = vsel %vm3200, 1, 0
      %v3233 = vsel %vm3201, 1, 0
      %v3234 = vsel %vm3202, 1, 0
      %v3235 = vsel %vm3203, 1, 0
      %v3236 = vsel %vm3204, 1, 0
      %v3237 = vsel %vm3205, 1, 0
      %v3238 = vsel %vm3206, 1, 0
      %v3239 = vsel %vm3207, 1, 0
      %v3240 = vsel %vm3208, 1, 0
      %v3241 = vsel %vm3209, 1, 0
      %v3242 = vsel %vm3210, 1, 0
      %v3243 = vsel %vm3211, 1, 0
      %v3244 = vsel %vm3212, 1, 0
      %v3245 = vsel %vm3213, 1, 0
      %v3246 = vsel %vm3214, 1, 0
      %v3247 = vsel %vm3215, 1, 0
      %v3248 = vsel %vm3216, 1, 0
      %v3249 = vsel %vm3217, 1, 0
      %v3250 = vsel %vm3218, 1, 0
      %v3251 = vsel %vm3219, 1, 0
      %v3252 = vsel %vm3220, 1, 0
      %v3253 = vsel %vm3221, 1, 0
      %v3254 = vsel %vm3222, 1, 0
      %v3255 = vsel %vm3223, 1, 0
      %v3256 = vsel %vm3224, 1, 0
      %v3257 = vsel %vm3225, 1, 0
      %v3258 = vsel %vm3226, 1, 0
      %v3259 = vsel %vm3227, 1, 0
      %v3260 = vcvt.s32.f32 %v3228
      %v3261 = vcvt.s32.f32 %v3229
      %v3262 = vcvt.s32.f32 %v3230
      %v3263 = vcvt.s32.f32 %v3231
      %v3264 = vcvt.s32.f32 %v3232
      %v3265 = vcvt.s32.f32 %v3233
      %v3266 = vcvt.s32.f32 %v3234
      %v3267 = vcvt.s32.f32 %v3235
      %v3268 = vcvt.s32.f32 %v3236
      %v3269 = vcvt.s32.f32 %v3237
      %v3270 = vcvt.s32.f32 %v3238
      %v3271 = vcvt.s32.f32 %v3239
      %v3272 = vcvt.s32.f32 %v3240
      %v3273 = vcvt.s32.f32 %v3241
      %v3274 = vcvt.s32.f32 %v3242
      %v3275 = vcvt.s32.f32 %v3243
      %v3276 = vcvt.s32.f32 %v3244
      %v3277 = vcvt.s32.f32 %v3245
      %v3278 = vcvt.s32.f32 %v3246
      %v3279 = vcvt.s32.f32 %v3247
      %v3280 = vcvt.s32.f32 %v3248
      %v3281 = vcvt.s32.f32 %v3249
      %v3282 = vcvt.s32.f32 %v3250
      %v3283 = vcvt.s32.f32 %v3251
      %v3284 = vcvt.s32.f32 %v3252
      %v3285 = vcvt.s32.f32 %v3253
      %v3286 = vcvt.s32.f32 %v3254
      %v3287 = vcvt.s32.f32 %v3255
      %v3288 = vcvt.s32.f32 %v3256
      %v3289 = vcvt.s32.f32 %v3257
      %v3290 = vcvt.s32.f32 %v3258
      %v3291 = vcvt.s32.f32 %v3259
      %v3292 = vmul.f32 %v2075, %v3260
      %v3293 = vmul.f32 %v2074, %v3261
      %v3294 = vmul.f32 %v2073, %v3262
      %v3295 = vmul.f32 %v2072, %v3263
      %v3296 = vmul.f32 %v2071, %v3264
      %v3297 = vmul.f32 %v2070, %v3265
      %v3298 = vmul.f32 %v2069, %v3266
      %v3299 = vmul.f32 %v2068, %v3267
      %v3300 = vmul.f32 %v2067, %v3268
      %v3301 = vmul.f32 %v2066, %v3269
      %v3302 = vmul.f32 %v2065, %v3270
      %v3303 = vmul.f32 %v2064, %v3271
      %v3304 = vmul.f32 %v2063, %v3272
      %v3305 = vmul.f32 %v2062, %v3273
      %v3306 = vmul.f32 %v2061, %v3274
      %v3307 = vmul.f32 %v2060, %v3275
      %v3308 = vmul.f32 %v2059, %v3276
      %v3309 = vmul.f32 %v2058, %v3277
      %v3310 = vmul.f32 %v2057, %v3278
      %v3311 = vmul.f32 %v2056, %v3279
      %v3312 = vmul.f32 %v2055, %v3280
      %v3313 = vmul.f32 %v2054, %v3281
      %v3314 = vmul.f32 %v2053, %v3282
      %v3315 = vmul.f32 %v2052, %v3283
      %v3316 = vmul.f32 %v2051, %v3284
      %v3317 = vmul.f32 %v2050, %v3285
      %v3318 = vmul.f32 %v2049, %v3286
      %v3319 = vmul.f32 %v2048, %v3287
      %v3320 = vmul.f32 %v2047, %v3288
      %v3321 = vmul.f32 %v2078, %v3289
      %v3322 = vmul.f32 %v2077, %v3290
      %v3323 = vmul.f32 %v2076, %v3291
      %3356 = vrot.lane.b32.xlu0 %v1982, 8
      %v3357 = vpop.permute.xlu0 %3356
      %3358 = vrot.lane.b32.xlu0 %v1983, 8
      %v3359 = vpop.permute.xlu0 %3358
      %3360 = vrot.lane.b32.xlu0 %v1984, 8
      %v3361 = vpop.permute.xlu0 %3360
      %3362 = vrot.lane.b32.xlu0 %v1985, 8
      %v3363 = vpop.permute.xlu0 %3362
      %3364 = vrot.lane.b32.xlu0 %v1986, 8
      %v3365 = vpop.permute.xlu0 %3364
      %3366 = vrot.lane.b32.xlu0 %v1987, 8
      %v3367 = vpop.permute.xlu0 %3366
      %3368 = vrot.lane.b32.xlu0 %v1988, 8
      %v3369 = vpop.permute.xlu0 %3368
      %3370 = vrot.lane.b32.xlu0 %v1989, 8
      %v3371 = vpop.permute.xlu0 %3370
      %3372 = vrot.lane.b32.xlu0 %v1990, 8
      %v3373 = vpop.permute.xlu0 %3372
      %3374 = vrot.lane.b32.xlu0 %v1991, 8
      %v3375 = vpop.permute.xlu0 %3374
      %3376 = vrot.lane.b32.xlu0 %v1992, 8
      %v3377 = vpop.permute.xlu0 %3376
      %3378 = vrot.lane.b32.xlu0 %v1993, 8
      %v3379 = vpop.permute.xlu0 %3378
      %3380 = vrot.lane.b32.xlu0 %v1994, 8
      %v3381 = vpop.permute.xlu0 %3380
      %3382 = vrot.lane.b32.xlu0 %v1995, 8
      %v3383 = vpop.permute.xlu0 %3382
      %3384 = vrot.lane.b32.xlu0 %v1996, 8
      %v3385 = vpop.permute.xlu0 %3384
      %3386 = vrot.lane.b32.xlu0 %v1997, 8
      %v3387 = vpop.permute.xlu0 %3386
      %3388 = vrot.lane.b32.xlu0 %v1998, 8
      %v3389 = vpop.permute.xlu0 %3388
      %3390 = vrot.lane.b32.xlu0 %v1999, 8
      %v3391 = vpop.permute.xlu0 %3390
      %3392 = vrot.lane.b32.xlu0 %v2000, 8
      %v3393 = vpop.permute.xlu0 %3392
      %3394 = vrot.lane.b32.xlu0 %v2001, 8
      %v3395 = vpop.permute.xlu0 %3394
      %3396 = vrot.lane.b32.xlu0 %v2002, 8
      %v3397 = vpop.permute.xlu0 %3396
      %3398 = vrot.lane.b32.xlu0 %v2003, 8
      %v3399 = vpop.permute.xlu0 %3398
      %3400 = vrot.lane.b32.xlu0 %v2004, 8
      %v3401 = vpop.permute.xlu0 %3400
      %3402 = vrot.lane.b32.xlu0 %v2005, 8
      %v3403 = vpop.permute.xlu0 %3402
      %3404 = vrot.lane.b32.xlu0 %v2006, 8
      %v3405 = vpop.permute.xlu0 %3404
      %3406 = vrot.lane.b32.xlu0 %v2007, 8
      %v3407 = vpop.permute.xlu0 %3406
      %3408 = vrot.lane.b32.xlu0 %v2008, 8
      %v3409 = vpop.permute.xlu0 %3408
      %3410 = vrot.lane.b32.xlu0 %v2009, 8
      %v3411 = vpop.permute.xlu0 %3410
      %3412 = vrot.lane.b32.xlu0 %v2010, 8
      %v3413 = vpop.permute.xlu0 %3412
      %3414 = vrot.lane.b32.xlu0 %v2011, 8
      %v3415 = vpop.permute.xlu0 %3414
      %3416 = vrot.lane.b32.xlu0 %v2012, 8
      %v3417 = vpop.permute.xlu0 %3416
      %3418 = vrot.lane.b32.xlu0 %v2013, 8
      %v3419 = vpop.permute.xlu0 %3418
      %3484 = vrot.lane.b32.xlu0 %v2335, 16
      %v3485 = vpop.permute.xlu0 %3484
      %3486 = vrot.lane.b32.xlu0 %v2336, 16
      %v3487 = vpop.permute.xlu0 %3486
      %3488 = vrot.lane.b32.xlu0 %v2337, 16
      %v3489 = vpop.permute.xlu0 %3488
      %3490 = vrot.lane.b32.xlu0 %v2338, 16
      %v3491 = vpop.permute.xlu0 %3490
      %3492 = vrot.lane.b32.xlu0 %v2339, 16
      %v3493 = vpop.permute.xlu0 %3492
      %3494 = vrot.lane.b32.xlu0 %v2340, 16
      %v3495 = vpop.permute.xlu0 %3494
      %3496 = vrot.lane.b32.xlu0 %v2341, 16
      %v3497 = vpop.permute.xlu0 %3496
      %3498 = vrot.lane.b32.xlu0 %v2342, 16
      %v3499 = vpop.permute.xlu0 %3498
      %3500 = vrot.lane.b32.xlu0 %v2343, 16
      %v3501 = vpop.permute.xlu0 %3500
      %3502 = vrot.lane.b32.xlu0 %v2344, 16
      %v3503 = vpop.permute.xlu0 %3502
      %3504 = vrot.lane.b32.xlu0 %v2345, 16
      %v3505 = vpop.permute.xlu0 %3504
      %3506 = vrot.lane.b32.xlu0 %v2346, 16
      %v3507 = vpop.permute.xlu0 %3506
      %3508 = vrot.lane.b32.xlu0 %v2347, 16
      %v3509 = vpop.permute.xlu0 %3508
      %3510 = vrot.lane.b32.xlu0 %v2348, 16
      %v3511 = vpop.permute.xlu0 %3510
      %3512 = vrot.lane.b32.xlu0 %v2349, 16
      %v3513 = vpop.permute.xlu0 %3512
      %3514 = vrot.lane.b32.xlu0 %v2350, 16
      %v3515 = vpop.permute.xlu0 %3514
      %3516 = vrot.lane.b32.xlu0 %v2351, 16
      %v3517 = vpop.permute.xlu0 %3516
      %3518 = vrot.lane.b32.xlu0 %v2352, 16
      %v3519 = vpop.permute.xlu0 %3518
      %3520 = vrot.lane.b32.xlu0 %v2353, 16
      %v3521 = vpop.permute.xlu0 %3520
      %3522 = vrot.lane.b32.xlu0 %v2354, 16
      %v3523 = vpop.permute.xlu0 %3522
      %3524 = vrot.lane.b32.xlu0 %v2355, 16
      %v3525 = vpop.permute.xlu0 %3524
      %3526 = vrot.lane.b32.xlu0 %v2356, 16
      %v3527 = vpop.permute.xlu0 %3526
      %3528 = vrot.lane.b32.xlu0 %v2357, 16
      %v3529 = vpop.permute.xlu0 %3528
      %3530 = vrot.lane.b32.xlu0 %v2358, 16
      %v3531 = vpop.permute.xlu0 %3530
      %3532 = vrot.lane.b32.xlu0 %v2359, 16
      %v3533 = vpop.permute.xlu0 %3532
      %3534 = vrot.lane.b32.xlu0 %v2360, 16
      %v3535 = vpop.permute.xlu0 %3534
      %3536 = vrot.lane.b32.xlu0 %v2361, 16
      %v3537 = vpop.permute.xlu0 %3536
      %3538 = vrot.lane.b32.xlu0 %v2362, 16
      %v3539 = vpop.permute.xlu0 %3538
      %3540 = vrot.lane.b32.xlu0 %v2363, 16
      %v3541 = vpop.permute.xlu0 %3540
      %3542 = vrot.lane.b32.xlu0 %v2364, 16
      %v3543 = vpop.permute.xlu0 %3542
      %3544 = vrot.lane.b32.xlu0 %v2365, 16
      %v3545 = vpop.permute.xlu0 %3544
      %3546 = vrot.lane.b32.xlu0 %v2366, 16
      %v3547 = vpop.permute.xlu0 %3546
      %3612 = vrot.lane.b32.xlu0 %v2559, 24
      %v3613 = vpop.permute.xlu0 %3612
      %3614 = vrot.lane.b32.xlu0 %v2560, 24
      %v3615 = vpop.permute.xlu0 %3614
      %3616 = vrot.lane.b32.xlu0 %v2561, 24
      %v3617 = vpop.permute.xlu0 %3616
      %3618 = vrot.lane.b32.xlu0 %v2562, 24
      %v3619 = vpop.permute.xlu0 %3618
      %3620 = vrot.lane.b32.xlu0 %v2563, 24
      %v3621 = vpop.permute.xlu0 %3620
      %3622 = vrot.lane.b32.xlu0 %v2564, 24
      %v3623 = vpop.permute.xlu0 %3622
      %3624 = vrot.lane.b32.xlu0 %v2565, 24
      %v3625 = vpop.permute.xlu0 %3624
      %3626 = vrot.lane.b32.xlu0 %v2566, 24
      %v3627 = vpop.permute.xlu0 %3626
      %3628 = vrot.lane.b32.xlu0 %v2567, 24
      %v3629 = vpop.permute.xlu0 %3628
      %3630 = vrot.lane.b32.xlu0 %v2568, 24
      %v3631 = vpop.permute.xlu0 %3630
      %3632 = vrot.lane.b32.xlu0 %v2569, 24
      %v3633 = vpop.permute.xlu0 %3632
      %3634 = vrot.lane.b32.xlu0 %v2570, 24
      %v3635 = vpop.permute.xlu0 %3634
      %3636 = vrot.lane.b32.xlu0 %v2571, 24
      %v3637 = vpop.permute.xlu0 %3636
      %3638 = vrot.lane.b32.xlu0 %v2572, 24
      %v3639 = vpop.permute.xlu0 %3638
      %3640 = vrot.lane.b32.xlu0 %v2573, 24
      %v3641 = vpop.permute.xlu0 %3640
      %3642 = vrot.lane.b32.xlu0 %v2574, 24
      %v3643 = vpop.permute.xlu0 %3642
      %3644 = vrot.lane.b32.xlu0 %v2575, 24
      %v3645 = vpop.permute.xlu0 %3644
      %3646 = vrot.lane.b32.xlu0 %v2576, 24
      %v3647 = vpop.permute.xlu0 %3646
      %3648 = vrot.lane.b32.xlu0 %v2577, 24
      %v3649 = vpop.permute.xlu0 %3648
      %3650 = vrot.lane.b32.xlu0 %v2578, 24
      %v3651 = vpop.permute.xlu0 %3650
      %3652 = vrot.lane.b32.xlu0 %v2579, 24
      %v3653 = vpop.permute.xlu0 %3652
      %3654 = vrot.lane.b32.xlu0 %v2580, 24
      %v3655 = vpop.permute.xlu0 %3654
      %3656 = vrot.lane.b32.xlu0 %v2581, 24
      %v3657 = vpop.permute.xlu0 %3656
      %3658 = vrot.lane.b32.xlu0 %v2582, 24
      %v3659 = vpop.permute.xlu0 %3658
      %3660 = vrot.lane.b32.xlu0 %v2583, 24
      %v3661 = vpop.permute.xlu0 %3660
      %3662 = vrot.lane.b32.xlu0 %v2584, 24
      %v3663 = vpop.permute.xlu0 %3662
      %3664 = vrot.lane.b32.xlu0 %v2585, 24
      %v3665 = vpop.permute.xlu0 %3664
      %3666 = vrot.lane.b32.xlu0 %v2586, 24
      %v3667 = vpop.permute.xlu0 %3666
      %3668 = vrot.lane.b32.xlu0 %v2587, 24
      %v3669 = vpop.permute.xlu0 %3668
      %3670 = vrot.lane.b32.xlu0 %v2588, 24
      %v3671 = vpop.permute.xlu0 %3670
      %3672 = vrot.lane.b32.xlu0 %v2589, 24
      %v3673 = vpop.permute.xlu0 %3672
      %3674 = vrot.lane.b32.xlu0 %v2590, 24
      %v3675 = vpop.permute.xlu0 %3674
      %3740 = vrot.lane.b32.xlu0 %v860, 32
      %v3741 = vpop.permute.xlu0 %3740
      %3742 = vrot.lane.b32.xlu0 %v861, 32
      %v3743 = vpop.permute.xlu0 %3742
      %3744 = vrot.lane.b32.xlu0 %v862, 32
      %v3745 = vpop.permute.xlu0 %3744
      %3746 = vrot.lane.b32.xlu0 %v863, 32
      %v3747 = vpop.permute.xlu0 %3746
      %3748 = vrot.lane.b32.xlu0 %v864, 32
      %v3749 = vpop.permute.xlu0 %3748
      %3750 = vrot.lane.b32.xlu0 %v865, 32
      %v3751 = vpop.permute.xlu0 %3750
      %3752 = vrot.lane.b32.xlu0 %v866, 32
      %v3753 = vpop.permute.xlu0 %3752
      %3754 = vrot.lane.b32.xlu0 %v867, 32
      %v3755 = vpop.permute.xlu0 %3754
      %3756 = vrot.lane.b32.xlu0 %v868, 32
      %v3757 = vpop.permute.xlu0 %3756
      %3758 = vrot.lane.b32.xlu0 %v869, 32
      %v3759 = vpop.permute.xlu0 %3758
      %3760 = vrot.lane.b32.xlu0 %v870, 32
      %v3761 = vpop.permute.xlu0 %3760
      %3762 = vrot.lane.b32.xlu0 %v871, 32
      %v3763 = vpop.permute.xlu0 %3762
      %3764 = vrot.lane.b32.xlu0 %v872, 32
      %v3765 = vpop.permute.xlu0 %3764
      %3766 = vrot.lane.b32.xlu0 %v873, 32
      %v3767 = vpop.permute.xlu0 %3766
      %3768 = vrot.lane.b32.xlu0 %v874, 32
      %v3769 = vpop.permute.xlu0 %3768
      %3770 = vrot.lane.b32.xlu0 %v875, 32
      %v3771 = vpop.permute.xlu0 %3770
      %3772 = vrot.lane.b32.xlu0 %v876, 32
      %v3773 = vpop.permute.xlu0 %3772
      %3774 = vrot.lane.b32.xlu0 %v877, 32
      %v3775 = vpop.permute.xlu0 %3774
      %3776 = vrot.lane.b32.xlu0 %v878, 32
      %v3777 = vpop.permute.xlu0 %3776
      %3778 = vrot.lane.b32.xlu0 %v879, 32
      %v3779 = vpop.permute.xlu0 %3778
      %3780 = vrot.lane.b32.xlu0 %v880, 32
      %v3781 = vpop.permute.xlu0 %3780
      %3782 = vrot.lane.b32.xlu0 %v881, 32
      %v3783 = vpop.permute.xlu0 %3782
      %3784 = vrot.lane.b32.xlu0 %v882, 32
      %v3785 = vpop.permute.xlu0 %3784
      %3786 = vrot.lane.b32.xlu0 %v883, 32
      %v3787 = vpop.permute.xlu0 %3786
      %3788 = vrot.lane.b32.xlu0 %v884, 32
      %v3789 = vpop.permute.xlu0 %3788
      %3790 = vrot.lane.b32.xlu0 %v885, 32
      %v3791 = vpop.permute.xlu0 %3790
      %3792 = vrot.lane.b32.xlu0 %v886, 32
      %v3793 = vpop.permute.xlu0 %3792
      %3794 = vrot.lane.b32.xlu0 %v887, 32
      %v3795 = vpop.permute.xlu0 %3794
      %3796 = vrot.lane.b32.xlu0 %v888, 32
      %v3797 = vpop.permute.xlu0 %3796
      %3798 = vrot.lane.b32.xlu0 %v889, 32
      %v3799 = vpop.permute.xlu0 %3798
      %3800 = vrot.lane.b32.xlu0 %v890, 32
      %v3801 = vpop.permute.xlu0 %3800
      %3802 = vrot.lane.b32.xlu0 %v891, 32
      %v3803 = vpop.permute.xlu0 %3802
      %3868 = vrot.lane.b32.xlu0 %v2719, 40
      %v3869 = vpop.permute.xlu0 %3868
      %3870 = vrot.lane.b32.xlu0 %v2720, 40
      %v3871 = vpop.permute.xlu0 %3870
      %3872 = vrot.lane.b32.xlu0 %v2721, 40
      %v3873 = vpop.permute.xlu0 %3872
      %3874 = vrot.lane.b32.xlu0 %v2722, 40
      %v3875 = vpop.permute.xlu0 %3874
      %3876 = vrot.lane.b32.xlu0 %v2723, 40
      %v3877 = vpop.permute.xlu0 %3876
      %3878 = vrot.lane.b32.xlu0 %v2724, 40
      %v3879 = vpop.permute.xlu0 %3878
      %3880 = vrot.lane.b32.xlu0 %v2725, 40
      %v3881 = vpop.permute.xlu0 %3880
      %3882 = vrot.lane.b32.xlu0 %v2726, 40
      %v3883 = vpop.permute.xlu0 %3882
      %3884 = vrot.lane.b32.xlu0 %v2727, 40
      %v3885 = vpop.permute.xlu0 %3884
      %3886 = vrot.lane.b32.xlu0 %v2728, 40
      %v3887 = vpop.permute.xlu0 %3886
      %3888 = vrot.lane.b32.xlu0 %v2729, 40
      %v3889 = vpop.permute.xlu0 %3888
      %3890 = vrot.lane.b32.xlu0 %v2730, 40
      %v3891 = vpop.permute.xlu0 %3890
      %3892 = vrot.lane.b32.xlu0 %v2731, 40
      %v3893 = vpop.permute.xlu0 %3892
      %3894 = vrot.lane.b32.xlu0 %v2732, 40
      %v3895 = vpop.permute.xlu0 %3894
      %3896 = vrot.lane.b32.xlu0 %v2733, 40
      %v3897 = vpop.permute.xlu0 %3896
      %3898 = vrot.lane.b32.xlu0 %v2734, 40
      %v3899 = vpop.permute.xlu0 %3898
      %3900 = vrot.lane.b32.xlu0 %v2735, 40
      %v3901 = vpop.permute.xlu0 %3900
      %3902 = vrot.lane.b32.xlu0 %v2736, 40
      %v3903 = vpop.permute.xlu0 %3902
      %3904 = vrot.lane.b32.xlu0 %v2737, 40
      %v3905 = vpop.permute.xlu0 %3904
      %3906 = vrot.lane.b32.xlu0 %v2738, 40
      %v3907 = vpop.permute.xlu0 %3906
      %3908 = vrot.lane.b32.xlu0 %v2739, 40
      %v3909 = vpop.permute.xlu0 %3908
      %3910 = vrot.lane.b32.xlu0 %v2740, 40
      %v3911 = vpop.permute.xlu0 %3910
      %3912 = vrot.lane.b32.xlu0 %v2741, 40
      %v3913 = vpop.permute.xlu0 %3912
      %3914 = vrot.lane.b32.xlu0 %v2742, 40
      %v3915 = vpop.permute.xlu0 %3914
      %3916 = vrot.lane.b32.xlu0 %v2743, 40
      %v3917 = vpop.permute.xlu0 %3916
      %3918 = vrot.lane.b32.xlu0 %v2744, 40
      %v3919 = vpop.permute.xlu0 %3918
      %3920 = vrot.lane.b32.xlu0 %v2745, 40
      %v3921 = vpop.permute.xlu0 %3920
      %3922 = vrot.lane.b32.xlu0 %v2746, 40
      %v3923 = vpop.permute.xlu0 %3922
      %3924 = vrot.lane.b32.xlu0 %v2747, 40
      %v3925 = vpop.permute.xlu0 %3924
      %3926 = vrot.lane.b32.xlu0 %v2748, 40
      %v3927 = vpop.permute.xlu0 %3926
      %3928 = vrot.lane.b32.xlu0 %v2749, 40
      %v3929 = vpop.permute.xlu0 %3928
      %3930 = vrot.lane.b32.xlu0 %v2750, 40
      %v3931 = vpop.permute.xlu0 %3930
      %3996 = vrot.lane.b32.xlu0 %v2972, 48
      %v3997 = vpop.permute.xlu0 %3996
      %3998 = vrot.lane.b32.xlu0 %v2973, 48
      %v3999 = vpop.permute.xlu0 %3998
      %4000 = vrot.lane.b32.xlu0 %v2974, 48
      %v4001 = vpop.permute.xlu0 %4000
      %4002 = vrot.lane.b32.xlu0 %v2975, 48
      %v4003 = vpop.permute.xlu0 %4002
      %4004 = vrot.lane.b32.xlu0 %v2976, 48
      %v4005 = vpop.permute.xlu0 %4004
      %4006 = vrot.lane.b32.xlu0 %v2977, 48
      %v4007 = vpop.permute.xlu0 %4006
      %4008 = vrot.lane.b32.xlu0 %v2978, 48
      %v4009 = vpop.permute.xlu0 %4008
      %4010 = vrot.lane.b32.xlu0 %v2979, 48
      %v4011 = vpop.permute.xlu0 %4010
      %4012 = vrot.lane.b32.xlu0 %v2980, 48
      %v4013 = vpop.permute.xlu0 %4012
      %4014 = vrot.lane.b32.xlu0 %v2981, 48
      %v4015 = vpop.permute.xlu0 %4014
      %4016 = vrot.lane.b32.xlu0 %v2982, 48
      %v4017 = vpop.permute.xlu0 %4016
      %4018 = vrot.lane.b32.xlu0 %v2983, 48
      %v4019 = vpop.permute.xlu0 %4018
      %4020 = vrot.lane.b32.xlu0 %v2984, 48
      %v4021 = vpop.permute.xlu0 %4020
      %4022 = vrot.lane.b32.xlu0 %v2985, 48
      %v4023 = vpop.permute.xlu0 %4022
      %4024 = vrot.lane.b32.xlu0 %v2986, 48
      %v4025 = vpop.permute.xlu0 %4024
      %4026 = vrot.lane.b32.xlu0 %v2987, 48
      %v4027 = vpop.permute.xlu0 %4026
      %4028 = vrot.lane.b32.xlu0 %v2988, 48
      %v4029 = vpop.permute.xlu0 %4028
      %4030 = vrot.lane.b32.xlu0 %v2989, 48
      %v4031 = vpop.permute.xlu0 %4030
      %4032 = vrot.lane.b32.xlu0 %v2990, 48
      %v4033 = vpop.permute.xlu0 %4032
      %4034 = vrot.lane.b32.xlu0 %v2991, 48
      %v4035 = vpop.permute.xlu0 %4034
      %4036 = vrot.lane.b32.xlu0 %v2992, 48
      %v4037 = vpop.permute.xlu0 %4036
      %4038 = vrot.lane.b32.xlu0 %v2993, 48
      %v4039 = vpop.permute.xlu0 %4038
      %4040 = vrot.lane.b32.xlu0 %v2994, 48
      %v4041 = vpop.permute.xlu0 %4040
      %4042 = vrot.lane.b32.xlu0 %v2995, 48
      %v4043 = vpop.permute.xlu0 %4042
      %4044 = vrot.lane.b32.xlu0 %v2996, 48
      %v4045 = vpop.permute.xlu0 %4044
      %4046 = vrot.lane.b32.xlu0 %v2997, 48
      %v4047 = vpop.permute.xlu0 %4046
      %4048 = vrot.lane.b32.xlu0 %v2998, 48
      %v4049 = vpop.permute.xlu0 %4048
      %4050 = vrot.lane.b32.xlu0 %v2999, 48
      %v4051 = vpop.permute.xlu0 %4050
      %4052 = vrot.lane.b32.xlu0 %v3000, 48
      %v4053 = vpop.permute.xlu0 %4052
      %4054 = vrot.lane.b32.xlu0 %v3001, 48
      %v4055 = vpop.permute.xlu0 %4054
      %4056 = vrot.lane.b32.xlu0 %v3002, 48
      %v4057 = vpop.permute.xlu0 %4056
      %4058 = vrot.lane.b32.xlu0 %v3003, 48
      %v4059 = vpop.permute.xlu0 %4058
      %4124 = vrot.lane.b32.xlu0 %v3132, 56
      %v4125 = vpop.permute.xlu0 %4124
      %4126 = vrot.lane.b32.xlu0 %v3133, 56
      %v4127 = vpop.permute.xlu0 %4126
      %4128 = vrot.lane.b32.xlu0 %v3134, 56
      %v4129 = vpop.permute.xlu0 %4128
      %4130 = vrot.lane.b32.xlu0 %v3135, 56
      %v4131 = vpop.permute.xlu0 %4130
      %4132 = vrot.lane.b32.xlu0 %v3136, 56
      %v4133 = vpop.permute.xlu0 %4132
      %4134 = vrot.lane.b32.xlu0 %v3137, 56
      %v4135 = vpop.permute.xlu0 %4134
      %4136 = vrot.lane.b32.xlu0 %v3138, 56
      %v4137 = vpop.permute.xlu0 %4136
      %4138 = vrot.lane.b32.xlu0 %v3139, 56
      %v4139 = vpop.permute.xlu0 %4138
      %4140 = vrot.lane.b32.xlu0 %v3140, 56
      %v4141 = vpop.permute.xlu0 %4140
      %4142 = vrot.lane.b32.xlu0 %v3141, 56
      %v4143 = vpop.permute.xlu0 %4142
      %4144 = vrot.lane.b32.xlu0 %v3142, 56
      %v4145 = vpop.permute.xlu0 %4144
      %4146 = vrot.lane.b32.xlu0 %v3143, 56
      %v4147 = vpop.permute.xlu0 %4146
      %4148 = vrot.lane.b32.xlu0 %v3144, 56
      %v4149 = vpop.permute.xlu0 %4148
      %4150 = vrot.lane.b32.xlu0 %v3145, 56
      %v4151 = vpop.permute.xlu0 %4150
      %4152 = vrot.lane.b32.xlu0 %v3146, 56
      %v4153 = vpop.permute.xlu0 %4152
      %4154 = vrot.lane.b32.xlu0 %v3147, 56
      %v4155 = vpop.permute.xlu0 %4154
      %4156 = vrot.lane.b32.xlu0 %v3148, 56
      %v4157 = vpop.permute.xlu0 %4156
      %4158 = vrot.lane.b32.xlu0 %v3149, 56
      %v4159 = vpop.permute.xlu0 %4158
      %4160 = vrot.lane.b32.xlu0 %v3150, 56
      %v4161 = vpop.permute.xlu0 %4160
      %4162 = vrot.lane.b32.xlu0 %v3151, 56
      %v4163 = vpop.permute.xlu0 %4162
      %4164 = vrot.lane.b32.xlu0 %v3152, 56
      %v4165 = vpop.permute.xlu0 %4164
      %4166 = vrot.lane.b32.xlu0 %v3153, 56
      %v4167 = vpop.permute.xlu0 %4166
      %4168 = vrot.lane.b32.xlu0 %v3154, 56
      %v4169 = vpop.permute.xlu0 %4168
      %4170 = vrot.lane.b32.xlu0 %v3155, 56
      %v4171 = vpop.permute.xlu0 %4170
      %4172 = vrot.lane.b32.xlu0 %v3156, 56
      %v4173 = vpop.permute.xlu0 %4172
      %4174 = vrot.lane.b32.xlu0 %v3157, 56
      %v4175 = vpop.permute.xlu0 %4174
      %4176 = vrot.lane.b32.xlu0 %v3158, 56
      %v4177 = vpop.permute.xlu0 %4176
      %4178 = vrot.lane.b32.xlu0 %v3159, 56
      %v4179 = vpop.permute.xlu0 %4178
      %4180 = vrot.lane.b32.xlu0 %v3160, 56
      %v4181 = vpop.permute.xlu0 %4180
      %4182 = vrot.lane.b32.xlu0 %v3161, 56
      %v4183 = vpop.permute.xlu0 %4182
      %4184 = vrot.lane.b32.xlu0 %v3162, 56
      %v4185 = vpop.permute.xlu0 %4184
      %4186 = vrot.lane.b32.xlu0 %v3163, 56
      %v4187 = vpop.permute.xlu0 %4186
      %4252 = vrot.lane.b32.xlu0 %v3292, 64
      %v4253 = vpop.permute.xlu0 %4252
      %4254 = vrot.lane.b32.xlu0 %v3293, 64
      %v4255 = vpop.permute.xlu0 %4254
      %4256 = vrot.lane.b32.xlu0 %v3294, 64
      %v4257 = vpop.permute.xlu0 %4256
      %4258 = vrot.lane.b32.xlu0 %v3295, 64
      %v4259 = vpop.permute.xlu0 %4258
      %4260 = vrot.lane.b32.xlu0 %v3296, 64
      %v4261 = vpop.permute.xlu0 %4260
      %4262 = vrot.lane.b32.xlu0 %v3297, 64
      %v4263 = vpop.permute.xlu0 %4262
      %4264 = vrot.lane.b32.xlu0 %v3298, 64
      %v4265 = vpop.permute.xlu0 %4264
      %4266 = vrot.lane.b32.xlu0 %v3299, 64
      %v4267 = vpop.permute.xlu0 %4266
      %4268 = vrot.lane.b32.xlu0 %v3300, 64
      %v4269 = vpop.permute.xlu0 %4268
      %4270 = vrot.lane.b32.xlu0 %v3301, 64
      %v4271 = vpop.permute.xlu0 %4270
      %4272 = vrot.lane.b32.xlu0 %v3302, 64
      %v4273 = vpop.permute.xlu0 %4272
      %4274 = vrot.lane.b32.xlu0 %v3303, 64
      %v4275 = vpop.permute.xlu0 %4274
      %4276 = vrot.lane.b32.xlu0 %v3304, 64
      %v4277 = vpop.permute.xlu0 %4276
      %4278 = vrot.lane.b32.xlu0 %v3305, 64
      %v4279 = vpop.permute.xlu0 %4278
      %4280 = vrot.lane.b32.xlu0 %v3306, 64
      %v4281 = vpop.permute.xlu0 %4280
      %4282 = vrot.lane.b32.xlu0 %v3307, 64
      %v4283 = vpop.permute.xlu0 %4282
      %4284 = vrot.lane.b32.xlu0 %v3308, 64
      %v4285 = vpop.permute.xlu0 %4284
      %4286 = vrot.lane.b32.xlu0 %v3309, 64
      %v4287 = vpop.permute.xlu0 %4286
      %4288 = vrot.lane.b32.xlu0 %v3310, 64
      %v4289 = vpop.permute.xlu0 %4288
      %4290 = vrot.lane.b32.xlu0 %v3311, 64
      %v4291 = vpop.permute.xlu0 %4290
      %4292 = vrot.lane.b32.xlu0 %v3312, 64
      %v4293 = vpop.permute.xlu0 %4292
      %4294 = vrot.lane.b32.xlu0 %v3313, 64
      %v4295 = vpop.permute.xlu0 %4294
      %4296 = vrot.lane.b32.xlu0 %v3314, 64
      %v4297 = vpop.permute.xlu0 %4296
      %4298 = vrot.lane.b32.xlu0 %v3315, 64
      %v4299 = vpop.permute.xlu0 %4298
      %4300 = vrot.lane.b32.xlu0 %v3316, 64
      %v4301 = vpop.permute.xlu0 %4300
      %4302 = vrot.lane.b32.xlu0 %v3317, 64
      %v4303 = vpop.permute.xlu0 %4302
      %4304 = vrot.lane.b32.xlu0 %v3318, 64
      %v4305 = vpop.permute.xlu0 %4304
      %4306 = vrot.lane.b32.xlu0 %v3319, 64
      %v4307 = vpop.permute.xlu0 %4306
      %4308 = vrot.lane.b32.xlu0 %v3320, 64
      %v4309 = vpop.permute.xlu0 %4308
      %4310 = vrot.lane.b32.xlu0 %v3321, 64
      %v4311 = vpop.permute.xlu0 %4310
      %4312 = vrot.lane.b32.xlu0 %v3322, 64
      %v4313 = vpop.permute.xlu0 %4312
      %4314 = vrot.lane.b32.xlu0 %v3323, 64
      %v4315 = vpop.permute.xlu0 %4314
      %vm4348 = vcmask 64512
      %v4349 = vsel %vm4348, %v1726, %v3357
      %v4350 = vsel %vm4348, %v1727, %v3359
      %v4351 = vsel %vm4348, %v1728, %v3361
      %v4352 = vsel %vm4348, %v1729, %v3363
      %v4353 = vsel %vm4348, %v1730, %v3365
      %v4354 = vsel %vm4348, %v1731, %v3367
      %v4355 = vsel %vm4348, %v1732, %v3369
      %v4356 = vsel %vm4348, %v1733, %v3371
      %v4357 = vsel %vm4348, %v1734, %v3373
      %v4358 = vsel %vm4348, %v1735, %v3375
      %v4359 = vsel %vm4348, %v1736, %v3377
      %v4360 = vsel %vm4348, %v1737, %v3379
      %v4361 = vsel %vm4348, %v1738, %v3381
      %v4362 = vsel %vm4348, %v1739, %v3383
      %v4363 = vsel %vm4348, %v1740, %v3385
      %v4364 = vsel %vm4348, %v1741, %v3387
      %v4365 = vsel %vm4348, %v1742, %v3389
      %v4366 = vsel %vm4348, %v1743, %v3391
      %v4367 = vsel %vm4348, %v1744, %v3393
      %v4368 = vsel %vm4348, %v1745, %v3395
      %v4369 = vsel %vm4348, %v1746, %v3397
      %v4370 = vsel %vm4348, %v1747, %v3399
      %v4371 = vsel %vm4348, %v1748, %v3401
      %v4372 = vsel %vm4348, %v1749, %v3403
      %v4373 = vsel %vm4348, %v1750, %v3405
      %v4374 = vsel %vm4348, %v1751, %v3407
      %v4375 = vsel %vm4348, %v1752, %v3409
      %v4376 = vsel %vm4348, %v1753, %v3411
      %v4377 = vsel %vm4348, %v1754, %v3413
      %v4378 = vsel %vm4348, %v1755, %v3415
      %v4379 = vsel %vm4348, %v1756, %v3417
      %v4380 = vsel %vm4348, %v1757, %v3419
      %vm4381 = vcmask 130048
      %v4382 = vsel %vm4381, %v4349, %v3485
      %v4383 = vsel %vm4381, %v4350, %v3487
      %v4384 = vsel %vm4381, %v4351, %v3489
      %v4385 = vsel %vm4381, %v4352, %v3491
      %v4386 = vsel %vm4381, %v4353, %v3493
      %v4387 = vsel %vm4381, %v4354, %v3495
      %v4388 = vsel %vm4381, %v4355, %v3497
      %v4389 = vsel %vm4381, %v4356, %v3499
      %v4390 = vsel %vm4381, %v4357, %v3501
      %v4391 = vsel %vm4381, %v4358, %v3503
      %v4392 = vsel %vm4381, %v4359, %v3505
      %v4393 = vsel %vm4381, %v4360, %v3507
      %v4394 = vsel %vm4381, %v4361, %v3509
      %v4395 = vsel %vm4381, %v4362, %v3511
      %v4396 = vsel %vm4381, %v4363, %v3513
      %v4397 = vsel %vm4381, %v4364, %v3515
      %v4398 = vsel %vm4381, %v4365, %v3517
      %v4399 = vsel %vm4381, %v4366, %v3519
      %v4400 = vsel %vm4381, %v4367, %v3521
      %v4401 = vsel %vm4381, %v4368, %v3523
      %v4402 = vsel %vm4381, %v4369, %v3525
      %v4403 = vsel %vm4381, %v4370, %v3527
      %v4404 = vsel %vm4381, %v4371, %v3529
      %v4405 = vsel %vm4381, %v4372, %v3531
      %v4406 = vsel %vm4381, %v4373, %v3533
      %v4407 = vsel %vm4381, %v4374, %v3535
      %v4408 = vsel %vm4381, %v4375, %v3537
      %v4409 = vsel %vm4381, %v4376, %v3539
      %v4410 = vsel %vm4381, %v4377, %v3541
      %v4411 = vsel %vm4381, %v4378, %v3543
      %v4412 = vsel %vm4381, %v4379, %v3545
      %v4413 = vsel %vm4381, %v4380, %v3547
      %vm4414 = vcmask 195584
      %v4415 = vsel %vm4414, %v4382, %v3613
      %v4416 = vsel %vm4414, %v4383, %v3615
      %v4417 = vsel %vm4414, %v4384, %v3617
      %v4418 = vsel %vm4414, %v4385, %v3619
      %v4419 = vsel %vm4414, %v4386, %v3621
      %v4420 = vsel %vm4414, %v4387, %v3623
      %v4421 = vsel %vm4414, %v4388, %v3625
      %v4422 = vsel %vm4414, %v4389, %v3627
      %v4423 = vsel %vm4414, %v4390, %v3629
      %v4424 = vsel %vm4414, %v4391, %v3631
      %v4425 = vsel %vm4414, %v4392, %v3633
      %v4426 = vsel %vm4414, %v4393, %v3635
      %v4427 = vsel %vm4414, %v4394, %v3637
      %v4428 = vsel %vm4414, %v4395, %v3639
      %v4429 = vsel %vm4414, %v4396, %v3641
      %v4430 = vsel %vm4414, %v4397, %v3643
      %v4431 = vsel %vm4414, %v4398, %v3645
      %v4432 = vsel %vm4414, %v4399, %v3647
      %v4433 = vsel %vm4414, %v4400, %v3649
      %v4434 = vsel %vm4414, %v4401, %v3651
      %v4435 = vsel %vm4414, %v4402, %v3653
      %v4436 = vsel %vm4414, %v4403, %v3655
      %v4437 = vsel %vm4414, %v4404, %v3657
      %v4438 = vsel %vm4414, %v4405, %v3659
      %v4439 = vsel %vm4414, %v4406, %v3661
      %v4440 = vsel %vm4414, %v4407, %v3663
      %v4441 = vsel %vm4414, %v4408, %v3665
      %v4442 = vsel %vm4414, %v4409, %v3667
      %v4443 = vsel %vm4414, %v4410, %v3669
      %v4444 = vsel %vm4414, %v4411, %v3671
      %v4445 = vsel %vm4414, %v4412, %v3673
      %v4446 = vsel %vm4414, %v4413, %v3675
      %vm4447 = vcmask 261120
      %v4448 = vsel %vm4447, %v4415, %v3741
      %v4449 = vsel %vm4447, %v4416, %v3743
      %v4450 = vsel %vm4447, %v4417, %v3745
      %v4451 = vsel %vm4447, %v4418, %v3747
      %v4452 = vsel %vm4447, %v4419, %v3749
      %v4453 = vsel %vm4447, %v4420, %v3751
      %v4454 = vsel %vm4447, %v4421, %v3753
      %v4455 = vsel %vm4447, %v4422, %v3755
      %v4456 = vsel %vm4447, %v4423, %v3757
      %v4457 = vsel %vm4447, %v4424, %v3759
      %v4458 = vsel %vm4447, %v4425, %v3761
      %v4459 = vsel %vm4447, %v4426, %v3763
      %v4460 = vsel %vm4447, %v4427, %v3765
      %v4461 = vsel %vm4447, %v4428, %v3767
      %v4462 = vsel %vm4447, %v4429, %v3769
      %v4463 = vsel %vm4447, %v4430, %v3771
      %v4464 = vsel %vm4447, %v4431, %v3773
      %v4465 = vsel %vm4447, %v4432, %v3775
      %v4466 = vsel %vm4447, %v4433, %v3777
      %v4467 = vsel %vm4447, %v4434, %v3779
      %v4468 = vsel %vm4447, %v4435, %v3781
      %v4469 = vsel %vm4447, %v4436, %v3783
      %v4470 = vsel %vm4447, %v4437, %v3785
      %v4471 = vsel %vm4447, %v4438, %v3787
      %v4472 = vsel %vm4447, %v4439, %v3789
      %v4473 = vsel %vm4447, %v4440, %v3791
      %v4474 = vsel %vm4447, %v4441, %v3793
      %v4475 = vsel %vm4447, %v4442, %v3795
      %v4476 = vsel %vm4447, %v4443, %v3797
      %v4477 = vsel %vm4447, %v4444, %v3799
      %v4478 = vsel %vm4447, %v4445, %v3801
      %v4479 = vsel %vm4447, %v4446, %v3803
      %vm4480 = vcmask 326656
      %v4481 = vsel %vm4480, %v4448, %v3869
      %v4482 = vsel %vm4480, %v4449, %v3871
      %v4483 = vsel %vm4480, %v4450, %v3873
      %v4484 = vsel %vm4480, %v4451, %v3875
      %v4485 = vsel %vm4480, %v4452, %v3877
      %v4486 = vsel %vm4480, %v4453, %v3879
      %v4487 = vsel %vm4480, %v4454, %v3881
      %v4488 = vsel %vm4480, %v4455, %v3883
      %v4489 = vsel %vm4480, %v4456, %v3885
      %v4490 = vsel %vm4480, %v4457, %v3887
      %v4491 = vsel %vm4480, %v4458, %v3889
      %v4492 = vsel %vm4480, %v4459, %v3891
      %v4493 = vsel %vm4480, %v4460, %v3893
      %v4494 = vsel %vm4480, %v4461, %v3895
      %v4495 = vsel %vm4480, %v4462, %v3897
      %v4496 = vsel %vm4480, %v4463, %v3899
      %v4497 = vsel %vm4480, %v4464, %v3901
      %v4498 = vsel %vm4480, %v4465, %v3903
      %v4499 = vsel %vm4480, %v4466, %v3905
      %v4500 = vsel %vm4480, %v4467, %v3907
      %v4501 = vsel %vm4480, %v4468, %v3909
      %v4502 = vsel %vm4480, %v4469, %v3911
      %v4503 = vsel %vm4480, %v4470, %v3913
      %v4504 = vsel %vm4480, %v4471, %v3915
      %v4505 = vsel %vm4480, %v4472, %v3917
      %v4506 = vsel %vm4480, %v4473, %v3919
      %v4507 = vsel %vm4480, %v4474, %v3921
      %v4508 = vsel %vm4480, %v4475, %v3923
      %v4509 = vsel %vm4480, %v4476, %v3925
      %v4510 = vsel %vm4480, %v4477, %v3927
      %v4511 = vsel %vm4480, %v4478, %v3929
      %v4512 = vsel %vm4480, %v4479, %v3931
      %vm4513 = vcmask 392192
      %v4514 = vsel %vm4513, %v4481, %v3997
      %v4515 = vsel %vm4513, %v4482, %v3999
      %v4516 = vsel %vm4513, %v4483, %v4001
      %v4517 = vsel %vm4513, %v4484, %v4003
      %v4518 = vsel %vm4513, %v4485, %v4005
      %v4519 = vsel %vm4513, %v4486, %v4007
      %v4520 = vsel %vm4513, %v4487, %v4009
      %v4521 = vsel %vm4513, %v4488, %v4011
      %v4522 = vsel %vm4513, %v4489, %v4013
      %v4523 = vsel %vm4513, %v4490, %v4015
      %v4524 = vsel %vm4513, %v4491, %v4017
      %v4525 = vsel %vm4513, %v4492, %v4019
      %v4526 = vsel %vm4513, %v4493, %v4021
      %v4527 = vsel %vm4513, %v4494, %v4023
      %v4528 = vsel %vm4513, %v4495, %v4025
      %v4529 = vsel %vm4513, %v4496, %v4027
      %v4530 = vsel %vm4513, %v4497, %v4029
      %v4531 = vsel %vm4513, %v4498, %v4031
      %v4532 = vsel %vm4513, %v4499, %v4033
      %v4533 = vsel %vm4513, %v4500, %v4035
      %v4534 = vsel %vm4513, %v4501, %v4037
      %v4535 = vsel %vm4513, %v4502, %v4039
      %v4536 = vsel %vm4513, %v4503, %v4041
      %v4537 = vsel %vm4513, %v4504, %v4043
      %v4538 = vsel %vm4513, %v4505, %v4045
      %v4539 = vsel %vm4513, %v4506, %v4047
      %v4540 = vsel %vm4513, %v4507, %v4049
      %v4541 = vsel %vm4513, %v4508, %v4051
      %v4542 = vsel %vm4513, %v4509, %v4053
      %v4543 = vsel %vm4513, %v4510, %v4055
      %v4544 = vsel %vm4513, %v4511, %v4057
      %v4545 = vsel %vm4513, %v4512, %v4059
      %vm4546 = vcmask 457728
      %v4547 = vsel %vm4546, %v4514, %v4125
      %v4548 = vsel %vm4546, %v4515, %v4127
      %v4549 = vsel %vm4546, %v4516, %v4129
      %v4550 = vsel %vm4546, %v4517, %v4131
      %v4551 = vsel %vm4546, %v4518, %v4133
      %v4552 = vsel %vm4546, %v4519, %v4135
      %v4553 = vsel %vm4546, %v4520, %v4137
      %v4554 = vsel %vm4546, %v4521, %v4139
      %v4555 = vsel %vm4546, %v4522, %v4141
      %v4556 = vsel %vm4546, %v4523, %v4143
      %v4557 = vsel %vm4546, %v4524, %v4145
      %v4558 = vsel %vm4546, %v4525, %v4147
      %v4559 = vsel %vm4546, %v4526, %v4149
      %v4560 = vsel %vm4546, %v4527, %v4151
      %v4561 = vsel %vm4546, %v4528, %v4153
      %v4562 = vsel %vm4546, %v4529, %v4155
      %v4563 = vsel %vm4546, %v4530, %v4157
      %v4564 = vsel %vm4546, %v4531, %v4159
      %v4565 = vsel %vm4546, %v4532, %v4161
      %v4566 = vsel %vm4546, %v4533, %v4163
      %v4567 = vsel %vm4546, %v4534, %v4165
      %v4568 = vsel %vm4546, %v4535, %v4167
      %v4569 = vsel %vm4546, %v4536, %v4169
      %v4570 = vsel %vm4546, %v4537, %v4171
      %v4571 = vsel %vm4546, %v4538, %v4173
      %v4572 = vsel %vm4546, %v4539, %v4175
      %v4573 = vsel %vm4546, %v4540, %v4177
      %v4574 = vsel %vm4546, %v4541, %v4179
      %v4575 = vsel %vm4546, %v4542, %v4181
      %v4576 = vsel %vm4546, %v4543, %v4183
      %v4577 = vsel %vm4546, %v4544, %v4185
      %v4578 = vsel %vm4546, %v4545, %v4187
      %vm4579 = vcmask 523264
      %v4580 = vsel %vm4579, %v4547, %v4253
      %v4581 = vsel %vm4579, %v4548, %v4255
      %v4582 = vsel %vm4579, %v4549, %v4257
      %v4583 = vsel %vm4579, %v4550, %v4259
      %v4584 = vsel %vm4579, %v4551, %v4261
      %v4585 = vsel %vm4579, %v4552, %v4263
      %v4586 = vsel %vm4579, %v4553, %v4265
      %v4587 = vsel %vm4579, %v4554, %v4267
      %v4588 = vsel %vm4579, %v4555, %v4269
      %v4589 = vsel %vm4579, %v4556, %v4271
      %v4590 = vsel %vm4579, %v4557, %v4273
      %v4591 = vsel %vm4579, %v4558, %v4275
      %v4592 = vsel %vm4579, %v4559, %v4277
      %v4593 = vsel %vm4579, %v4560, %v4279
      %v4594 = vsel %vm4579, %v4561, %v4281
      %v4595 = vsel %vm4579, %v4562, %v4283
      %v4596 = vsel %vm4579, %v4563, %v4285
      %v4597 = vsel %vm4579, %v4564, %v4287
      %v4598 = vsel %vm4579, %v4565, %v4289
      %v4599 = vsel %vm4579, %v4566, %v4291
      %v4600 = vsel %vm4579, %v4567, %v4293
      %v4601 = vsel %vm4579, %v4568, %v4295
      %v4602 = vsel %vm4579, %v4569, %v4297
      %v4603 = vsel %vm4579, %v4570, %v4299
      %v4604 = vsel %vm4579, %v4571, %v4301
      %v4605 = vsel %vm4579, %v4572, %v4303
      %v4606 = vsel %vm4579, %v4573, %v4305
      %v4607 = vsel %vm4579, %v4574, %v4307
      %v4608 = vsel %vm4579, %v4575, %v4309
      %v4609 = vsel %vm4579, %v4576, %v4311
      %v4610 = vsel %vm4579, %v4577, %v4313
      %v4611 = vsel %vm4579, %v4578, %v4315
      %v4612 = vpack.c.bf16 %v4581, %v4580
      %v4613 = vpack.c.bf16 %v4583, %v4582
      %v4614 = vpack.c.bf16 %v4585, %v4584
      %v4615 = vpack.c.bf16 %v4587, %v4586
      %v4616 = vpack.c.bf16 %v4589, %v4588
      %v4617 = vpack.c.bf16 %v4591, %v4590
      %v4618 = vpack.c.bf16 %v4593, %v4592
      %v4619 = vpack.c.bf16 %v4595, %v4594
      %v4620 = vpack.c.bf16 %v4597, %v4596
      %v4621 = vpack.c.bf16 %v4599, %v4598
      %v4622 = vpack.c.bf16 %v4601, %v4600
      %v4623 = vpack.c.bf16 %v4603, %v4602
      %v4624 = vpack.c.bf16 %v4605, %v4604
      %v4625 = vpack.c.bf16 %v4607, %v4606
      %v4626 = vpack.c.bf16 %v4609, %v4608
      %v4627 = vpack.c.bf16 %v4611, %v4610
      %v4628 = vld [vmem:[%s3] sm:$0xf]
      %v4629 = vld [vmem:[%s3 + $0x4] sm:$0xf]
      %v4630 = vld [vmem:[%s3 + $0x8] sm:$0xf]
      %v4631 = vld [vmem:[%s3 + $0xc] sm:$0xf]
      %v4632 = vld [vmem:[%s3 + $0x10] sm:$0xf]
      %v4633 = vld [vmem:[%s3 + $0x14] sm:$0xf]
      %v4634 = vld [vmem:[%s3 + $0x18] sm:$0xf]
      %v4635 = vld [vmem:[%s3 + $0x1c] sm:$0xf]
      %v4636 = vld [vmem:[%s3 + $0x20] sm:$0xf]
      %v4637 = vld [vmem:[%s4] sm:$0x1]
      %v4639 = vlaneseq
      %v4640 = vshrl.u32 %v4639, 7
      %v4641 = vsub.s32 0, %v4640
      %v4642 = vrot.slane %v4637, %v4641
      %v4653 = vunpack.c.l.b16 %v4628
      %v4654 = vunpack.c.l.b16 %v4629
      %v4655 = vunpack.c.l.b16 %v4630
      %v4656 = vunpack.c.l.b16 %v4631
      %v4657 = vunpack.c.l.b16 %v4632
      %v4658 = vunpack.c.l.b16 %v4633
      %v4659 = vunpack.c.l.b16 %v4634
      %v4660 = vunpack.c.l.b16 %v4635
      %v4661 = vunpack.c.l.b16 %v4636
      %v4662 = vpack.c.b16 %v4654, %v4653
      %v4663 = vpack.c.b16 %v4656, %v4655
      %v4664 = vpack.c.b16 %v4658, %v4657
      %v4665 = vpack.c.b16 %v4660, %v4659
      %v4666 = vpack.c.b16 %v4661, %v4661
      %vm4671 = vcmask 588800
      %v4673 = vsel %vm4671, %v4612, 0
      %v4676 = vsel %vm4671, %v4613, 0
      %v4679 = vsel %vm4671, %v4614, 0
      %v4682 = vsel %vm4671, %v4615, 0
      %v4685 = vsel %vm4671, %v4616, 0
      %v4688 = vsel %vm4671, %v4617, 0
      %v4691 = vsel %vm4671, %v4618, 0
      %v4694 = vsel %vm4671, %v4619, 0
      %v4697 = vsel %vm4671, %v4620, 0
      %v4700 = vsel %vm4671, %v4621, 0
      %v4703 = vsel %vm4671, %v4622, 0
      %v4706 = vsel %vm4671, %v4623, 0
      %v4709 = vsel %vm4671, %v4624, 0
      %v4712 = vsel %vm4671, %v4625, 0
      %v4715 = vsel %vm4671, %v4626, 0
      %v4718 = vsel %vm4671, %v4627, 0
      %vm4720 = vcmask 1043456
      %v4722 = vsel %vm4720, %v4666, 0
      %4724 = vmatprep.subr.bf16.mxu0 0
      %4725 = vmatpush1.bf16.msra.mxu0 %v4662
      %4726 = vmatprep.subr.bf16.mxu0 0
      %4727 = vmatpush1.bf16.msra.mxu0 %v4663
      %4728 = vmatprep.subr.bf16.mxu0 0
      %4729 = vmatpush1.bf16.msra.mxu0 %v4664
      %4730 = vmatprep.subr.bf16.mxu0 0
      %4731 = vmatpush1.bf16.msra.mxu0 %v4665
      %4732 = vmatprep.subr.bf16.mxu0 0
      %4733 = vmatpush1.bf16.msra.mxu0 %v4722
      %4734 = vmatprep.subr.bf16.mxu0 0
      %4735 = vmatpush1.bf16.msra.mxu0 0
      %4736 = vmatprep.subr.bf16.mxu0 0
      %4737 = vmatpush1.bf16.msra.mxu0 0
      %4738 = vmatprep.subr.bf16.mxu0 0
      %4739 = vmatpush1.bf16.msra.mxu0 0
      %4740 = vmatprep.subr.bf16.mxu0 0
      %4741 = vmatpush1.bf16.msra.mxu0 0
      %4742 = vmatprep.subr.bf16.mxu0 0
      %4743 = vmatpush1.bf16.msra.mxu0 0
      %4744 = vmatprep.subr.bf16.mxu0 0
      %4745 = vmatpush1.bf16.msra.mxu0 0
      %4746 = vmatprep.subr.bf16.mxu0 0
      %4747 = vmatpush1.bf16.msra.mxu0 0
      %4748 = vmatprep.subr.bf16.mxu0 0
      %4749 = vmatpush1.bf16.msra.mxu0 0
      %4750 = vmatprep.subr.bf16.mxu0 0
      %4751 = vmatpush1.bf16.msra.mxu0 0
      %4752 = vmatprep.subr.bf16.mxu0 0
      %4753 = vmatpush1.bf16.msra.mxu0 0
      %4754 = vmatprep.subr.bf16.mxu0 0
      %4755 = vmatpush1.bf16.msra.mxu0 0
      %4756 = vmatprep.mubr.bf16.mxu0 0
      %4757 = vmatmul.mubr.bf16.gmra.mrb[0].mxu0 %v4673
      %v4758 = vpop.f32.mrb[0].mxu0
      %v4759 = vadd.f32 %v4642, %v4758
      %v4760 = vpop.f32.mrb[0].mxu0
      %v4761 = vpop.f32.mrb[0].mxu0
      %v4762 = vadd.f32 %v4642, %v4761
      %v4763 = vpop.f32.mrb[0].mxu0
      %4764 = vmatprep.mubr.bf16.mxu0 0
      %4765 = vmatmul.mubr.bf16.gmra.mrb[0].mxu0 %v4676
      %v4766 = vpop.f32.mrb[0].mxu0
      %v4767 = vadd.f32 %v4642, %v4766
      %v4768 = vpop.f32.mrb[0].mxu0
      %v4769 = vpop.f32.mrb[0].mxu0
      %v4770 = vadd.f32 %v4642, %v4769
      %v4771 = vpop.f32.mrb[0].mxu0
      %4772 = vmatprep.mubr.bf16.mxu0 0
      %4773 = vmatmul.mubr.bf16.gmra.mrb[0].mxu0 %v4679
      %v4774 = vpop.f32.mrb[0].mxu0
      %v4775 = vadd.f32 %v4642, %v4774
      %v4776 = vpop.f32.mrb[0].mxu0
      %v4777 = vpop.f32.mrb[0].mxu0
      %v4778 = vadd.f32 %v4642, %v4777
      %v4779 = vpop.f32.mrb[0].mxu0
      %4780 = vmatprep.mubr.bf16.mxu0 0
      %4781 = vmatmul.mubr.bf16.gmra.mrb[0].mxu0 %v4682
      %v4782 = vpop.f32.mrb[0].mxu0
      %v4783 = vadd.f32 %v4642, %v4782
      %v4784 = vpop.f32.mrb[0].mxu0
      %v4785 = vpop.f32.mrb[0].mxu0
      %v4786 = vadd.f32 %v4642, %v4785
      %v4787 = vpop.f32.mrb[0].mxu0
      %4788 = vmatprep.mubr.bf16.mxu0 0
      %4789 = vmatmul.mubr.bf16.gmra.mrb[0].mxu0 %v4685
      %v4790 = vpop.f32.mrb[0].mxu0
      %v4791 = vadd.f32 %v4642, %v4790
      %v4792 = vpop.f32.mrb[0].mxu0
      %v4793 = vpop.f32.mrb[0].mxu0
      %v4794 = vadd.f32 %v4642, %v4793
      %v4795 = vpop.f32.mrb[0].mxu0
      %4796 = vmatprep.mubr.bf16.mxu0 0
      %4797 = vmatmul.mubr.bf16.gmra.mrb[0].mxu0 %v4688
      %v4798 = vpop.f32.mrb[0].mxu0
      %v4799 = vadd.f32 %v4642, %v4798
      %v4800 = vpop.f32.mrb[0].mxu0
      %v4801 = vpop.f32.mrb[0].mxu0
      %v4802 = vadd.f32 %v4642, %v4801
      %v4803 = vpop.f32.mrb[0].mxu0
      %4804 = vmatprep.mubr.bf16.mxu0 0
      %4805 = vmatmul.mubr.bf16.gmra.mrb[0].mxu0 %v4691
      %v4806 = vpop.f32.mrb[0].mxu0
      %v4807 = vadd.f32 %v4642, %v4806
      %v4808 = vpop.f32.mrb[0].mxu0
      %v4809 = vpop.f32.mrb[0].mxu0
      %v4810 = vadd.f32 %v4642, %v4809
      %v4811 = vpop.f32.mrb[0].mxu0
      %4812 = vmatprep.mubr.bf16.mxu0 0
      %4813 = vmatmul.mubr.bf16.gmra.mrb[0].mxu0 %v4694
      %v4814 = vpop.f32.mrb[0].mxu0
      %v4815 = vadd.f32 %v4642, %v4814
      %v4816 = vpop.f32.mrb[0].mxu0
      %v4817 = vpop.f32.mrb[0].mxu0
      %v4818 = vadd.f32 %v4642, %v4817
      %v4819 = vpop.f32.mrb[0].mxu0
      %4820 = vmatprep.mubr.bf16.mxu0 0
      %4821 = vmatmul.mubr.bf16.gmra.mrb[0].mxu0 %v4697
      %v4822 = vpop.f32.mrb[0].mxu0
      %v4823 = vadd.f32 %v4642, %v4822
      %v4824 = vpop.f32.mrb[0].mxu0
      %v4825 = vpop.f32.mrb[0].mxu0
      %v4826 = vadd.f32 %v4642, %v4825
      %v4827 = vpop.f32.mrb[0].mxu0
      %4828 = vmatprep.mubr.bf16.mxu0 0
      %4829 = vmatmul.mubr.bf16.gmra.mrb[0].mxu0 %v4700
      %v4830 = vpop.f32.mrb[0].mxu0
      %v4831 = vadd.f32 %v4642, %v4830
      %v4832 = vpop.f32.mrb[0].mxu0
      %v4833 = vpop.f32.mrb[0].mxu0
      %v4834 = vadd.f32 %v4642, %v4833
      %v4835 = vpop.f32.mrb[0].mxu0
      %4836 = vmatprep.mubr.bf16.mxu0 0
      %4837 = vmatmul.mubr.bf16.gmra.mrb[0].mxu0 %v4703
      %v4838 = vpop.f32.mrb[0].mxu0
      %v4839 = vadd.f32 %v4642, %v4838
      %v4840 = vpop.f32.mrb[0].mxu0
      %v4841 = vpop.f32.mrb[0].mxu0
      %v4842 = vadd.f32 %v4642, %v4841
      %v4843 = vpop.f32.mrb[0].mxu0
      %4844 = vmatprep.mubr.bf16.mxu0 0
      %4845 = vmatmul.mubr.bf16.gmra.mrb[0].mxu0 %v4706
      %v4846 = vpop.f32.mrb[0].mxu0
      %v4847 = vadd.f32 %v4642, %v4846
      %v4848 = vpop.f32.mrb[0].mxu0
      %v4849 = vpop.f32.mrb[0].mxu0
      %v4850 = vadd.f32 %v4642, %v4849
      %v4851 = vpop.f32.mrb[0].mxu0
      %4852 = vmatprep.mubr.bf16.mxu0 0
      %4853 = vmatmul.mubr.bf16.gmra.mrb[0].mxu0 %v4709
      %v4854 = vpop.f32.mrb[0].mxu0
      %v4855 = vadd.f32 %v4642, %v4854
      %v4856 = vpop.f32.mrb[0].mxu0
      %v4857 = vpop.f32.mrb[0].mxu0
      %v4858 = vadd.f32 %v4642, %v4857
      %v4859 = vpop.f32.mrb[0].mxu0
      %4860 = vmatprep.mubr.bf16.mxu0 0
      %4861 = vmatmul.mubr.bf16.gmra.mrb[0].mxu0 %v4712
      %v4862 = vpop.f32.mrb[0].mxu0
      %v4863 = vadd.f32 %v4642, %v4862
      %v4864 = vpop.f32.mrb[0].mxu0
      %v4865 = vpop.f32.mrb[0].mxu0
      %v4866 = vadd.f32 %v4642, %v4865
      %v4867 = vpop.f32.mrb[0].mxu0
      %4868 = vmatprep.mubr.bf16.mxu0 0
      %4869 = vmatmul.mubr.bf16.gmra.mrb[0].mxu0 %v4715
      %v4870 = vpop.f32.mrb[0].mxu0
      %v4871 = vadd.f32 %v4642, %v4870
      %v4872 = vpop.f32.mrb[0].mxu0
      %v4873 = vpop.f32.mrb[0].mxu0
      %v4874 = vadd.f32 %v4642, %v4873
      %v4875 = vpop.f32.mrb[0].mxu0
      %4876 = vmatprep.mubr.bf16.mxu0 0
      %4877 = vmatmul.mubr.bf16.gmra.mrb[0].mxu0 %v4718
      %v4878 = vpop.f32.mrb[0].mxu0
      %v4879 = vadd.f32 %v4642, %v4878
      %v4880 = vpop.f32.mrb[0].mxu0
      %v4881 = vpop.f32.mrb[0].mxu0
      %v4882 = vadd.f32 %v4642, %v4881
      %v4883 = vpop.f32.mrb[0].mxu0
      %4884 = vdwg.mxu0
      %v4885 = vmul.f32 %v4759, 0.5
      %v4886 = vmul.f32 %v4762, 0.5
      %v4887 = vmul.f32 %v4767, 0.5
      %v4888 = vmul.f32 %v4770, 0.5
      %v4889 = vmul.f32 %v4775, 0.5
      %v4890 = vmul.f32 %v4778, 0.5
      %v4891 = vmul.f32 %v4783, 0.5
      %v4892 = vmul.f32 %v4786, 0.5
      %v4893 = vmul.f32 %v4791, 0.5
      %v4894 = vmul.f32 %v4794, 0.5
      %v4895 = vmul.f32 %v4799, 0.5
      %v4896 = vmul.f32 %v4802, 0.5
      %v4897 = vmul.f32 %v4807, 0.5
      %v4898 = vmul.f32 %v4810, 0.5
      %v4899 = vmul.f32 %v4815, 0.5
      %v4900 = vmul.f32 %v4818, 0.5
      %v4901 = vmul.f32 %v4823, 0.5
      %v4902 = vmul.f32 %v4826, 0.5
      %v4903 = vmul.f32 %v4831, 0.5
      %v4904 = vmul.f32 %v4834, 0.5
      %v4905 = vmul.f32 %v4839, 0.5
      %v4906 = vmul.f32 %v4842, 0.5
      %v4907 = vmul.f32 %v4847, 0.5
      %v4908 = vmul.f32 %v4850, 0.5
      %v4909 = vmul.f32 %v4855, 0.5
      %v4910 = vmul.f32 %v4858, 0.5
      %v4911 = vmul.f32 %v4863, 0.5
      %v4912 = vmul.f32 %v4866, 0.5
      %v4913 = vmul.f32 %v4871, 0.5
      %v4914 = vmul.f32 %v4874, 0.5
      %v4915 = vmul.f32 %v4879, 0.5
      %v4916 = vmul.f32 %v4882, 0.5
      %v4917 = vmul.f32 %v4759, 0.044715
      %v4918 = vmul.f32 %v4762, 0.044715
      %v4919 = vmul.f32 %v4767, 0.044715
      %v4920 = vmul.f32 %v4770, 0.044715
      %v4921 = vmul.f32 %v4775, 0.044715
      %v4922 = vmul.f32 %v4778, 0.044715
      %v4923 = vmul.f32 %v4783, 0.044715
      %v4924 = vmul.f32 %v4786, 0.044715
      %v4925 = vmul.f32 %v4791, 0.044715
      %v4926 = vmul.f32 %v4794, 0.044715
      %v4927 = vmul.f32 %v4799, 0.044715
      %v4928 = vmul.f32 %v4802, 0.044715
      %v4929 = vmul.f32 %v4807, 0.044715
      %v4930 = vmul.f32 %v4810, 0.044715
      %v4931 = vmul.f32 %v4815, 0.044715
      %v4932 = vmul.f32 %v4818, 0.044715
      %v4933 = vmul.f32 %v4823, 0.044715
      %v4934 = vmul.f32 %v4826, 0.044715
      %v4935 = vmul.f32 %v4831, 0.044715
      %v4936 = vmul.f32 %v4834, 0.044715
      %v4937 = vmul.f32 %v4839, 0.044715
      %v4938 = vmul.f32 %v4842, 0.044715
      %v4939 = vmul.f32 %v4847, 0.044715
      %v4940 = vmul.f32 %v4850, 0.044715
      %v4941 = vmul.f32 %v4855, 0.044715
      %v4942 = vmul.f32 %v4858, 0.044715
      %v4943 = vmul.f32 %v4863, 0.044715
      %v4944 = vmul.f32 %v4866, 0.044715
      %v4945 = vmul.f32 %v4871, 0.044715
      %v4946 = vmul.f32 %v4874, 0.044715
      %v4947 = vmul.f32 %v4879, 0.044715
      %v4948 = vmul.f32 %v4882, 0.044715
      %v4949 = vmul.f32 %v4917, %v4759
      %v4950 = vmul.f32 %v4918, %v4762
      %v4951 = vmul.f32 %v4919, %v4767
      %v4952 = vmul.f32 %v4920, %v4770
      %v4953 = vmul.f32 %v4921, %v4775
      %v4954 = vmul.f32 %v4922, %v4778
      %v4955 = vmul.f32 %v4923, %v4783
      %v4956 = vmul.f32 %v4924, %v4786
      %v4957 = vmul.f32 %v4925, %v4791
      %v4958 = vmul.f32 %v4926, %v4794
      %v4959 = vmul.f32 %v4927, %v4799
      %v4960 = vmul.f32 %v4928, %v4802
      %v4961 = vmul.f32 %v4929, %v4807
      %v4962 = vmul.f32 %v4930, %v4810
      %v4963 = vmul.f32 %v4931, %v4815
      %v4964 = vmul.f32 %v4932, %v4818
      %v4965 = vmul.f32 %v4933, %v4823
      %v4966 = vmul.f32 %v4934, %v4826
      %v4967 = vmul.f32 %v4935, %v4831
      %v4968 = vmul.f32 %v4936, %v4834
      %v4969 = vmul.f32 %v4937, %v4839
      %v4970 = vmul.f32 %v4938, %v4842
      %v4971 = vmul.f32 %v4939, %v4847
      %v4972 = vmul.f32 %v4940, %v4850
      %v4973 = vmul.f32 %v4941, %v4855
      %v4974 = vmul.f32 %v4942, %v4858
      %v4975 = vmul.f32 %v4943, %v4863
      %v4976 = vmul.f32 %v4944, %v4866
      %v4977 = vmul.f32 %v4945, %v4871
      %v4978 = vmul.f32 %v4946, %v4874
      %v4979 = vmul.f32 %v4947, %v4879
      %v4980 = vmul.f32 %v4948, %v4882
      %v4981 = vmul.f32 %v4949, %v4759
      %v4982 = vmul.f32 %v4950, %v4762
      %v4983 = vmul.f32 %v4951, %v4767
      %v4984 = vmul.f32 %v4952, %v4770
      %v4985 = vmul.f32 %v4953, %v4775
      %v4986 = vmul.f32 %v4954, %v4778
      %v4987 = vmul.f32 %v4955, %v4783
      %v4988 = vmul.f32 %v4956, %v4786
      %v4989 = vmul.f32 %v4957, %v4791
      %v4990 = vmul.f32 %v4958, %v4794
      %v4991 = vmul.f32 %v4959, %v4799
      %v4992 = vmul.f32 %v4960, %v4802
      %v4993 = vmul.f32 %v4961, %v4807
      %v4994 = vmul.f32 %v4962, %v4810
      %v4995 = vmul.f32 %v4963, %v4815
      %v4996 = vmul.f32 %v4964, %v4818
      %v4997 = vmul.f32 %v4965, %v4823
      %v4998 = vmul.f32 %v4966, %v4826
      %v4999 = vmul.f32 %v4967, %v4831
      %v5000 = vmul.f32 %v4968, %v4834
      %v5001 = vmul.f32 %v4969, %v4839
      %v5002 = vmul.f32 %v4970, %v4842
      %v5003 = vmul.f32 %v4971, %v4847
      %v5004 = vmul.f32 %v4972, %v4850
      %v5005 = vmul.f32 %v4973, %v4855
      %v5006 = vmul.f32 %v4974, %v4858
      %v5007 = vmul.f32 %v4975, %v4863
      %v5008 = vmul.f32 %v4976, %v4866
      %v5009 = vmul.f32 %v4977, %v4871
      %v5010 = vmul.f32 %v4978, %v4874
      %v5011 = vmul.f32 %v4979, %v4879
      %v5012 = vmul.f32 %v4980, %v4882
      %v5013 = vadd.f32 %v4759, %v4981
      %v5014 = vadd.f32 %v4762, %v4982
      %v5015 = vadd.f32 %v4767, %v4983
      %v5016 = vadd.f32 %v4770, %v4984
      %v5017 = vadd.f32 %v4775, %v4985
      %v5018 = vadd.f32 %v4778, %v4986
      %v5019 = vadd.f32 %v4783, %v4987
      %v5020 = vadd.f32 %v4786, %v4988
      %v5021 = vadd.f32 %v4791, %v4989
      %v5022 = vadd.f32 %v4794, %v4990
      %v5023 = vadd.f32 %v4799, %v4991
      %v5024 = vadd.f32 %v4802, %v4992
      %v5025 = vadd.f32 %v4807, %v4993
      %v5026 = vadd.f32 %v4810, %v4994
      %v5027 = vadd.f32 %v4815, %v4995
      %v5028 = vadd.f32 %v4818, %v4996
      %v5029 = vadd.f32 %v4823, %v4997
      %v5030 = vadd.f32 %v4826, %v4998
      %v5031 = vadd.f32 %v4831, %v4999
      %v5032 = vadd.f32 %v4834, %v5000
      %v5033 = vadd.f32 %v4839, %v5001
      %v5034 = vadd.f32 %v4842, %v5002
      %v5035 = vadd.f32 %v4847, %v5003
      %v5036 = vadd.f32 %v4850, %v5004
      %v5037 = vadd.f32 %v4855, %v5005
      %v5038 = vadd.f32 %v4858, %v5006
      %v5039 = vadd.f32 %v4863, %v5007
      %v5040 = vadd.f32 %v4866, %v5008
      %v5041 = vadd.f32 %v4871, %v5009
      %v5042 = vadd.f32 %v4874, %v5010
      %v5043 = vadd.f32 %v4879, %v5011
      %v5044 = vadd.f32 %v4882, %v5012
      %v5045 = vmul.f32 %v5013, 0.7978846
      %v5046 = vmul.f32 %v5014, 0.7978846
      %v5047 = vmul.f32 %v5015, 0.7978846
      %v5048 = vmul.f32 %v5016, 0.7978846
      %v5049 = vmul.f32 %v5017, 0.7978846
      %v5050 = vmul.f32 %v5018, 0.7978846
      %v5051 = vmul.f32 %v5019, 0.7978846
      %v5052 = vmul.f32 %v5020, 0.7978846
      %v5053 = vmul.f32 %v5021, 0.7978846
      %v5054 = vmul.f32 %v5022, 0.7978846
      %v5055 = vmul.f32 %v5023, 0.7978846
      %v5056 = vmul.f32 %v5024, 0.7978846
      %v5057 = vmul.f32 %v5025, 0.7978846
      %v5058 = vmul.f32 %v5026, 0.7978846
      %v5059 = vmul.f32 %v5027, 0.7978846
      %v5060 = vmul.f32 %v5028, 0.7978846
      %v5061 = vmul.f32 %v5029, 0.7978846
      %v5062 = vmul.f32 %v5030, 0.7978846
      %v5063 = vmul.f32 %v5031, 0.7978846
      %v5064 = vmul.f32 %v5032, 0.7978846
      %v5065 = vmul.f32 %v5033, 0.7978846
      %v5066 = vmul.f32 %v5034, 0.7978846
      %v5067 = vmul.f32 %v5035, 0.7978846
      %v5068 = vmul.f32 %v5036, 0.7978846
      %v5069 = vmul.f32 %v5037, 0.7978846
      %v5070 = vmul.f32 %v5038, 0.7978846
      %v5071 = vmul.f32 %v5039, 0.7978846
      %v5072 = vmul.f32 %v5040, 0.7978846
      %v5073 = vmul.f32 %v5041, 0.7978846
      %v5074 = vmul.f32 %v5042, 0.7978846
      %v5075 = vmul.f32 %v5043, 0.7978846
      %v5076 = vmul.f32 %v5044, 0.7978846
      %v5077 = vtanh.pop %v5045
      %v5078 = vtanh.pop %v5046
      %v5079 = vtanh.pop %v5047
      %v5080 = vtanh.pop %v5048
      %v5081 = vtanh.pop %v5049
      %v5082 = vtanh.pop %v5050
      %v5083 = vtanh.pop %v5051
      %v5084 = vtanh.pop %v5052
      %v5085 = vtanh.pop %v5053
      %v5086 = vtanh.pop %v5054
      %v5087 = vtanh.pop %v5055
      %v5088 = vtanh.pop %v5056
      %v5089 = vtanh.pop %v5057
      %v5090 = vtanh.pop %v5058
      %v5091 = vtanh.pop %v5059
      %v5092 = vtanh.pop %v5060
      %v5093 = vtanh.pop %v5061
      %v5094 = vtanh.pop %v5062
      %v5095 = vtanh.pop %v5063
      %v5096 = vtanh.pop %v5064
      %v5097 = vtanh.pop %v5065
      %v5098 = vtanh.pop %v5066
      %v5099 = vtanh.pop %v5067
      %v5100 = vtanh.pop %v5068
      %v5101 = vtanh.pop %v5069
      %v5102 = vtanh.pop %v5070
      %v5103 = vtanh.pop %v5071
      %v5104 = vtanh.pop %v5072
      %v5105 = vtanh.pop %v5073
      %v5106 = vtanh.pop %v5074
      %v5107 = vtanh.pop %v5075
      %v5108 = vtanh.pop %v5076
      %v5109 = vadd.f32 %v5077, 1.0
      %v5110 = vadd.f32 %v5078, 1.0
      %v5111 = vadd.f32 %v5079, 1.0
      %v5112 = vadd.f32 %v5080, 1.0
      %v5113 = vadd.f32 %v5081, 1.0
      %v5114 = vadd.f32 %v5082, 1.0
      %v5115 = vadd.f32 %v5083, 1.0
      %v5116 = vadd.f32 %v5084, 1.0
      %v5117 = vadd.f32 %v5085, 1.0
      %v5118 = vadd.f32 %v5086, 1.0
      %v5119 = vadd.f32 %v5087, 1.0
      %v5120 = vadd.f32 %v5088, 1.0
      %v5121 = vadd.f32 %v5089, 1.0
      %v5122 = vadd.f32 %v5090, 1.0
      %v5123 = vadd.f32 %v5091, 1.0
      %v5124 = vadd.f32 %v5092, 1.0
      %v5125 = vadd.f32 %v5093, 1.0
      %v5126 = vadd.f32 %v5094, 1.0
      %v5127 = vadd.f32 %v5095, 1.0
      %v5128 = vadd.f32 %v5096, 1.0
      %v5129 = vadd.f32 %v5097, 1.0
      %v5130 = vadd.f32 %v5098, 1.0
      %v5131 = vadd.f32 %v5099, 1.0
      %v5132 = vadd.f32 %v5100, 1.0
      %v5133 = vadd.f32 %v5101, 1.0
      %v5134 = vadd.f32 %v5102, 1.0
      %v5135 = vadd.f32 %v5103, 1.0
      %v5136 = vadd.f32 %v5104, 1.0
      %v5137 = vadd.f32 %v5105, 1.0
      %v5138 = vadd.f32 %v5106, 1.0
      %v5139 = vadd.f32 %v5107, 1.0
      %v5140 = vadd.f32 %v5108, 1.0
      %v5141 = vmul.f32 %v4885, %v5109
      %v5142 = vmul.f32 %v4886, %v5110
      %v5143 = vmul.f32 %v4887, %v5111
      %v5144 = vmul.f32 %v4888, %v5112
      %v5145 = vmul.f32 %v4889, %v5113
      %v5146 = vmul.f32 %v4890, %v5114
      %v5147 = vmul.f32 %v4891, %v5115
      %v5148 = vmul.f32 %v4892, %v5116
      %v5149 = vmul.f32 %v4893, %v5117
      %v5150 = vmul.f32 %v4894, %v5118
      %v5151 = vmul.f32 %v4895, %v5119
      %v5152 = vmul.f32 %v4896, %v5120
      %v5153 = vmul.f32 %v4897, %v5121
      %v5154 = vmul.f32 %v4898, %v5122
      %v5155 = vmul.f32 %v4899, %v5123
      %v5156 = vmul.f32 %v4900, %v5124
      %v5157 = vmul.f32 %v4901, %v5125
      %v5158 = vmul.f32 %v4902, %v5126
      %v5159 = vmul.f32 %v4903, %v5127
      %v5160 = vmul.f32 %v4904, %v5128
      %v5161 = vmul.f32 %v4905, %v5129
      %v5162 = vmul.f32 %v4906, %v5130
      %v5163 = vmul.f32 %v4907, %v5131
      %v5164 = vmul.f32 %v4908, %v5132
      %v5165 = vmul.f32 %v4909, %v5133
      %v5166 = vmul.f32 %v4910, %v5134
      %v5167 = vmul.f32 %v4911, %v5135
      %v5168 = vmul.f32 %v4912, %v5136
      %v5169 = vmul.f32 %v4913, %v5137
      %v5170 = vmul.f32 %v4914, %v5138
      %v5171 = vmul.f32 %v4915, %v5139
      %v5172 = vmul.f32 %v4916, %v5140
      %v5173 = vpack.c.bf16 %v5142, %v5141
      %v5174 = vpack.c.bf16 %v5144, %v5143
      %v5175 = vpack.c.bf16 %v5146, %v5145
      %v5176 = vpack.c.bf16 %v5148, %v5147
      %v5177 = vpack.c.bf16 %v5150, %v5149
      %v5178 = vpack.c.bf16 %v5152, %v5151
      %v5179 = vpack.c.bf16 %v5154, %v5153
      %v5180 = vpack.c.bf16 %v5156, %v5155
      %v5181 = vpack.c.bf16 %v5158, %v5157
      %v5182 = vpack.c.bf16 %v5160, %v5159
      %v5183 = vpack.c.bf16 %v5162, %v5161
      %v5184 = vpack.c.bf16 %v5164, %v5163
      %v5185 = vpack.c.bf16 %v5166, %v5165
      %v5186 = vpack.c.bf16 %v5168, %v5167
      %v5187 = vpack.c.bf16 %v5170, %v5169
      %v5188 = vpack.c.bf16 %v5172, %v5171
      %v5189 = vld [vmem:[%s5] sm:$0xf]
      %v5190 = vld [vmem:[%s6] sm:$0x1]
      %v5192 = vlaneseq
      %v5193 = vshrl.u32 %v5192, 7
      %v5194 = vsub.s32 0, %v5193
      %v5195 = vrot.slane %v5190, %v5194
      %v5198 = vsel %vm4348, %v5173, 0
      %v5201 = vsel %vm4348, %v5174, 0
      %v5204 = vsel %vm4348, %v5175, 0
      %v5207 = vsel %vm4348, %v5176, 0
      %v5210 = vsel %vm4348, %v5177, 0
      %v5213 = vsel %vm4348, %v5178, 0
      %v5216 = vsel %vm4348, %v5179, 0
      %v5219 = vsel %vm4348, %v5180, 0
      %v5222 = vsel %vm4348, %v5181, 0
      %v5225 = vsel %vm4348, %v5182, 0
      %v5228 = vsel %vm4348, %v5183, 0
      %v5231 = vsel %vm4348, %v5184, 0
      %v5234 = vsel %vm4348, %v5185, 0
      %v5237 = vsel %vm4348, %v5186, 0
      %v5240 = vsel %vm4348, %v5187, 0
      %v5243 = vsel %vm4348, %v5188, 0
      %v5246 = vsel %vm4720, %v5189, 0
      %5248 = vmatprep.subr.bf16.mxu0 0
      %5249 = vmatpush1.bf16.msra.mxu0 %v5246
      %5250 = vmatprep.subr.bf16.mxu0 0
      %5251 = vmatpush1.bf16.msra.mxu0 0
      %5252 = vmatprep.subr.bf16.mxu0 0
      %5253 = vmatpush1.bf16.msra.mxu0 0
      %5254 = vmatprep.subr.bf16.mxu0 0
      %5255 = vmatpush1.bf16.msra.mxu0 0
      %5256 = vmatprep.subr.bf16.mxu0 0
      %5257 = vmatpush1.bf16.msra.mxu0 0
      %5258 = vmatprep.subr.bf16.mxu0 0
      %5259 = vmatpush1.bf16.msra.mxu0 0
      %5260 = vmatprep.subr.bf16.mxu0 0
      %5261 = vmatpush1.bf16.msra.mxu0 0
      %5262 = vmatprep.subr.bf16.mxu0 0
      %5263 = vmatpush1.bf16.msra.mxu0 0
      %5264 = vmatprep.subr.bf16.mxu0 0
      %5265 = vmatpush1.bf16.msra.mxu0 0
      %5266 = vmatprep.subr.bf16.mxu0 0
      %5267 = vmatpush1.bf16.msra.mxu0 0
      %5268 = vmatprep.subr.bf16.mxu0 0
      %5269 = vmatpush1.bf16.msra.mxu0 0
      %5270 = vmatprep.subr.bf16.mxu0 0
      %5271 = vmatpush1.bf16.msra.mxu0 0
      %5272 = vmatprep.subr.bf16.mxu0 0
      %5273 = vmatpush1.bf16.msra.mxu0 0
      %5274 = vmatprep.subr.bf16.mxu0 0
      %5275 = vmatpush1.bf16.msra.mxu0 0
      %5276 = vmatprep.subr.bf16.mxu0 0
      %5277 = vmatpush1.bf16.msra.mxu0 0
      %5278 = vmatprep.subr.bf16.mxu0 0
      %5279 = vmatpush1.bf16.msra.mxu0 0
      %5280 = vmatprep.mubr.bf16.mxu0 0
      %5281 = vmatmul.mubr.bf16.gmra.mrb[0].mxu0 %v5198
      %v5282 = vpop.f32.mrb[0].mxu0
      %v5283 = vadd.f32 %v5195, %v5282
      %v5284 = vpop.f32.mrb[0].mxu0
      %v5285 = vpop.f32.mrb[0].mxu0
      %v5286 = vadd.f32 %v5195, %v5285
      %v5287 = vpop.f32.mrb[0].mxu0
      %5288 = vmatprep.mubr.bf16.mxu0 0
      %5289 = vmatmul.mubr.bf16.gmra.mrb[0].mxu0 %v5201
      %v5290 = vpop.f32.mrb[0].mxu0
      %v5291 = vadd.f32 %v5195, %v5290
      %v5292 = vpop.f32.mrb[0].mxu0
      %v5293 = vpop.f32.mrb[0].mxu0
      %v5294 = vadd.f32 %v5195, %v5293
      %v5295 = vpop.f32.mrb[0].mxu0
      %5296 = vmatprep.mubr.bf16.mxu0 0
      %5297 = vmatmul.mubr.bf16.gmra.mrb[0].mxu0 %v5204
      %v5298 = vpop.f32.mrb[0].mxu0
      %v5299 = vadd.f32 %v5195, %v5298
      %v5300 = vpop.f32.mrb[0].mxu0
      %v5301 = vpop.f32.mrb[0].mxu0
      %v5302 = vadd.f32 %v5195, %v5301
      %v5303 = vpop.f32.mrb[0].mxu0
      %5304 = vmatprep.mubr.bf16.mxu0 0
      %5305 = vmatmul.mubr.bf16.gmra.mrb[0].mxu0 %v5207
      %v5306 = vpop.f32.mrb[0].mxu0
      %v5307 = vadd.f32 %v5195, %v5306
      %v5308 = vpop.f32.mrb[0].mxu0
      %v5309 = vpop.f32.mrb[0].mxu0
      %v5310 = vadd.f32 %v5195, %v5309
      %v5311 = vpop.f32.mrb[0].mxu0
      %5312 = vmatprep.mubr.bf16.mxu0 0
      %5313 = vmatmul.mubr.bf16.gmra.mrb[0].mxu0 %v5210
      %v5314 = vpop.f32.mrb[0].mxu0
      %v5315 = vadd.f32 %v5195, %v5314
      %v5316 = vpop.f32.mrb[0].mxu0
      %v5317 = vpop.f32.mrb[0].mxu0
      %v5318 = vadd.f32 %v5195, %v5317
      %v5319 = vpop.f32.mrb[0].mxu0
      %5320 = vmatprep.mubr.bf16.mxu0 0
      %5321 = vmatmul.mubr.bf16.gmra.mrb[0].mxu0 %v5213
      %v5322 = vpop.f32.mrb[0].mxu0
      %v5323 = vadd.f32 %v5195, %v5322
      %v5324 = vpop.f32.mrb[0].mxu0
      %v5325 = vpop.f32.mrb[0].mxu0
      %v5326 = vadd.f32 %v5195, %v5325
      %v5327 = vpop.f32.mrb[0].mxu0
      %5328 = vmatprep.mubr.bf16.mxu0 0
      %5329 = vmatmul.mubr.bf16.gmra.mrb[0].mxu0 %v5216
      %v5330 = vpop.f32.mrb[0].mxu0
      %v5331 = vadd.f32 %v5195, %v5330
      %v5332 = vpop.f32.mrb[0].mxu0
      %v5333 = vpop.f32.mrb[0].mxu0
      %v5334 = vadd.f32 %v5195, %v5333
      %v5335 = vpop.f32.mrb[0].mxu0
      %5336 = vmatprep.mubr.bf16.mxu0 0
      %5337 = vmatmul.mubr.bf16.gmra.mrb[0].mxu0 %v5219
      %v5338 = vpop.f32.mrb[0].mxu0
      %v5339 = vadd.f32 %v5195, %v5338
      %v5340 = vpop.f32.mrb[0].mxu0
      %v5341 = vpop.f32.mrb[0].mxu0
      %v5342 = vadd.f32 %v5195, %v5341
      %v5343 = vpop.f32.mrb[0].mxu0
      %5344 = vmatprep.mubr.bf16.mxu0 0
      %5345 = vmatmul.mubr.bf16.gmra.mrb[0].mxu0 %v5222
      %v5346 = vpop.f32.mrb[0].mxu0
      %v5347 = vadd.f32 %v5195, %v5346
      %v5348 = vpop.f32.mrb[0].mxu0
      %v5349 = vpop.f32.mrb[0].mxu0
      %v5350 = vadd.f32 %v5195, %v5349
      %v5351 = vpop.f32.mrb[0].mxu0
      %5352 = vmatprep.mubr.bf16.mxu0 0
      %5353 = vmatmul.mubr.bf16.gmra.mrb[0].mxu0 %v5225
      %v5354 = vpop.f32.mrb[0].mxu0
      %v5355 = vadd.f32 %v5195, %v5354
      %v5356 = vpop.f32.mrb[0].mxu0
      %v5357 = vpop.f32.mrb[0].mxu0
      %v5358 = vadd.f32 %v5195, %v5357
      %v5359 = vpop.f32.mrb[0].mxu0
      %5360 = vmatprep.mubr.bf16.mxu0 0
      %5361 = vmatmul.mubr.bf16.gmra.mrb[0].mxu0 %v5228
      %v5362 = vpop.f32.mrb[0].mxu0
      %v5363 = vadd.f32 %v5195, %v5362
      %v5364 = vpop.f32.mrb[0].mxu0
      %v5365 = vpop.f32.mrb[0].mxu0
      %v5366 = vadd.f32 %v5195, %v5365
      %v5367 = vpop.f32.mrb[0].mxu0
      %5368 = vmatprep.mubr.bf16.mxu0 0
      %5369 = vmatmul.mubr.bf16.gmra.mrb[0].mxu0 %v5231
      %v5370 = vpop.f32.mrb[0].mxu0
      %v5371 = vadd.f32 %v5195, %v5370
      %v5372 = vpop.f32.mrb[0].mxu0
      %v5373 = vpop.f32.mrb[0].mxu0
      %v5374 = vadd.f32 %v5195, %v5373
      %v5375 = vpop.f32.mrb[0].mxu0
      %5376 = vmatprep.mubr.bf16.mxu0 0
      %5377 = vmatmul.mubr.bf16.gmra.mrb[0].mxu0 %v5234
      %v5378 = vpop.f32.mrb[0].mxu0
      %v5379 = vadd.f32 %v5195, %v5378
      %v5380 = vpop.f32.mrb[0].mxu0
      %v5381 = vpop.f32.mrb[0].mxu0
      %v5382 = vadd.f32 %v5195, %v5381
      %v5383 = vpop.f32.mrb[0].mxu0
      %5384 = vmatprep.mubr.bf16.mxu0 0
      %5385 = vmatmul.mubr.bf16.gmra.mrb[0].mxu0 %v5237
      %v5386 = vpop.f32.mrb[0].mxu0
      %v5387 = vadd.f32 %v5195, %v5386
      %v5388 = vpop.f32.mrb[0].mxu0
      %v5389 = vpop.f32.mrb[0].mxu0
      %v5390 = vadd.f32 %v5195, %v5389
      %v5391 = vpop.f32.mrb[0].mxu0
      %5392 = vmatprep.mubr.bf16.mxu0 0
      %5393 = vmatmul.mubr.bf16.gmra.mrb[0].mxu0 %v5240
      %v5394 = vpop.f32.mrb[0].mxu0
      %v5395 = vadd.f32 %v5195, %v5394
      %v5396 = vpop.f32.mrb[0].mxu0
      %v5397 = vpop.f32.mrb[0].mxu0
      %v5398 = vadd.f32 %v5195, %v5397
      %v5399 = vpop.f32.mrb[0].mxu0
      %5400 = vmatprep.mubr.bf16.mxu0 0
      %5401 = vmatmul.mubr.bf16.gmra.mrb[0].mxu0 %v5243
      %v5402 = vpop.f32.mrb[0].mxu0
      %v5403 = vadd.f32 %v5195, %v5402
      %v5404 = vpop.f32.mrb[0].mxu0
      %v5405 = vpop.f32.mrb[0].mxu0
      %v5406 = vadd.f32 %v5195, %v5405
      %v5407 = vpop.f32.mrb[0].mxu0
      %5408 = vdwg.mxu0
      %v5409 = vmul.f32 %v5283, 0.5
      %v5410 = vmul.f32 %v5286, 0.5
      %v5411 = vmul.f32 %v5291, 0.5
      %v5412 = vmul.f32 %v5294, 0.5
      %v5413 = vmul.f32 %v5299, 0.5
      %v5414 = vmul.f32 %v5302, 0.5
      %v5415 = vmul.f32 %v5307, 0.5
      %v5416 = vmul.f32 %v5310, 0.5
      %v5417 = vmul.f32 %v5315, 0.5
      %v5418 = vmul.f32 %v5318, 0.5
      %v5419 = vmul.f32 %v5323, 0.5
      %v5420 = vmul.f32 %v5326, 0.5
      %v5421 = vmul.f32 %v5331, 0.5
      %v5422 = vmul.f32 %v5334, 0.5
      %v5423 = vmul.f32 %v5339, 0.5
      %v5424 = vmul.f32 %v5342, 0.5
      %v5425 = vmul.f32 %v5347, 0.5
      %v5426 = vmul.f32 %v5350, 0.5
      %v5427 = vmul.f32 %v5355, 0.5
      %v5428 = vmul.f32 %v5358, 0.5
      %v5429 = vmul.f32 %v5363, 0.5
      %v5430 = vmul.f32 %v5366, 0.5
      %v5431 = vmul.f32 %v5371, 0.5
      %v5432 = vmul.f32 %v5374, 0.5
      %v5433 = vmul.f32 %v5379, 0.5
      %v5434 = vmul.f32 %v5382, 0.5
      %v5435 = vmul.f32 %v5387, 0.5
      %v5436 = vmul.f32 %v5390, 0.5
      %v5437 = vmul.f32 %v5395, 0.5
      %v5438 = vmul.f32 %v5398, 0.5
      %v5439 = vmul.f32 %v5403, 0.5
      %v5440 = vmul.f32 %v5406, 0.5
      %v5441 = vmul.f32 %v5283, 0.044715
      %v5442 = vmul.f32 %v5286, 0.044715
      %v5443 = vmul.f32 %v5291, 0.044715
      %v5444 = vmul.f32 %v5294, 0.044715
      %v5445 = vmul.f32 %v5299, 0.044715
      %v5446 = vmul.f32 %v5302, 0.044715
      %v5447 = vmul.f32 %v5307, 0.044715
      %v5448 = vmul.f32 %v5310, 0.044715
      %v5449 = vmul.f32 %v5315, 0.044715
      %v5450 = vmul.f32 %v5318, 0.044715
      %v5451 = vmul.f32 %v5323, 0.044715
      %v5452 = vmul.f32 %v5326, 0.044715
      %v5453 = vmul.f32 %v5331, 0.044715
      %v5454 = vmul.f32 %v5334, 0.044715
      %v5455 = vmul.f32 %v5339, 0.044715
      %v5456 = vmul.f32 %v5342, 0.044715
      %v5457 = vmul.f32 %v5347, 0.044715
      %v5458 = vmul.f32 %v5350, 0.044715
      %v5459 = vmul.f32 %v5355, 0.044715
      %v5460 = vmul.f32 %v5358, 0.044715
      %v5461 = vmul.f32 %v5363, 0.044715
      %v5462 = vmul.f32 %v5366, 0.044715
      %v5463 = vmul.f32 %v5371, 0.044715
      %v5464 = vmul.f32 %v5374, 0.044715
      %v5465 = vmul.f32 %v5379, 0.044715
      %v5466 = vmul.f32 %v5382, 0.044715
      %v5467 = vmul.f32 %v5387, 0.044715
      %v5468 = vmul.f32 %v5390, 0.044715
      %v5469 = vmul.f32 %v5395, 0.044715
      %v5470 = vmul.f32 %v5398, 0.044715
      %v5471 = vmul.f32 %v5403, 0.044715
      %v5472 = vmul.f32 %v5406, 0.044715
      %v5473 = vmul.f32 %v5441, %v5283
      %v5474 = vmul.f32 %v5442, %v5286
      %v5475 = vmul.f32 %v5443, %v5291
      %v5476 = vmul.f32 %v5444, %v5294
      %v5477 = vmul.f32 %v5445, %v5299
      %v5478 = vmul.f32 %v5446, %v5302
      %v5479 = vmul.f32 %v5447, %v5307
      %v5480 = vmul.f32 %v5448, %v5310
      %v5481 = vmul.f32 %v5449, %v5315
      %v5482 = vmul.f32 %v5450, %v5318
      %v5483 = vmul.f32 %v5451, %v5323
      %v5484 = vmul.f32 %v5452, %v5326
      %v5485 = vmul.f32 %v5453, %v5331
      %v5486 = vmul.f32 %v5454, %v5334
      %v5487 = vmul.f32 %v5455, %v5339
      %v5488 = vmul.f32 %v5456, %v5342
      %v5489 = vmul.f32 %v5457, %v5347
      %v5490 = vmul.f32 %v5458, %v5350
      %v5491 = vmul.f32 %v5459, %v5355
      %v5492 = vmul.f32 %v5460, %v5358
      %v5493 = vmul.f32 %v5461, %v5363
      %v5494 = vmul.f32 %v5462, %v5366
      %v5495 = vmul.f32 %v5463, %v5371
      %v5496 = vmul.f32 %v5464, %v5374
      %v5497 = vmul.f32 %v5465, %v5379
      %v5498 = vmul.f32 %v5466, %v5382
      %v5499 = vmul.f32 %v5467, %v5387
      %v5500 = vmul.f32 %v5468, %v5390
      %v5501 = vmul.f32 %v5469, %v5395
      %v5502 = vmul.f32 %v5470, %v5398
      %v5503 = vmul.f32 %v5471, %v5403
      %v5504 = vmul.f32 %v5472, %v5406
      %v5505 = vmul.f32 %v5473, %v5283
      %v5506 = vmul.f32 %v5474, %v5286
      %v5507 = vmul.f32 %v5475, %v5291
      %v5508 = vmul.f32 %v5476, %v5294
      %v5509 = vmul.f32 %v5477, %v5299
      %v5510 = vmul.f32 %v5478, %v5302
      %v5511 = vmul.f32 %v5479, %v5307
      %v5512 = vmul.f32 %v5480, %v5310
      %v5513 = vmul.f32 %v5481, %v5315
      %v5514 = vmul.f32 %v5482, %v5318
      %v5515 = vmul.f32 %v5483, %v5323
      %v5516 = vmul.f32 %v5484, %v5326
      %v5517 = vmul.f32 %v5485, %v5331
      %v5518 = vmul.f32 %v5486, %v5334
      %v5519 = vmul.f32 %v5487, %v5339
      %v5520 = vmul.f32 %v5488, %v5342
      %v5521 = vmul.f32 %v5489, %v5347
      %v5522 = vmul.f32 %v5490, %v5350
      %v5523 = vmul.f32 %v5491, %v5355
      %v5524 = vmul.f32 %v5492, %v5358
      %v5525 = vmul.f32 %v5493, %v5363
      %v5526 = vmul.f32 %v5494, %v5366
      %v5527 = vmul.f32 %v5495, %v5371
      %v5528 = vmul.f32 %v5496, %v5374
      %v5529 = vmul.f32 %v5497, %v5379
      %v5530 = vmul.f32 %v5498, %v5382
      %v5531 = vmul.f32 %v5499, %v5387
      %v5532 = vmul.f32 %v5500, %v5390
      %v5533 = vmul.f32 %v5501, %v5395
      %v5534 = vmul.f32 %v5502, %v5398
      %v5535 = vmul.f32 %v5503, %v5403
      %v5536 = vmul.f32 %v5504, %v5406
      %v5537 = vadd.f32 %v5283, %v5505
      %v5538 = vadd.f32 %v5286, %v5506
      %v5539 = vadd.f32 %v5291, %v5507
      %v5540 = vadd.f32 %v5294, %v5508
      %v5541 = vadd.f32 %v5299, %v5509
      %v5542 = vadd.f32 %v5302, %v5510
      %v5543 = vadd.f32 %v5307, %v5511
      %v5544 = vadd.f32 %v5310, %v5512
      %v5545 = vadd.f32 %v5315, %v5513
      %v5546 = vadd.f32 %v5318, %v5514
      %v5547 = vadd.f32 %v5323, %v5515
      %v5548 = vadd.f32 %v5326, %v5516
      %v5549 = vadd.f32 %v5331, %v5517
      %v5550 = vadd.f32 %v5334, %v5518
      %v5551 = vadd.f32 %v5339, %v5519
      %v5552 = vadd.f32 %v5342, %v5520
      %v5553 = vadd.f32 %v5347, %v5521
      %v5554 = vadd.f32 %v5350, %v5522
      %v5555 = vadd.f32 %v5355, %v5523
      %v5556 = vadd.f32 %v5358, %v5524
      %v5557 = vadd.f32 %v5363, %v5525
      %v5558 = vadd.f32 %v5366, %v5526
      %v5559 = vadd.f32 %v5371, %v5527
      %v5560 = vadd.f32 %v5374, %v5528
      %v5561 = vadd.f32 %v5379, %v5529
      %v5562 = vadd.f32 %v5382, %v5530
      %v5563 = vadd.f32 %v5387, %v5531
      %v5564 = vadd.f32 %v5390, %v5532
      %v5565 = vadd.f32 %v5395, %v5533
      %v5566 = vadd.f32 %v5398, %v5534
      %v5567 = vadd.f32 %v5403, %v5535
      %v5568 = vadd.f32 %v5406, %v5536
      %v5569 = vmul.f32 %v5537, 0.7978846
      %v5570 = vmul.f32 %v5538, 0.7978846
      %v5571 = vmul.f32 %v5539, 0.7978846
      %v5572 = vmul.f32 %v5540, 0.7978846
      %v5573 = vmul.f32 %v5541, 0.7978846
      %v5574 = vmul.f32 %v5542, 0.7978846
      %v5575 = vmul.f32 %v5543, 0.7978846
      %v5576 = vmul.f32 %v5544, 0.7978846
      %v5577 = vmul.f32 %v5545, 0.7978846
      %v5578 = vmul.f32 %v5546, 0.7978846
      %v5579 = vmul.f32 %v5547, 0.7978846
      %v5580 = vmul.f32 %v5548, 0.7978846
      %v5581 = vmul.f32 %v5549, 0.7978846
      %v5582 = vmul.f32 %v5550, 0.7978846
      %v5583 = vmul.f32 %v5551, 0.7978846
      %v5584 = vmul.f32 %v5552, 0.7978846
      %v5585 = vmul.f32 %v5553, 0.7978846
      %v5586 = vmul.f32 %v5554, 0.7978846
      %v5587 = vmul.f32 %v5555, 0.7978846
      %v5588 = vmul.f32 %v5556, 0.7978846
      %v5589 = vmul.f32 %v5557, 0.7978846
      %v5590 = vmul.f32 %v5558, 0.7978846
      %v5591 = vmul.f32 %v5559, 0.7978846
      %v5592 = vmul.f32 %v5560, 0.7978846
      %v5593 = vmul.f32 %v5561, 0.7978846
      %v5594 = vmul.f32 %v5562, 0.7978846
      %v5595 = vmul.f32 %v5563, 0.7978846
      %v5596 = vmul.f32 %v5564, 0.7978846
      %v5597 = vmul.f32 %v5565, 0.7978846
      %v5598 = vmul.f32 %v5566, 0.7978846
      %v5599 = vmul.f32 %v5567, 0.7978846
      %v5600 = vmul.f32 %v5568, 0.7978846
      %v5601 = vtanh.pop %v5569
      %v5602 = vtanh.pop %v5570
      %v5603 = vtanh.pop %v5571
      %v5604 = vtanh.pop %v5572
      %v5605 = vtanh.pop %v5573
      %v5606 = vtanh.pop %v5574
      %v5607 = vtanh.pop %v5575
      %v5608 = vtanh.pop %v5576
      %v5609 = vtanh.pop %v5577
      %v5610 = vtanh.pop %v5578
      %v5611 = vtanh.pop %v5579
      %v5612 = vtanh.pop %v5580
      %v5613 = vtanh.pop %v5581
      %v5614 = vtanh.pop %v5582
      %v5615 = vtanh.pop %v5583
      %v5616 = vtanh.pop %v5584
      %v5617 = vtanh.pop %v5585
      %v5618 = vtanh.pop %v5586
      %v5619 = vtanh.pop %v5587
      %v5620 = vtanh.pop %v5588
      %v5621 = vtanh.pop %v5589
      %v5622 = vtanh.pop %v5590
      %v5623 = vtanh.pop %v5591
      %v5624 = vtanh.pop %v5592
      %v5625 = vtanh.pop %v5593
      %v5626 = vtanh.pop %v5594
      %v5627 = vtanh.pop %v5595
      %v5628 = vtanh.pop %v5596
      %v5629 = vtanh.pop %v5597
      %v5630 = vtanh.pop %v5598
      %v5631 = vtanh.pop %v5599
      %v5632 = vtanh.pop %v5600
      %v5633 = vadd.f32 %v5601, 1.0
      %v5634 = vadd.f32 %v5602, 1.0
      %v5635 = vadd.f32 %v5603, 1.0
      %v5636 = vadd.f32 %v5604, 1.0
      %v5637 = vadd.f32 %v5605, 1.0
      %v5638 = vadd.f32 %v5606, 1.0
      %v5639 = vadd.f32 %v5607, 1.0
      %v5640 = vadd.f32 %v5608, 1.0
      %v5641 = vadd.f32 %v5609, 1.0
      %v5642 = vadd.f32 %v5610, 1.0
      %v5643 = vadd.f32 %v5611, 1.0
      %v5644 = vadd.f32 %v5612, 1.0
      %v5645 = vadd.f32 %v5613, 1.0
      %v5646 = vadd.f32 %v5614, 1.0
      %v5647 = vadd.f32 %v5615, 1.0
      %v5648 = vadd.f32 %v5616, 1.0
      %v5649 = vadd.f32 %v5617, 1.0
      %v5650 = vadd.f32 %v5618, 1.0
      %v5651 = vadd.f32 %v5619, 1.0
      %v5652 = vadd.f32 %v5620, 1.0
      %v5653 = vadd.f32 %v5621, 1.0
      %v5654 = vadd.f32 %v5622, 1.0
      %v5655 = vadd.f32 %v5623, 1.0
      %v5656 = vadd.f32 %v5624, 1.0
      %v5657 = vadd.f32 %v5625, 1.0
      %v5658 = vadd.f32 %v5626, 1.0
      %v5659 = vadd.f32 %v5627, 1.0
      %v5660 = vadd.f32 %v5628, 1.0
      %v5661 = vadd.f32 %v5629, 1.0
      %v5662 = vadd.f32 %v5630, 1.0
      %v5663 = vadd.f32 %v5631, 1.0
      %v5664 = vadd.f32 %v5632, 1.0
      %v5665 = vmul.f32 %v5409, %v5633
      %v5666 = vmul.f32 %v5410, %v5634
      %v5667 = vmul.f32 %v5411, %v5635
      %v5668 = vmul.f32 %v5412, %v5636
      %v5669 = vmul.f32 %v5413, %v5637
      %v5670 = vmul.f32 %v5414, %v5638
      %v5671 = vmul.f32 %v5415, %v5639
      %v5672 = vmul.f32 %v5416, %v5640
      %v5673 = vmul.f32 %v5417, %v5641
      %v5674 = vmul.f32 %v5418, %v5642
      %v5675 = vmul.f32 %v5419, %v5643
      %v5676 = vmul.f32 %v5420, %v5644
      %v5677 = vmul.f32 %v5421, %v5645
      %v5678 = vmul.f32 %v5422, %v5646
      %v5679 = vmul.f32 %v5423, %v5647
      %v5680 = vmul.f32 %v5424, %v5648
      %v5681 = vmul.f32 %v5425, %v5649
      %v5682 = vmul.f32 %v5426, %v5650
      %v5683 = vmul.f32 %v5427, %v5651
      %v5684 = vmul.f32 %v5428, %v5652
      %v5685 = vmul.f32 %v5429, %v5653
      %v5686 = vmul.f32 %v5430, %v5654
      %v5687 = vmul.f32 %v5431, %v5655
      %v5688 = vmul.f32 %v5432, %v5656
      %v5689 = vmul.f32 %v5433, %v5657
      %v5690 = vmul.f32 %v5434, %v5658
      %v5691 = vmul.f32 %v5435, %v5659
      %v5692 = vmul.f32 %v5436, %v5660
      %v5693 = vmul.f32 %v5437, %v5661
      %v5694 = vmul.f32 %v5438, %v5662
      %v5695 = vmul.f32 %v5439, %v5663
      %v5696 = vmul.f32 %v5440, %v5664
      %v5697 = vld [vmem:[%s7] sm:$0x3]
      %v5698 = vld [vmem:[%s8] sm:$0x1]
      %v5700 = vlaneseq
      %v5701 = vshrl.u32 %v5700, 7
      %v5702 = vsub.s32 0, %v5701
      %v5703 = vrot.slane %v5698, %v5702
      %v5706 = vsel %vm439, %v5697, 0
      %5708 = vmatprep.subr.bf16.mxu0 0
      %5709 = vmatpush1.bf16.msra.mxu0 %v5706
      %5710 = vmatprep.subr.bf16.mxu0 0
      %5711 = vmatpush1.bf16.msra.mxu0 0
      %5712 = vmatprep.subr.bf16.mxu0 0
      %5713 = vmatpush1.bf16.msra.mxu0 0
      %5714 = vmatprep.subr.bf16.mxu0 0
      %5715 = vmatpush1.bf16.msra.mxu0 0
      %5716 = vmatprep.subr.bf16.mxu0 0
      %5717 = vmatpush1.bf16.msra.mxu0 0
      %5718 = vmatprep.subr.bf16.mxu0 0
      %5719 = vmatpush1.bf16.msra.mxu0 0
      %5720 = vmatprep.subr.bf16.mxu0 0
      %5721 = vmatpush1.bf16.msra.mxu0 0
      %5722 = vmatprep.subr.bf16.mxu0 0
      %5723 = vmatpush1.bf16.msra.mxu0 0
      %5724 = vmatprep.subr.bf16.mxu0 0
      %5725 = vmatpush1.bf16.msra.mxu0 0
      %5726 = vmatprep.subr.bf16.mxu0 0
      %5727 = vmatpush1.bf16.msra.mxu0 0
      %5728 = vmatprep.subr.bf16.mxu0 0
      %5729 = vmatpush1.bf16.msra.mxu0 0
      %5730 = vmatprep.subr.bf16.mxu0 0
      %5731 = vmatpush1.bf16.msra.mxu0 0
      %5732 = vmatprep.subr.bf16.mxu0 0
      %5733 = vmatpush1.bf16.msra.mxu0 0
      %5734 = vmatprep.subr.bf16.mxu0 0
      %5735 = vmatpush1.bf16.msra.mxu0 0
      %5736 = vmatprep.subr.bf16.mxu0 0
      %5737 = vmatpush1.bf16.msra.mxu0 0
      %5738 = vmatprep.subr.bf16.mxu0 0
      %5739 = vmatpush1.bf16.msra.mxu0 0
      %5740 = vmatprep.mubr.bf16.mxu0 0
      %5741 = vmatmul.mubr.bf16.gmra.mrb[0].mxu0 %v392
      %v5742 = vpop.f32.mrb[0].mxu0
      %v5743 = vadd.f32 %v5703, %v5742
      %v5744 = vpop.f32.mrb[0].mxu0
      %v5745 = vpop.f32.mrb[0].mxu0
      %v5746 = vadd.f32 %v5703, %v5745
      %v5747 = vpop.f32.mrb[0].mxu0
      %5748 = vmatprep.mubr.bf16.mxu0 0
      %5749 = vmatmul.mubr.bf16.gmra.mrb[0].mxu0 %v395
      %v5750 = vpop.f32.mrb[0].mxu0
      %v5751 = vadd.f32 %v5703, %v5750
      %v5752 = vpop.f32.mrb[0].mxu0
      %v5753 = vpop.f32.mrb[0].mxu0
      %v5754 = vadd.f32 %v5703, %v5753
      %v5755 = vpop.f32.mrb[0].mxu0
      %5756 = vmatprep.mubr.bf16.mxu0 0
      %5757 = vmatmul.mubr.bf16.gmra.mrb[0].mxu0 %v398
      %v5758 = vpop.f32.mrb[0].mxu0
      %v5759 = vadd.f32 %v5703, %v5758
      %v5760 = vpop.f32.mrb[0].mxu0
      %v5761 = vpop.f32.mrb[0].mxu0
      %v5762 = vadd.f32 %v5703, %v5761
      %v5763 = vpop.f32.mrb[0].mxu0
      %5764 = vmatprep.mubr.bf16.mxu0 0
      %5765 = vmatmul.mubr.bf16.gmra.mrb[0].mxu0 %v401
      %v5766 = vpop.f32.mrb[0].mxu0
      %v5767 = vadd.f32 %v5703, %v5766
      %v5768 = vpop.f32.mrb[0].mxu0
      %v5769 = vpop.f32.mrb[0].mxu0
      %v5770 = vadd.f32 %v5703, %v5769
      %v5771 = vpop.f32.mrb[0].mxu0
      %5772 = vmatprep.mubr.bf16.mxu0 0
      %5773 = vmatmul.mubr.bf16.gmra.mrb[0].mxu0 %v404
      %v5774 = vpop.f32.mrb[0].mxu0
      %v5775 = vadd.f32 %v5703, %v5774
      %v5776 = vpop.f32.mrb[0].mxu0
      %v5777 = vpop.f32.mrb[0].mxu0
      %v5778 = vadd.f32 %v5703, %v5777
      %v5779 = vpop.f32.mrb[0].mxu0
      %5780 = vmatprep.mubr.bf16.mxu0 0
      %5781 = vmatmul.mubr.bf16.gmra.mrb[0].mxu0 %v407
      %v5782 = vpop.f32.mrb[0].mxu0
      %v5783 = vadd.f32 %v5703, %v5782
      %v5784 = vpop.f32.mrb[0].mxu0
      %v5785 = vpop.f32.mrb[0].mxu0
      %v5786 = vadd.f32 %v5703, %v5785
      %v5787 = vpop.f32.mrb[0].mxu0
      %5788 = vmatprep.mubr.bf16.mxu0 0
      %5789 = vmatmul.mubr.bf16.gmra.mrb[0].mxu0 %v410
      %v5790 = vpop.f32.mrb[0].mxu0
      %v5791 = vadd.f32 %v5703, %v5790
      %v5792 = vpop.f32.mrb[0].mxu0
      %v5793 = vpop.f32.mrb[0].mxu0
      %v5794 = vadd.f32 %v5703, %v5793
      %v5795 = vpop.f32.mrb[0].mxu0
      %5796 = vmatprep.mubr.bf16.mxu0 0
      %5797 = vmatmul.mubr.bf16.gmra.mrb[0].mxu0 %v413
      %v5798 = vpop.f32.mrb[0].mxu0
      %v5799 = vadd.f32 %v5703, %v5798
      %v5800 = vpop.f32.mrb[0].mxu0
      %v5801 = vpop.f32.mrb[0].mxu0
      %v5802 = vadd.f32 %v5703, %v5801
      %v5803 = vpop.f32.mrb[0].mxu0
      %5804 = vmatprep.mubr.bf16.mxu0 0
      %5805 = vmatmul.mubr.bf16.gmra.mrb[0].mxu0 %v416
      %v5806 = vpop.f32.mrb[0].mxu0
      %v5807 = vadd.f32 %v5703, %v5806
      %v5808 = vpop.f32.mrb[0].mxu0
      %v5809 = vpop.f32.mrb[0].mxu0
      %v5810 = vadd.f32 %v5703, %v5809
      %v5811 = vpop.f32.mrb[0].mxu0
      %5812 = vmatprep.mubr.bf16.mxu0 0
      %5813 = vmatmul.mubr.bf16.gmra.mrb[0].mxu0 %v419
      %v5814 = vpop.f32.mrb[0].mxu0
      %v5815 = vadd.f32 %v5703, %v5814
      %v5816 = vpop.f32.mrb[0].mxu0
      %v5817 = vpop.f32.mrb[0].mxu0
      %v5818 = vadd.f32 %v5703, %v5817
      %v5819 = vpop.f32.mrb[0].mxu0
      %5820 = vmatprep.mubr.bf16.mxu0 0
      %5821 = vmatmul.mubr.bf16.gmra.mrb[0].mxu0 %v422
      %v5822 = vpop.f32.mrb[0].mxu0
      %v5823 = vadd.f32 %v5703, %v5822
      %v5824 = vpop.f32.mrb[0].mxu0
      %v5825 = vpop.f32.mrb[0].mxu0
      %v5826 = vadd.f32 %v5703, %v5825
      %v5827 = vpop.f32.mrb[0].mxu0
      %5828 = vmatprep.mubr.bf16.mxu0 0
      %5829 = vmatmul.mubr.bf16.gmra.mrb[0].mxu0 %v425
      %v5830 = vpop.f32.mrb[0].mxu0
      %v5831 = vadd.f32 %v5703, %v5830
      %v5832 = vpop.f32.mrb[0].mxu0
      %v5833 = vpop.f32.mrb[0].mxu0
      %v5834 = vadd.f32 %v5703, %v5833
      %v5835 = vpop.f32.mrb[0].mxu0
      %5836 = vmatprep.mubr.bf16.mxu0 0
      %5837 = vmatmul.mubr.bf16.gmra.mrb[0].mxu0 %v428
      %v5838 = vpop.f32.mrb[0].mxu0
      %v5839 = vadd.f32 %v5703, %v5838
      %v5840 = vpop.f32.mrb[0].mxu0
      %v5841 = vpop.f32.mrb[0].mxu0
      %v5842 = vadd.f32 %v5703, %v5841
      %v5843 = vpop.f32.mrb[0].mxu0
      %5844 = vmatprep.mubr.bf16.mxu0 0
      %5845 = vmatmul.mubr.bf16.gmra.mrb[0].mxu0 %v431
      %v5846 = vpop.f32.mrb[0].mxu0
      %v5847 = vadd.f32 %v5703, %v5846
      %v5848 = vpop.f32.mrb[0].mxu0
      %v5849 = vpop.f32.mrb[0].mxu0
      %v5850 = vadd.f32 %v5703, %v5849
      %v5851 = vpop.f32.mrb[0].mxu0
      %5852 = vmatprep.mubr.bf16.mxu0 0
      %5853 = vmatmul.mubr.bf16.gmra.mrb[0].mxu0 %v434
      %v5854 = vpop.f32.mrb[0].mxu0
      %v5855 = vadd.f32 %v5703, %v5854
      %v5856 = vpop.f32.mrb[0].mxu0
      %v5857 = vpop.f32.mrb[0].mxu0
      %v5858 = vadd.f32 %v5703, %v5857
      %v5859 = vpop.f32.mrb[0].mxu0
      %5860 = vmatprep.mubr.bf16.mxu0 0
      %5861 = vmatmul.mubr.bf16.gmra.mrb[0].mxu0 %v437
      %v5862 = vpop.f32.mrb[0].mxu0
      %v5863 = vadd.f32 %v5703, %v5862
      %v5864 = vpop.f32.mrb[0].mxu0
      %v5865 = vpop.f32.mrb[0].mxu0
      %v5866 = vadd.f32 %v5703, %v5865
      %v5867 = vpop.f32.mrb[0].mxu0
      %5868 = vdwg.mxu0
      %v5869 = vadd.f32 %v5665, %v5743
      %v5870 = vadd.f32 %v5666, %v5746
      %v5871 = vadd.f32 %v5667, %v5751
      %v5872 = vadd.f32 %v5668, %v5754
      %v5873 = vadd.f32 %v5669, %v5759
      %v5874 = vadd.f32 %v5670, %v5762
      %v5875 = vadd.f32 %v5671, %v5767
      %v5876 = vadd.f32 %v5672, %v5770
      %v5877 = vadd.f32 %v5673, %v5775
      %v5878 = vadd.f32 %v5674, %v5778
      %v5879 = vadd.f32 %v5675, %v5783
      %v5880 = vadd.f32 %v5676, %v5786
      %v5881 = vadd.f32 %v5677, %v5791
      %v5882 = vadd.f32 %v5678, %v5794
      %v5883 = vadd.f32 %v5679, %v5799
      %v5884 = vadd.f32 %v5680, %v5802
      %v5885 = vadd.f32 %v5681, %v5807
      %v5886 = vadd.f32 %v5682, %v5810
      %v5887 = vadd.f32 %v5683, %v5815
      %v5888 = vadd.f32 %v5684, %v5818
      %v5889 = vadd.f32 %v5685, %v5823
      %v5890 = vadd.f32 %v5686, %v5826
      %v5891 = vadd.f32 %v5687, %v5831
      %v5892 = vadd.f32 %v5688, %v5834
      %v5893 = vadd.f32 %v5689, %v5839
      %v5894 = vadd.f32 %v5690, %v5842
      %v5895 = vadd.f32 %v5691, %v5847
      %v5896 = vadd.f32 %v5692, %v5850
      %v5897 = vadd.f32 %v5693, %v5855
      %v5898 = vadd.f32 %v5694, %v5858
      %v5899 = vadd.f32 %v5695, %v5863
      %v5900 = vadd.f32 %v5696, %v5866
      %5901 = vst.msk [vmem:[%s332] sm:$0xff] %vm4348, %v5869
      %5902 = vst.msk [vmem:[%s332 + $0x8] sm:$0xff] %vm4348, %v5870
      %5903 = vst.msk [vmem:[%s332 + $0x10] sm:$0xff] %vm4348, %v5871
      %5904 = vst.msk [vmem:[%s332 + $0x18] sm:$0xff] %vm4348, %v5872
      %5905 = vst.msk [vmem:[%s332 + $0x20] sm:$0xff] %vm4348, %v5873
      %5906 = vst.msk [vmem:[%s332 + $0x28] sm:$0xff] %vm4348, %v5874
      %5907 = vst.msk [vmem:[%s332 + $0x30] sm:$0xff] %vm4348, %v5875
      %5908 = vst.msk [vmem:[%s332 + $0x38] sm:$0xff] %vm4348, %v5876
      %5909 = vst.msk [vmem:[%s332 + $0x40] sm:$0xff] %vm4348, %v5877
      %5910 = vst.msk [vmem:[%s332 + $0x48] sm:$0xff] %vm4348, %v5878
      %5911 = vst.msk [vmem:[%s332 + $0x50] sm:$0xff] %vm4348, %v5879
      %5912 = vst.msk [vmem:[%s332 + $0x58] sm:$0xff] %vm4348, %v5880
      %5913 = vst.msk [vmem:[%s332 + $0x60] sm:$0xff] %vm4348, %v5881
      %5914 = vst.msk [vmem:[%s332 + $0x68] sm:$0xff] %vm4348, %v5882
      %5915 = vst.msk [vmem:[%s332 + $0x70] sm:$0xff] %vm4348, %v5883
      %5916 = vst.msk [vmem:[%s332 + $0x78] sm:$0xff] %vm4348, %v5884
      %5917 = vst.msk [vmem:[%s332 + $0x80] sm:$0xff] %vm4348, %v5885
      %5918 = vst.msk [vmem:[%s332 + $0x88] sm:$0xff] %vm4348, %v5886
      %5919 = vst.msk [vmem:[%s332 + $0x90] sm:$0xff] %vm4348, %v5887
      %5920 = vst.msk [vmem:[%s332 + $0x98] sm:$0xff] %vm4348, %v5888
      %5921 = vst.msk [vmem:[%s332 + $0xa0] sm:$0xff] %vm4348, %v5889
      %5922 = vst.msk [vmem:[%s332 + $0xa8] sm:$0xff] %vm4348, %v5890
      %5923 = vst.msk [vmem:[%s332 + $0xb0] sm:$0xff] %vm4348, %v5891
      %5924 = vst.msk [vmem:[%s332 + $0xb8] sm:$0xff] %vm4348, %v5892
      %5925 = vst.msk [vmem:[%s332 + $0xc0] sm:$0xff] %vm4348, %v5893
      %5926 = vst.msk [vmem:[%s332 + $0xc8] sm:$0xff] %vm4348, %v5894
      %5927 = vst.msk [vmem:[%s332 + $0xd0] sm:$0xff] %vm4348, %v5895
      %5928 = vst.msk [vmem:[%s332 + $0xd8] sm:$0xff] %vm4348, %v5896
      %5929 = vst.msk [vmem:[%s332 + $0xe0] sm:$0xff] %vm4348, %v5897
      %5930 = vst.msk [vmem:[%s332 + $0xe8] sm:$0xff] %vm4348, %v5898
      %5931 = vst.msk [vmem:[%s332 + $0xf0] sm:$0xff] %vm4348, %v5899
      %5932 = vst.msk [vmem:[%s332 + $0xf8] sm:$0xff] %vm4348, %v5900
      %p5933 = scmp.lt.s32.totalorder %s20, 1
      %s5934 = scalar_select %p5933, %s20, 1
      %s5935 = smul.addr %s5934, 32
      %s5936 = smul.addr %s5935, 8
      %s5937 = scalar_lea.vmem %s9, %s5936
      // Predicated region
      $region57: #{tpu_custom_call.1} parent=55 // pred_check
        %p5938 = pneg %p232
      $region58: #{tpu_custom_call.1} parent=55 // pred_check_branch
        %5940 = sbr.rel (%p5938) target = $region60
      $region59: #{tpu_custom_call.1} parent=55 // pred_region
        _
      $region60: #{tpu_custom_call.1} parent=55 // pred_fallthru
        _
    $region56: #{tpu_custom_call.1} parent=5 // pred_fallthru
      _
    %p5941 = scmp.le.s32.totalorder 2, %s15
    // Predicated region
    $region61: #{tpu_custom_call.1} parent=5 // pred_check
      %p5942 = pneg %p5941
    $region62: #{tpu_custom_call.1} parent=5 // pred_check_branch
      %5944 = sbr.rel (%p5942) target = $region64
    $region63: #{tpu_custom_call.1} parent=5 // pred_region
      %s5945 = ssub.s32 %s15, 2
      // Predicated region
      $region65: #{tpu_custom_call.1} parent=63 // pred_check
        %p5946 = pneg %p238
      $region66: #{tpu_custom_call.1} parent=63 // pred_check_branch
        %5948 = sbr.rel (%p5946) target = $region68
      $region67: #{tpu_custom_call.1} parent=63 // pred_region
        %p5949 = scmp.lt.s32.totalorder %s21, 1
        %s5950 = scalar_select %p5949, %s21, 1
        %s5951 = smul.addr %s5950, 32
        %s5952 = smul.addr %s5951, 8
        %s5953 = scalar_lea.vmem %s9, %s5952
      $region68: #{tpu_custom_call.1} parent=63 // pred_fallthru
        _
    $region64: #{tpu_custom_call.1} parent=5 // pred_fallthru
      _
  $region6: #{tpu_custom_call.1} parent=0 // loop_footer
    %s19 = sadd.s32 1, %s15
  $region7: #{tpu_custom_call.1} parent=0 // loop_footer_branch
    %14 = sbr.rel target = $region3
  $region8: #{tpu_custom_call.1} parent=0 // loop_exit
    _

</llo_original>
